<compile_context>
chip_gen: v5e
topology: v5e:2x2
jax: 0.10.0
libtpu: 0.0.40
codegen_flags: <defaults>
</compile_context>

<pallas_src>
import math

import jax
import jax.numpy as jnp
from jax.experimental import pallas as pl
from jax.experimental.pallas import tpu as pltpu


def _sine_pe_kernel(yx_ref, inv_ref, ph_ref, out_ref):
    # Block shapes:
    #   yx_ref : (1, 2, BLK)  row 0 = y_embed, row 1 = x_embed (flattened H*W, lane-dense)
    #   inv_ref: (1, F, 1)    1 / dim_t             (per channel, sublane axis)
    #   ph_ref : (1, F, 1)    phase: 0 (even ch -> sin) or pi/2 (odd ch -> cos)
    #   out_ref: (1, 2F, BLK) NCHW output tile: channels on sublanes, positions on lanes
    F = inv_ref.shape[1]
    inv = inv_ref[...]                        # (1, F, 1)
    ph = ph_ref[...]                          # (1, F, 1)

    # cos(a) == sin(a + pi/2); correct here because dim_t[2p] == dim_t[2p+1], so
    # even/odd channels share a frequency.  Store each half directly (no concat copy).
    y = yx_ref[:, 0:1, :]                     # (1, 1, BLK)
    out_ref[:, :F, :] = jnp.sin(y * inv + ph).astype(out_ref.dtype)
    x = yx_ref[:, 1:2, :]                     # (1, 1, BLK)
    out_ref[:, F:, :] = jnp.sin(x * inv + ph).astype(out_ref.dtype)


def _pick_block_hw(HW, C, tile_bytes, out_bytes):
    """Block along flattened H*W: a multiple of 128 lanes with output tile
    C * blk * out_bytes <= tile_bytes.  No divisibility requirement on H*W --
    the ragged last grid block is handled by Pallas boundary masking."""
    max_elems = max(128, (tile_bytes // (C * out_bytes)) // 128 * 128)
    if max_elems >= HW:
        return HW            # single full block == full array dim (always layout-legal)
    return max_elems         # multiple of 128 (< HW): legal; last block is masked


def sine_positional_encoding(mask, *, num_feats=128, temperature=10000,
                             normalize=True, scale=2 * math.pi, eps=1e-6, offset=0.0,
                             tile_bytes=4 << 20, out_dtype=jnp.float32):
    B, H, W = mask.shape
    F = num_feats
    C = 2 * F
    HW = H * W

    # --- cheap O(B*H*W) prologue in plain JAX (sequential cumsums + normalization) ---
    not_mask = (1 - mask.astype(jnp.int32)).astype(jnp.float32)
    y_embed = jnp.cumsum(not_mask, axis=1)
    x_embed = jnp.cumsum(not_mask, axis=2)
    if normalize:
        y_embed = (y_embed + offset) / (y_embed[:, -1:, :] + eps) * scale
        x_embed = (x_embed + offset) / (x_embed[:, :, -1:] + eps) * scale

    # One stacked, lane-dense input (B, 2, H*W): halves the per-step input DMA count.
    yx = jnp.stack((y_embed.reshape(B, HW), x_embed.reshape(B, HW)), axis=1)

    # Precompute 1/dim_t (multiply instead of divide) and the sin/cos phase shift.
    d = jnp.arange(F, dtype=jnp.float32)
    dim_t = temperature ** (2.0 * jnp.floor(d / 2.0) / F)
    inv_dim_t = (1.0 / dim_t).reshape(1, F, 1).astype(jnp.float32)
    phase = ((d % 2.0) * (math.pi / 2.0)).reshape(1, F, 1).astype(jnp.float32)

    out_bytes = jnp.dtype(out_dtype).itemsize
    blk = _pick_block_hw(HW, C, tile_bytes, out_bytes)
    grid = (B, pl.cdiv(HW, blk))

    # Explicit VMEM budget: double-buffered output tile + double-buffered (8-sublane
    # padded) input tile + constants/slack.  Portable across v5e/v6e/v7x defaults.
    vmem_limit = 2 * C * blk * out_bytes + 2 * 8 * blk * 4 + (2 << 20)
    vmem_limit = int(min(max(vmem_limit, 16 << 20), 64 << 20))

    cost = pl.CostEstimate(
        flops=2 * B * C * HW,                              # one mul + one add per elem
        transcendentals=B * C * HW,                        # one sin per elem
        bytes_accessed=out_bytes * B * C * HW + 8 * B * HW)

    out = pl.pallas_call(
        _sine_pe_kernel,
        out_shape=jax.ShapeDtypeStruct((B, C, HW), out_dtype),
        grid=grid,
        in_specs=[
            pl.BlockSpec((1, 2, blk), lambda b, h: (b, 0, h)),   # stacked y/x embeds
            pl.BlockSpec((1, F, 1), lambda b, h: (0, 0, 0)),     # 1/dim_t (constant)
            pl.BlockSpec((1, F, 1), lambda b, h: (0, 0, 0)),     # phase   (constant)
        ],
        out_specs=pl.BlockSpec((1, C, blk), lambda b, h: (b, 0, h)),
        compiler_params=pltpu.CompilerParams(
            dimension_semantics=("parallel", "parallel"),
            vmem_limit_bytes=vmem_limit),
        cost_estimate=cost,
    )(yx, inv_dim_t, phase)

    # (B, C, H*W) -> (B, C, H, W): contiguous reshape, no transpose / extra HBM traffic.
    return out.reshape(B, C, H, W)


def _reference(mask, num_feats=128, temperature=10000, normalize=True,
               scale=2 * math.pi, eps=1e-6, offset=0.0):
    """Pure-JAX transcription of the PyTorch forward (for verification)."""
    not_mask = (1 - mask.astype(jnp.int32)).astype(jnp.float32)
    y_embed = jnp.cumsum(not_mask, axis=1)
    x_embed = jnp.cumsum(not_mask, axis=2)
    if normalize:
        y_embed = (y_embed + offset) / (y_embed[:, -1:, :] + eps) * scale
        x_embed = (x_embed + offset) / (x_embed[:, :, -1:] + eps) * scale
    dim_t = jnp.arange(num_feats, dtype=jnp.float32)
    dim_t = temperature ** (2.0 * jnp.floor(dim_t / 2.0) / num_feats)
    pos_x = x_embed[:, :, :, None] / dim_t
    pos_y = y_embed[:, :, :, None] / dim_t
    B, H, W = mask.shape
    pos_x = jnp.stack((jnp.sin(pos_x[:, :, :, 0::2]), jnp.cos(pos_x[:, :, :, 1::2])),
                      axis=4).reshape(B, H, W, -1)
    pos_y = jnp.stack((jnp.sin(pos_y[:, :, :, 0::2]), jnp.cos(pos_y[:, :, :, 1::2])),
                      axis=4).reshape(B, H, W, -1)
    pos = jnp.concatenate((pos_y, pos_x), axis=3).transpose(0, 3, 1, 2)
    return pos


if __name__ == "__main__":
    key = jax.random.PRNGKey(0)
    num_feats = 64  # output has 2*num_feats = 128 channels

    # Case 1: aligned spatial shape, default tiling (single full block per batch).
    B, H, W = 2, 16, 16
    mask = (jax.random.uniform(key, (B, H, W)) > 0.7).astype(jnp.int32)
    pos = jax.block_until_ready(sine_positional_encoding(mask, num_feats=num_feats))
    assert pos.shape == (B, 2 * num_feats, H, W), pos.shape
    ref = _reference(mask, num_feats=num_feats)
    assert jnp.allclose(pos, ref, atol=1e-5, rtol=1e-5), float(jnp.max(jnp.abs(pos - ref)))

    # Case 2: non-128-divisible H*W with a tiny tile budget -> exercises the ragged
    # (masked) last grid block along flattened H*W.
    B2, H2, W2 = 2, 10, 13
    key2 = jax.random.PRNGKey(0)
    mask2 = (jax.random.uniform(key2, (B2, H2, W2)) > 0.7).astype(jnp.int32)
    pos2 = jax.block_until_ready(
        sine_positional_encoding(mask2, num_feats=num_feats, tile_bytes=64 << 10))
    ref2 = _reference(mask2, num_feats=num_feats)
    assert pos2.shape == (B2, 2 * num_feats, H2, W2), pos2.shape
    assert jnp.allclose(pos2, ref2, atol=1e-5, rtol=1e-5), float(jnp.max(jnp.abs(pos2 - ref2)))

    print("KERNEL_OK")
</pallas_src>

<mosaic_0001>
module attributes {stable_mosaic.version = 11 : i64} {
  func.func @_sine_pe_kernel(%arg0: i32, %arg1: i32, %arg2: memref<1x2x256xf32, #tpu.memory_space<vmem>>, %arg3: memref<1x64x1xf32, #tpu.memory_space<vmem>>, %arg4: memref<1x64x1xf32, #tpu.memory_space<vmem>>, %arg5: memref<1x128x256xf32, #tpu.memory_space<vmem>>) attributes {dimension_semantics = [#tpu.dimension_semantics<parallel>, #tpu.dimension_semantics<parallel>], iteration_bounds = array<i64: 2, 1>, scalar_prefetch = 0 : i64, scratch_operands = 0 : i64, tpu.core_type = #tpu.core_type<tc>, window_params = [{transform_indices = @transform_0, window_bounds = array<i64: 1, 2, 256>}, {pipeline_mode = #tpu.pipeline_mode<synchronous>, transform_indices = @transform_1, window_bounds = array<i64: 1, 64, 1>}, {pipeline_mode = #tpu.pipeline_mode<synchronous>, transform_indices = @transform_2, window_bounds = array<i64: 1, 64, 1>}, {transform_indices = @transform_3, window_bounds = array<i64: 1, 128, 256>}]} {
    %c0 = arith.constant 0 : index
    %c0_0 = arith.constant 0 : index
    %c0_1 = arith.constant 0 : index
    %0 = vector.load %arg3[%c0, %c0_0, %c0_1] : memref<1x64x1xf32, #tpu.memory_space<vmem>>, vector<1x64x1xf32>
    %c0_2 = arith.constant 0 : index
    %c0_3 = arith.constant 0 : index
    %c0_4 = arith.constant 0 : index
    %1 = vector.load %arg4[%c0_2, %c0_3, %c0_4] : memref<1x64x1xf32, #tpu.memory_space<vmem>>, vector<1x64x1xf32>
    %c0_5 = arith.constant 0 : index
    %c0_6 = arith.constant 0 : index
    %c0_7 = arith.constant 0 : index
    %2 = vector.load %arg2[%c0_5, %c0_6, %c0_7] : memref<1x2x256xf32, #tpu.memory_space<vmem>>, vector<1x1x256xf32>
    %3 = vector.broadcast %2 : vector<1x1x256xf32> to vector<1x64x256xf32>
    %4 = vector.broadcast %0 : vector<1x64x1xf32> to vector<1x64x256xf32>
    %5 = arith.mulf %3, %4 : vector<1x64x256xf32>
    %6 = vector.broadcast %1 : vector<1x64x1xf32> to vector<1x64x256xf32>
    %7 = arith.addf %5, %6 : vector<1x64x256xf32>
    %8 = math.sin %7 : vector<1x64x256xf32>
    %c0_8 = arith.constant 0 : index
    %c0_9 = arith.constant 0 : index
    %c0_10 = arith.constant 0 : index
    %9 = vector.load %arg5[%c0_8, %c0_9, %c0_10] : memref<1x128x256xf32, #tpu.memory_space<vmem>>, vector<1x64x256xf32>
    tpu.vector_store %arg5[%c0_8, %c0_9, %c0_10], %8 {strides = array<i32>} : memref<1x128x256xf32, #tpu.memory_space<vmem>>, vector<1x64x256xf32>,
    %c0_11 = arith.constant 0 : index
    %c1 = arith.constant 1 : index
    %c0_12 = arith.constant 0 : index
    %10 = vector.load %arg2[%c0_11, %c1, %c0_12] : memref<1x2x256xf32, #tpu.memory_space<vmem>>, vector<1x1x256xf32>
    %11 = vector.broadcast %10 : vector<1x1x256xf32> to vector<1x64x256xf32>
    %12 = vector.broadcast %0 : vector<1x64x1xf32> to vector<1x64x256xf32>
    %13 = arith.mulf %11, %12 : vector<1x64x256xf32>
    %14 = vector.broadcast %1 : vector<1x64x1xf32> to vector<1x64x256xf32>
    %15 = arith.addf %13, %14 : vector<1x64x256xf32>
    %16 = math.sin %15 : vector<1x64x256xf32>
    %c0_13 = arith.constant 0 : index
    %c64 = arith.constant 64 : index
    %c0_14 = arith.constant 0 : index
    %17 = vector.load %arg5[%c0_13, %c64, %c0_14] : memref<1x128x256xf32, #tpu.memory_space<vmem>>, vector<1x64x256xf32>
    tpu.vector_store %arg5[%c0_13, %c64, %c0_14], %16 {strides = array<i32>} : memref<1x128x256xf32, #tpu.memory_space<vmem>>, vector<1x64x256xf32>,
    return
  }
  func.func @transform_0(%arg0: i32, %arg1: i32) -> (i32, i32, i32) {
    %c0_i32 = arith.constant 0 : i32
    %c0_i32_0 = arith.constant 0 : i32
    return %arg0, %c0_i32, %arg1 : i32, i32, i32
  }
  func.func @transform_1(%arg0: i32, %arg1: i32) -> (i32, i32, i32) {
    %c0_i32 = arith.constant 0 : i32
    %c0_i32_0 = arith.constant 0 : i32
    %c0_i32_1 = arith.constant 0 : i32
    %c0_i32_2 = arith.constant 0 : i32
    return %c0_i32, %c0_i32_0, %c0_i32_1 : i32, i32, i32
  }
  func.func @transform_2(%arg0: i32, %arg1: i32) -> (i32, i32, i32) {
    %c0_i32 = arith.constant 0 : i32
    %c0_i32_0 = arith.constant 0 : i32
    %c0_i32_1 = arith.constant 0 : i32
    %c0_i32_2 = arith.constant 0 : i32
    return %c0_i32, %c0_i32_0, %c0_i32_1 : i32, i32, i32
  }
  func.func @transform_3(%arg0: i32, %arg1: i32) -> (i32, i32, i32) {
    %c0_i32 = arith.constant 0 : i32
    %c0_i32_0 = arith.constant 0 : i32
    return %arg0, %c0_i32, %arg1 : i32, i32, i32
  }
}

</mosaic_0001>

<llo_original>
// kernel: tpu_custom_call.1
$region0: #{tpu_custom_call.1}
  #allocation0 [shape = 'u32[]', space=smem, size = 0x4, offset = 0x4, fixed_abs, tag = 'smem constant byte address 0x4 - core index']
  #allocation1 [shape = 'u32[72,128]{1,0:T(1,128)}', space=vmem, size = 0x9000, scoped, tag = 'internal scratch']
  %s0 = inlined_call_operand.vmem [shape: f32[2,2,256], index: 0, kind: input, shape index: {}]
  %s1 = inlined_call_operand.vmem [shape: f32[1,64,1], index: 1, kind: input, shape index: {}]
  %s2 = inlined_call_operand.vmem [shape: f32[1,64,1], index: 2, kind: input, shape index: {}]
  %s3 = inlined_call_operand.hbm [shape: f32[2,128,256], index: 3, kind: output, shape index: {}]
  %s4 = sld [smem:[#allocation0]]
  $region45: #{tpu_custom_call.1} parent=0
    _
  %s6 = ssub.s32 1, %s4
  %s7 = scalar_select 0, %s6, %s4
  $region1: #{tpu_custom_call.1} parent=0
    #allocation2 [shape = 'u8[262144]{0}', space=vmem, size = 0x40000, scoped, tag = 'output window, operand 0']
    #allocation3 [shape = 's32[2]{0}', space=sflag, size = 0x8, scoped, tag = 'scoped memory for tpu_custom_call.1']
    %8 = vsyncpa [#allocation3], 0
    %s9 = scalar_lea.sflag [#allocation3], 1
    %10 = vsyncpa %s9, 0
    loop: start=0, step=1, limit=4
    $region2: #{tpu_custom_call.1} parent=1 // loop_pre_header
      _
    $region3: #{tpu_custom_call.1} parent=1 // loop_header
      %s12 = sphi 0, %s16
      %p13 = scmp.ge.s32.totalorder %s12, 4
      %s19 = sphi 0, %s31
      %s20 = sphi 0, %s27
      %s21 = sphi 0, %s19
      %s22 = sphi 0, %s20
      %s23 = sphi 0, %s21
      %s24 = sphi 0, %s22
      %s36 = sphi 0, %s38
      %s39 = sphi 0, %s36
      %s40 = sphi 0, %s39
      %s56 = sphi 0, %s40
      %s60 = sphi 0, %s60
      %s62 = sphi 0, %s60
      %s63 = sphi 0, %s62
      %s77 = sphi 0, %s63
      %s81 = sphi 0, %s81
      %s83 = sphi 0, %s81
      %s84 = sphi 0, %s83
      %s98 = sphi 0, %s84
      %s106 = sphi 0, %s108
      %s109 = sphi 0, %s106
      %s110 = sphi 0, %s109
      %s126 = sphi 0, %s110
    $region4: #{tpu_custom_call.1} parent=1 // loop_header_branch
      %15 = sbr.rel (%p13) target = $region8
    $region5: #{tpu_custom_call.1} parent=1 // loop_body
      %s17 = ssub.s32 %s12, 1
      %s18 = ssub.s32 %s12, 2
      %s25 = sadd.s32 1, %s20
      %p26 = scmp.ge.s32.totalorder %s25, 1
      %s27 = scalar_select %p26, 0, %s25
      %s28 = sadd.s32 1, %s19
      %s29 = scalar_select %p26, %s28, %s19
      %p30 = scmp.ge.s32.totalorder %s29, 2
      %s31 = scalar_select %p30, 0, %s29
      %s32 = ssub.s32 %s19, %s31
      %s33 = ssub.s32 %s20, %s27
      %s34 = sor.u32 %s32, %s33
      %p35 = scmp.eq.s32.totalorder %s34, 0
      %s37 = sadd.s32 %s36, 1
      %s38 = scalar_select %p35, %s36, %s37
      %p41 = pneg %p35
      %p42 = scmp.eq.s32.totalorder %s12, 1
      %p43 = por %p41, %p42
      %p44 = scmp.ne.s32.totalorder %s36, %s39
      %p45 = scmp.eq.s32.totalorder %s12, 0
      %p46 = por %p44, %p45
      %p47 = scmp.ne.s32.totalorder %s36, %s39
      %p48 = scmp.eq.s32.totalorder %s17, 1
      %p49 = por %p47, %p48
      %p50 = scmp.ne.s32.totalorder %s39, %s40
      %p51 = scmp.eq.s32.totalorder %s17, 0
      %p52 = por %p50, %p51
      %p53 = scmp.ne.s32.totalorder %s39, %s40
      %p54 = scmp.eq.s32.totalorder %s18, 1
      %p55 = por %p53, %p54
      %p57 = scmp.ne.s32.totalorder %s40, %s56
      %p58 = scmp.eq.s32.totalorder %s18, 0
      %p59 = por %p57, %p58
      %s61 = sadd.s32 %s60, 1
      %p64 = scmp.eq.s32.totalorder %s12, 1
      %p65 = scmp.ne.s32.totalorder %s60, %s62
      %p66 = scmp.eq.s32.totalorder %s12, 0
      %p67 = por %p65, %p66
      %p68 = scmp.ne.s32.totalorder %s60, %s62
      %p69 = scmp.eq.s32.totalorder %s17, 1
      %p70 = por %p68, %p69
      %p71 = scmp.ne.s32.totalorder %s62, %s63
      %p72 = scmp.eq.s32.totalorder %s17, 0
      %p73 = por %p71, %p72
      %p74 = scmp.ne.s32.totalorder %s62, %s63
      %p75 = scmp.eq.s32.totalorder %s18, 1
      %p76 = por %p74, %p75
      %p78 = scmp.ne.s32.totalorder %s63, %s77
      %p79 = scmp.eq.s32.totalorder %s18, 0
      %p80 = por %p78, %p79
      %s82 = sadd.s32 %s81, 1
      %p85 = scmp.eq.s32.totalorder %s12, 1
      %p86 = scmp.ne.s32.totalorder %s81, %s83
      %p87 = scmp.eq.s32.totalorder %s12, 0
      %p88 = por %p86, %p87
      %p89 = scmp.ne.s32.totalorder %s81, %s83
      %p90 = scmp.eq.s32.totalorder %s17, 1
      %p91 = por %p89, %p90
      %p92 = scmp.ne.s32.totalorder %s83, %s84
      %p93 = scmp.eq.s32.totalorder %s17, 0
      %p94 = por %p92, %p93
      %p95 = scmp.ne.s32.totalorder %s83, %s84
      %p96 = scmp.eq.s32.totalorder %s18, 1
      %p97 = por %p95, %p96
      %p99 = scmp.ne.s32.totalorder %s84, %s98
      %p100 = scmp.eq.s32.totalorder %s18, 0
      %p101 = por %p99, %p100
      %s102 = ssub.s32 %s19, %s31
      %s103 = ssub.s32 %s20, %s27
      %s104 = sor.u32 %s102, %s103
      %p105 = scmp.eq.s32.totalorder %s104, 0
      %s107 = sadd.s32 %s106, 1
      %s108 = scalar_select %p105, %s106, %s107
      %p111 = pneg %p105
      %p112 = scmp.eq.s32.totalorder %s12, 1
      %p113 = por %p111, %p112
      %p114 = scmp.ne.s32.totalorder %s106, %s109
      %p115 = scmp.eq.s32.totalorder %s12, 0
      %p116 = por %p114, %p115
      %p117 = scmp.ne.s32.totalorder %s106, %s109
      %p118 = scmp.eq.s32.totalorder %s17, 1
      %p119 = por %p117, %p118
      %p120 = scmp.ne.s32.totalorder %s109, %s110
      %p121 = scmp.eq.s32.totalorder %s17, 0
      %p122 = por %p120, %p121
      %p123 = scmp.ne.s32.totalorder %s109, %s110
      %p124 = scmp.eq.s32.totalorder %s18, 1
      %p125 = por %p123, %p124
      %p127 = scmp.ne.s32.totalorder %s110, %s126
      %p128 = scmp.eq.s32.totalorder %s18, 0
      %p129 = por %p127, %p128
      %p130 = scmp.le.s32.totalorder 1, %s12
      %p131 = scmp.lt.s32.totalorder %s12, 3
      %p132 = pnand %p130, %p131
      %p133 = pneg %p132
      // Predicated region
      $region9: #{tpu_custom_call.1} parent=5 // pred_check
        _
      $region10: #{tpu_custom_call.1} parent=5 // pred_check_branch
        %135 = sbr.rel (%p132) target = $region12
      $region11: #{tpu_custom_call.1} parent=5 // pred_region
        %s136 = ssub.s32 %s12, 1
        // Predicated region
        $region13: #{tpu_custom_call.1} parent=11 // pred_check
          %p137 = pneg %p73
        $region14: #{tpu_custom_call.1} parent=11 // pred_check_branch
          %139 = sbr.rel (%p137) target = $region16
        $region15: #{tpu_custom_call.1} parent=11 // pred_region
          _
        $region16: #{tpu_custom_call.1} parent=11 // pred_fallthru
          _
        // Predicated region
        $region17: #{tpu_custom_call.1} parent=11 // pred_check
          %p140 = pneg %p94
        $region18: #{tpu_custom_call.1} parent=11 // pred_check_branch
          %142 = sbr.rel (%p140) target = $region20
        $region19: #{tpu_custom_call.1} parent=11 // pred_region
          _
        $region20: #{tpu_custom_call.1} parent=11 // pred_fallthru
          _
      $region12: #{tpu_custom_call.1} parent=5 // pred_fallthru
        _
      %p143 = scmp.lt.s32.totalorder %s12, 2
      // Predicated region
      $region21: #{tpu_custom_call.1} parent=5 // pred_check
        %p144 = pneg %p143
      $region22: #{tpu_custom_call.1} parent=5 // pred_check_branch
        %146 = sbr.rel (%p144) target = $region24
      $region23: #{tpu_custom_call.1} parent=5 // pred_region
        // Predicated region
        $region25: #{tpu_custom_call.1} parent=23 // pred_check
          %p147 = pneg %p46
        $region26: #{tpu_custom_call.1} parent=23 // pred_check_branch
          %149 = sbr.rel (%p147) target = $region28
        $region27: #{tpu_custom_call.1} parent=23 // pred_region
          %s150 = smul.u32 2, %s20
          %p151 = scmp.lt.s32.totalorder %s19, 1
          %s152 = scalar_select %p151, %s19, 1
          %p153 = scmp.lt.s32.totalorder %s150, 1
          %s154 = scalar_select %p153, %s150, 1
          %s155 = smul.addr %s152, 2
          %s156 = sadd.s32 %s154, %s155
          %s157 = smul.addr %s156, 2
          %s158 = scalar_lea.vmem %s0, %s157
          %s159 = smul.u32 2, %s20
        $region28: #{tpu_custom_call.1} parent=23 // pred_fallthru
          _
      $region24: #{tpu_custom_call.1} parent=5 // pred_fallthru
        _
      %p160 = scmp.le.s32.totalorder 1, %s12
      %p161 = scmp.lt.s32.totalorder %s12, 3
      %p162 = pnand %p160, %p161
      %p163 = pneg %p162
      // Predicated region
      $region29: #{tpu_custom_call.1} parent=5 // pred_check
        _
      $region30: #{tpu_custom_call.1} parent=5 // pred_check_branch
        %165 = sbr.rel (%p162) target = $region32
      $region31: #{tpu_custom_call.1} parent=5 // pred_region
        %s166 = ssub.s32 %s12, 1
        %s167 = smul.u32 2, %s22
        %p168 = scmp.lt.s32.totalorder %s21, 1
        %s169 = scalar_select %p168, %s21, 1
        %p170 = scmp.lt.s32.totalorder %s167, 1
        %s171 = scalar_select %p170, %s167, 1
        %s172 = smul.addr %s169, 2
        %s173 = sadd.s32 %s171, %s172
        %s174 = smul.addr %s173, 2
        %s175 = scalar_lea.vmem %s0, %s174
        %p176 = pneg %p52
        %p177 = pneg %p49
        %p178 = pneg %p73
        %p179 = pneg %p70
        %p180 = pneg %p94
        %p181 = pneg %p91
        %p182 = pneg %p122
        %p183 = pneg %p119
        %s184 = sand.u32 %s109, 1
        %s185 = scalar_lea.sflag [#allocation3], %s184
        %s186 = sand.u32 %s109, 1
        %s187 = smul.addr %s186, 256
        %s188 = scalar_lea.vmem [#allocation2], %s187
        %s189 = smul.u32 2, %s22
        %p190 = scmp.lt.s32.totalorder %s21, 1
        %s191 = scalar_select %p190, %s21, 1
        %p192 = scmp.lt.s32.totalorder %s189, 1
        %s193 = scalar_select %p192, %s189, 1
        %s194 = smul.addr %s191, 2
        %s195 = sadd.s32 %s193, %s194
        %s196 = smul.addr %s195, 2
        %s197 = scalar_lea.vmem %s0, %s196
        %s198 = smul.u32 2, %s22
        %s199 = smul.u32 2, %s22
        %v200 = vld [vmem:[%s1] sm:$0xff]
        %v201 = vld [vmem:[%s1 + $0x8] sm:$0xff]
        %v202 = vld [vmem:[%s1 + $0x10] sm:$0xff]
        %v203 = vld [vmem:[%s1 + $0x18] sm:$0xff]
        %v204 = vld [vmem:[%s1 + $0x20] sm:$0xff]
        %v205 = vld [vmem:[%s1 + $0x28] sm:$0xff]
        %v206 = vld [vmem:[%s1 + $0x30] sm:$0xff]
        %v207 = vld [vmem:[%s1 + $0x38] sm:$0xff]
        %v208 = vld [vmem:[%s2] sm:$0xff]
        %v209 = vld [vmem:[%s2 + $0x8] sm:$0xff]
        %v210 = vld [vmem:[%s2 + $0x10] sm:$0xff]
        %v211 = vld [vmem:[%s2 + $0x18] sm:$0xff]
        %v212 = vld [vmem:[%s2 + $0x20] sm:$0xff]
        %v213 = vld [vmem:[%s2 + $0x28] sm:$0xff]
        %v214 = vld [vmem:[%s2 + $0x30] sm:$0xff]
        %v215 = vld [vmem:[%s2 + $0x38] sm:$0xff]
        %v216 = vld [vmem:[%s197] ss:$2 sm:$0x3]
        %v218 = vperm.slane %v216, 0
        %v219 = vperm.slane %v216, 1
        %223 = vset.pattern.permute.xlu0 0
        %224 = vperm.xlu0 %223, %v200
        %v225 = vpop.permute.xlu0 %224
        %228 = vset.pattern.permute.xlu0 0
        %229 = vperm.xlu0 %228, %v201
        %v230 = vpop.permute.xlu0 %229
        %233 = vset.pattern.permute.xlu0 0
        %234 = vperm.xlu0 %233, %v202
        %v235 = vpop.permute.xlu0 %234
        %238 = vset.pattern.permute.xlu0 0
        %239 = vperm.xlu0 %238, %v203
        %v240 = vpop.permute.xlu0 %239
        %243 = vset.pattern.permute.xlu0 0
        %244 = vperm.xlu0 %243, %v204
        %v245 = vpop.permute.xlu0 %244
        %248 = vset.pattern.permute.xlu0 0
        %249 = vperm.xlu0 %248, %v205
        %v250 = vpop.permute.xlu0 %249
        %253 = vset.pattern.permute.xlu0 0
        %254 = vperm.xlu0 %253, %v206
        %v255 = vpop.permute.xlu0 %254
        %258 = vset.pattern.permute.xlu0 0
        %259 = vperm.xlu0 %258, %v207
        %v260 = vpop.permute.xlu0 %259
        %v262 = vmul.f32 %v218, %v225
        %v263 = vmul.f32 %v219, %v225
        %v264 = vmul.f32 %v218, %v230
        %v265 = vmul.f32 %v219, %v230
        %v266 = vmul.f32 %v218, %v235
        %v267 = vmul.f32 %v219, %v235
        %v268 = vmul.f32 %v218, %v240
        %v269 = vmul.f32 %v219, %v240
        %v270 = vmul.f32 %v218, %v245
        %v271 = vmul.f32 %v219, %v245
        %v272 = vmul.f32 %v218, %v250
        %v273 = vmul.f32 %v219, %v250
        %v274 = vmul.f32 %v218, %v255
        %v275 = vmul.f32 %v219, %v255
        %v276 = vmul.f32 %v218, %v260
        %v277 = vmul.f32 %v219, %v260
        %279 = vset.pattern.permute.xlu0 0
        %280 = vperm.xlu0 %279, %v208
        %v281 = vpop.permute.xlu0 %280
        %284 = vset.pattern.permute.xlu0 0
        %285 = vperm.xlu0 %284, %v209
        %v286 = vpop.permute.xlu0 %285
        %289 = vset.pattern.permute.xlu0 0
        %290 = vperm.xlu0 %289, %v210
        %v291 = vpop.permute.xlu0 %290
        %294 = vset.pattern.permute.xlu0 0
        %295 = vperm.xlu0 %294, %v211
        %v296 = vpop.permute.xlu0 %295
        %299 = vset.pattern.permute.xlu0 0
        %300 = vperm.xlu0 %299, %v212
        %v301 = vpop.permute.xlu0 %300
        %304 = vset.pattern.permute.xlu0 0
        %305 = vperm.xlu0 %304, %v213
        %v306 = vpop.permute.xlu0 %305
        %309 = vset.pattern.permute.xlu0 0
        %310 = vperm.xlu0 %309, %v214
        %v311 = vpop.permute.xlu0 %310
        %314 = vset.pattern.permute.xlu0 0
        %315 = vperm.xlu0 %314, %v215
        %v316 = vpop.permute.xlu0 %315
        %v318 = vadd.f32 %v262, %v281
        %v319 = vadd.f32 %v263, %v281
        %v320 = vadd.f32 %v264, %v286
        %v321 = vadd.f32 %v265, %v286
        %v322 = vadd.f32 %v266, %v291
        %v323 = vadd.f32 %v267, %v291
        %v324 = vadd.f32 %v268, %v296
        %v325 = vadd.f32 %v269, %v296
        %v326 = vadd.f32 %v270, %v301
        %v327 = vadd.f32 %v271, %v301
        %v328 = vadd.f32 %v272, %v306
        %v329 = vadd.f32 %v273, %v306
        %v330 = vadd.f32 %v274, %v311
        %v331 = vadd.f32 %v275, %v311
        %v332 = vadd.f32 %v276, %v316
        %v333 = vadd.f32 %v277, %v316
        %v334 = vand.u32 2147483647, %v318
        %vm335 = vcmp.le.f32.partialorder %v334, 0.7853982
        %vm336 = vcmp.lt.s32.totalorder %v318, 0
        %v337 = vand.u32 %v318, 2139095040
        %v338 = vshrl.u32 %v337, 23
        %v339 = vsub.s32 %v338, 127
        %v340 = vand.u32 2147483647, %v318
        %v341 = vand.u32 %v340, 8388607
        %v342 = vor.u32 %v341, 8388608
        %v343 = vsub.s32 0, %v342
        %v344 = vadd.s32 %v339, 1
        %vm345 = vcmp.gt.s32.totalorder %v344, 0
        %v346 = vsel %vm345, %v344, 0
        %v347 = vshrl.u32 %v346, 5
        %v348 = vand.u32 %v346, 31
        %v349 = vsub.s32 32, %v348
        %v350 = vshrl.u32 683565275, %v349
        %v351 = vshll.u32 683565275, %v348
        %v352 = vshrl.u32 2475754826, %v349
        %v353 = vor.u32 %v351, %v352
        %v354 = vshll.u32 2475754826, %v348
        %v355 = vshrl.u32 2131351028, %v349
        %v356 = vor.u32 %v354, %v355
        %v357 = vshll.u32 2131351028, %v348
        %v358 = vshrl.u32 2102212464, %v349
        %v359 = vor.u32 %v357, %v358
        %v360 = vshll.u32 2102212464, %v348
        %v361 = vshrl.u32 920167782, %v349
        %v362 = vor.u32 %v360, %v361
        %v363 = vshll.u32 920167782, %v348
        %v364 = vshrl.u32 1326507024, %v349
        %v365 = vor.u32 %v363, %v364
        %vm366 = vcmp.lt.s32.totalorder %v347, 1
        %vm367 = vcmp.lt.s32.totalorder %v347, 2
        %vm368 = vcmp.lt.s32.totalorder %v347, 3
        %vm369 = vcmp.lt.s32.totalorder %v347, 4
        %v370 = vsel %vm366, %v350, %v353
        %v371 = vsel %vm369, %v359, 2102212464
        %v372 = vsel %vm368, %v356, %v371
        %v373 = vsel %vm367, %v370, %v372
        %v374 = vsel %vm366, %v353, %v356
        %v375 = vsel %vm369, %v362, 920167782
        %v376 = vsel %vm368, %v359, %v375
        %v377 = vsel %vm367, %v374, %v376
        %v378 = vsel %vm366, %v356, %v359
        %v379 = vsel %vm369, %v365, 1326507024
        %v380 = vsel %vm368, %v362, %v379
        %v381 = vsel %vm367, %v378, %v380
        %v382 = vshll.u32 %v342, 8
        %v383 = vand.u32 %v382, 65535
        %v384 = vshrl.u32 %v382, 16
        %v385 = vand.u32 %v381, 65535
        %v386 = vshrl.u32 %v381, 16
        %v387 = vmul.u32 %v383, %v385
        %v388 = vmul.u32 %v383, %v386
        %v389 = vmul.u32 %v384, %v385
        %v390 = vmul.u32 %v384, %v386
        %v391 = vshll.u32 %v388, 16
        %v392 = vshrl.u32 %v388, 16
        %v393 = vshll.u32 %v389, 16
        %v394 = vshrl.u32 %v389, 16
        %vm395 = vc.u32 %v387, %v391
        %v396 = vsel %vm395, 1, 0
        %v397 = vadd.s32 %v387, %v391
        %v398 = vadd.s32 %v390, %v396
        %vm399 = vc.u32 %v397, %v393
        %v400 = vsel %vm399, 1, 0
        %v401 = vadd.s32 %v397, %v393
        %v402 = vadd.s32 %v398, %v400
        %v403 = vadd.s32 %v402, %v392
        %v404 = vadd.s32 %v403, %v394
        %v405 = vand.u32 %v382, 65535
        %v406 = vshrl.u32 %v382, 16
        %v407 = vand.u32 %v377, 65535
        %v408 = vshrl.u32 %v377, 16
        %v409 = vmul.u32 %v405, %v407
        %v410 = vmul.u32 %v405, %v408
        %v411 = vmul.u32 %v406, %v407
        %v412 = vmul.u32 %v406, %v408
        %v413 = vshll.u32 %v410, 16
        %v414 = vshrl.u32 %v410, 16
        %v415 = vshll.u32 %v411, 16
        %v416 = vshrl.u32 %v411, 16
        %vm417 = vc.u32 %v409, %v413
        %v418 = vsel %vm417, 1, 0
        %v419 = vadd.s32 %v409, %v413
        %v420 = vadd.s32 %v412, %v418
        %vm421 = vc.u32 %v419, %v415
        %v422 = vsel %vm421, 1, 0
        %v423 = vadd.s32 %v419, %v415
        %v424 = vadd.s32 %v420, %v422
        %v425 = vadd.s32 %v424, %v414
        %v426 = vadd.s32 %v425, %v416
        %v427 = vmul.u32 %v382, %v373
        %v428 = vadd.s32 %v404, %v423
        %vm429 = vc.u32 %v404, %v423
        %v430 = vadd.s32 %v426, 1
        %v431 = vsel %vm429, %v430, %v426
        %v432 = vadd.s32 %v427, %v431
        %v433 = vadd.s32 %v432, 536870912
        %v434 = vshrl.u32 %v433, 30
        %v435 = vshll.u32 %v434, 30
        %v436 = vsub.s32 %v432, %v435
        %vm437 = vcmp.lt.s32.totalorder %v436, 0
        %v438 = vsub.s32 0, %v436
        %v439 = vsel %vm437, %v438, %v436
        %v440 = vclz %v439
        %v441 = vsub.s32 %v440, 2
        %vm442 = vcmp.gt.s32.totalorder 0, %v441
        %v443 = vsel %vm442, 0, %v441
        %v444 = vsub.s32 32, %v443
        %v445 = vshll.u32 %v436, %v443
        %v446 = vshrl.u32 %v428, %v444
        %v447 = vor.u32 %v445, %v446
        %v448 = vsub.s32 4294967266, %v443
        %v449 = vadd.s32 %v448, 127
        %v450 = vshll.u32 %v449, 23
        %v451 = vor.u32 4788187, %v450
        %v452 = vand.u32 2147483647, %v451
        %v454 = vcvt.s32.f32 %v447
        %v455 = vmul.f32 %v454, %v452
        %v456 = vxor.u32 %v455, 2147483648
        %v457 = vsel %vm336, %v456, %v455
        %v458 = vsub.s32 4, %v434
        %v459 = vsel %vm336, %v458, %v434
        %v460 = vsel %vm335, %v318, %v457
        %v461 = vsel %vm335, 0, %v459
        %v462 = vmul.f32 %v460, %v460
        %v463 = vmul.f32 %v462, -0.001358992
        %v464 = vadd.f32 %v463, 0.041655596
        %v465 = vmul.f32 %v462, %v464
        %v466 = vadd.f32 %v465, -0.4999988
        %v467 = vmul.f32 %v462, %v466
        %v468 = vadd.f32 1.0, %v467
        %v469 = vmul.f32 %v460, %v460
        %v470 = vmul.f32 %v469, -0.00019511016
        %v471 = vadd.f32 %v470, 0.008332121
        %v472 = vmul.f32 %v469, %v471
        %v473 = vadd.f32 %v472, -0.16666654
        %v474 = vmul.f32 %v469, %v473
        %v475 = vadd.f32 %v474, 1.0
        %v476 = vmul.f32 %v475, %v460
        %vm477 = vweird.f32 %v318
        %v478 = vadd.s32 %v461, 3
        %v479 = vand.u32 %v478, 3
        %vm480 = vcmp.lt.s32.totalorder %v479, 2
        %vm481 = vcmp.eq.s32.totalorder %v479, 0
        %v482 = vxor.u32 %v476, 2147483648
        %v483 = vsel %vm481, %v468, %v482
        %vm484 = vcmp.eq.s32.totalorder %v479, 2
        %v485 = vxor.u32 %v468, 2147483648
        %v486 = vsel %vm484, %v485, %v476
        %v487 = vsel %vm480, %v483, %v486
        %v488 = vsel %vm477, nan, %v487
        %v489 = vand.u32 2147483647, %v319
        %vm490 = vcmp.le.f32.partialorder %v489, 0.7853982
        %vm491 = vcmp.lt.s32.totalorder %v319, 0
        %v492 = vand.u32 %v319, 2139095040
        %v493 = vshrl.u32 %v492, 23
        %v494 = vsub.s32 %v493, 127
        %v495 = vand.u32 2147483647, %v319
        %v496 = vand.u32 %v495, 8388607
        %v497 = vor.u32 %v496, 8388608
        %v498 = vsub.s32 0, %v497
        %v499 = vadd.s32 %v494, 1
        %vm500 = vcmp.gt.s32.totalorder %v499, 0
        %v501 = vsel %vm500, %v499, 0
        %v502 = vshrl.u32 %v501, 5
        %v503 = vand.u32 %v501, 31
        %v504 = vsub.s32 32, %v503
        %v505 = vshrl.u32 683565275, %v504
        %v506 = vshll.u32 683565275, %v503
        %v507 = vshrl.u32 2475754826, %v504
        %v508 = vor.u32 %v506, %v507
        %v509 = vshll.u32 2475754826, %v503
        %v510 = vshrl.u32 2131351028, %v504
        %v511 = vor.u32 %v509, %v510
        %v512 = vshll.u32 2131351028, %v503
        %v513 = vshrl.u32 2102212464, %v504
        %v514 = vor.u32 %v512, %v513
        %v515 = vshll.u32 2102212464, %v503
        %v516 = vshrl.u32 920167782, %v504
        %v517 = vor.u32 %v515, %v516
        %v518 = vshll.u32 920167782, %v503
        %v519 = vshrl.u32 1326507024, %v504
        %v520 = vor.u32 %v518, %v519
        %vm521 = vcmp.lt.s32.totalorder %v502, 1
        %vm522 = vcmp.lt.s32.totalorder %v502, 2
        %vm523 = vcmp.lt.s32.totalorder %v502, 3
        %vm524 = vcmp.lt.s32.totalorder %v502, 4
        %v525 = vsel %vm521, %v505, %v508
        %v526 = vsel %vm524, %v514, 2102212464
        %v527 = vsel %vm523, %v511, %v526
        %v528 = vsel %vm522, %v525, %v527
        %v529 = vsel %vm521, %v508, %v511
        %v530 = vsel %vm524, %v517, 920167782
        %v531 = vsel %vm523, %v514, %v530
        %v532 = vsel %vm522, %v529, %v531
        %v533 = vsel %vm521, %v511, %v514
        %v534 = vsel %vm524, %v520, 1326507024
        %v535 = vsel %vm523, %v517, %v534
        %v536 = vsel %vm522, %v533, %v535
        %v537 = vshll.u32 %v497, 8
        %v538 = vand.u32 %v537, 65535
        %v539 = vshrl.u32 %v537, 16
        %v540 = vand.u32 %v536, 65535
        %v541 = vshrl.u32 %v536, 16
        %v542 = vmul.u32 %v538, %v540
        %v543 = vmul.u32 %v538, %v541
        %v544 = vmul.u32 %v539, %v540
        %v545 = vmul.u32 %v539, %v541
        %v546 = vshll.u32 %v543, 16
        %v547 = vshrl.u32 %v543, 16
        %v548 = vshll.u32 %v544, 16
        %v549 = vshrl.u32 %v544, 16
        %vm550 = vc.u32 %v542, %v546
        %v551 = vsel %vm550, 1, 0
        %v552 = vadd.s32 %v542, %v546
        %v553 = vadd.s32 %v545, %v551
        %vm554 = vc.u32 %v552, %v548
        %v555 = vsel %vm554, 1, 0
        %v556 = vadd.s32 %v552, %v548
        %v557 = vadd.s32 %v553, %v555
        %v558 = vadd.s32 %v557, %v547
        %v559 = vadd.s32 %v558, %v549
        %v560 = vand.u32 %v537, 65535
        %v561 = vshrl.u32 %v537, 16
        %v562 = vand.u32 %v532, 65535
        %v563 = vshrl.u32 %v532, 16
        %v564 = vmul.u32 %v560, %v562
        %v565 = vmul.u32 %v560, %v563
        %v566 = vmul.u32 %v561, %v562
        %v567 = vmul.u32 %v561, %v563
        %v568 = vshll.u32 %v565, 16
        %v569 = vshrl.u32 %v565, 16
        %v570 = vshll.u32 %v566, 16
        %v571 = vshrl.u32 %v566, 16
        %vm572 = vc.u32 %v564, %v568
        %v573 = vsel %vm572, 1, 0
        %v574 = vadd.s32 %v564, %v568
        %v575 = vadd.s32 %v567, %v573
        %vm576 = vc.u32 %v574, %v570
        %v577 = vsel %vm576, 1, 0
        %v578 = vadd.s32 %v574, %v570
        %v579 = vadd.s32 %v575, %v577
        %v580 = vadd.s32 %v579, %v569
        %v581 = vadd.s32 %v580, %v571
        %v582 = vmul.u32 %v537, %v528
        %v583 = vadd.s32 %v559, %v578
        %vm584 = vc.u32 %v559, %v578
        %v585 = vadd.s32 %v581, 1
        %v586 = vsel %vm584, %v585, %v581
        %v587 = vadd.s32 %v582, %v586
        %v588 = vadd.s32 %v587, 536870912
        %v589 = vshrl.u32 %v588, 30
        %v590 = vshll.u32 %v589, 30
        %v591 = vsub.s32 %v587, %v590
        %vm592 = vcmp.lt.s32.totalorder %v591, 0
        %v593 = vsub.s32 0, %v591
        %v594 = vsel %vm592, %v593, %v591
        %v595 = vclz %v594
        %v596 = vsub.s32 %v595, 2
        %vm597 = vcmp.gt.s32.totalorder 0, %v596
        %v598 = vsel %vm597, 0, %v596
        %v599 = vsub.s32 32, %v598
        %v600 = vshll.u32 %v591, %v598
        %v601 = vshrl.u32 %v583, %v599
        %v602 = vor.u32 %v600, %v601
        %v603 = vsub.s32 4294967266, %v598
        %v604 = vadd.s32 %v603, 127
        %v605 = vshll.u32 %v604, 23
        %v606 = vor.u32 4788187, %v605
        %v607 = vand.u32 2147483647, %v606
        %v609 = vcvt.s32.f32 %v602
        %v610 = vmul.f32 %v609, %v607
        %v611 = vxor.u32 %v610, 2147483648
        %v612 = vsel %vm491, %v611, %v610
        %v613 = vsub.s32 4, %v589
        %v614 = vsel %vm491, %v613, %v589
        %v615 = vsel %vm490, %v319, %v612
        %v616 = vsel %vm490, 0, %v614
        %v617 = vmul.f32 %v615, %v615
        %v618 = vmul.f32 %v617, -0.001358992
        %v619 = vadd.f32 %v618, 0.041655596
        %v620 = vmul.f32 %v617, %v619
        %v621 = vadd.f32 %v620, -0.4999988
        %v622 = vmul.f32 %v617, %v621
        %v623 = vadd.f32 1.0, %v622
        %v624 = vmul.f32 %v615, %v615
        %v625 = vmul.f32 %v624, -0.00019511016
        %v626 = vadd.f32 %v625, 0.008332121
        %v627 = vmul.f32 %v624, %v626
        %v628 = vadd.f32 %v627, -0.16666654
        %v629 = vmul.f32 %v624, %v628
        %v630 = vadd.f32 %v629, 1.0
        %v631 = vmul.f32 %v630, %v615
        %vm632 = vweird.f32 %v319
        %v633 = vadd.s32 %v616, 3
        %v634 = vand.u32 %v633, 3
        %vm635 = vcmp.lt.s32.totalorder %v634, 2
        %vm636 = vcmp.eq.s32.totalorder %v634, 0
        %v637 = vxor.u32 %v631, 2147483648
        %v638 = vsel %vm636, %v623, %v637
        %vm639 = vcmp.eq.s32.totalorder %v634, 2
        %v640 = vxor.u32 %v623, 2147483648
        %v641 = vsel %vm639, %v640, %v631
        %v642 = vsel %vm635, %v638, %v641
        %v643 = vsel %vm632, nan, %v642
        %v644 = vand.u32 2147483647, %v320
        %vm645 = vcmp.le.f32.partialorder %v644, 0.7853982
        %vm646 = vcmp.lt.s32.totalorder %v320, 0
        %v647 = vand.u32 %v320, 2139095040
        %v648 = vshrl.u32 %v647, 23
        %v649 = vsub.s32 %v648, 127
        %v650 = vand.u32 2147483647, %v320
        %v651 = vand.u32 %v650, 8388607
        %v652 = vor.u32 %v651, 8388608
        %v653 = vsub.s32 0, %v652
        %v654 = vadd.s32 %v649, 1
        %vm655 = vcmp.gt.s32.totalorder %v654, 0
        %v656 = vsel %vm655, %v654, 0
        %v657 = vshrl.u32 %v656, 5
        %v658 = vand.u32 %v656, 31
        %v659 = vsub.s32 32, %v658
        %v660 = vshrl.u32 683565275, %v659
        %v661 = vshll.u32 683565275, %v658
        %v662 = vshrl.u32 2475754826, %v659
        %v663 = vor.u32 %v661, %v662
        %v664 = vshll.u32 2475754826, %v658
        %v665 = vshrl.u32 2131351028, %v659
        %v666 = vor.u32 %v664, %v665
        %v667 = vshll.u32 2131351028, %v658
        %v668 = vshrl.u32 2102212464, %v659
        %v669 = vor.u32 %v667, %v668
        %v670 = vshll.u32 2102212464, %v658
        %v671 = vshrl.u32 920167782, %v659
        %v672 = vor.u32 %v670, %v671
        %v673 = vshll.u32 920167782, %v658
        %v674 = vshrl.u32 1326507024, %v659
        %v675 = vor.u32 %v673, %v674
        %vm676 = vcmp.lt.s32.totalorder %v657, 1
        %vm677 = vcmp.lt.s32.totalorder %v657, 2
        %vm678 = vcmp.lt.s32.totalorder %v657, 3
        %vm679 = vcmp.lt.s32.totalorder %v657, 4
        %v680 = vsel %vm676, %v660, %v663
        %v681 = vsel %vm679, %v669, 2102212464
        %v682 = vsel %vm678, %v666, %v681
        %v683 = vsel %vm677, %v680, %v682
        %v684 = vsel %vm676, %v663, %v666
        %v685 = vsel %vm679, %v672, 920167782
        %v686 = vsel %vm678, %v669, %v685
        %v687 = vsel %vm677, %v684, %v686
        %v688 = vsel %vm676, %v666, %v669
        %v689 = vsel %vm679, %v675, 1326507024
        %v690 = vsel %vm678, %v672, %v689
        %v691 = vsel %vm677, %v688, %v690
        %v692 = vshll.u32 %v652, 8
        %v693 = vand.u32 %v692, 65535
        %v694 = vshrl.u32 %v692, 16
        %v695 = vand.u32 %v691, 65535
        %v696 = vshrl.u32 %v691, 16
        %v697 = vmul.u32 %v693, %v695
        %v698 = vmul.u32 %v693, %v696
        %v699 = vmul.u32 %v694, %v695
        %v700 = vmul.u32 %v694, %v696
        %v701 = vshll.u32 %v698, 16
        %v702 = vshrl.u32 %v698, 16
        %v703 = vshll.u32 %v699, 16
        %v704 = vshrl.u32 %v699, 16
        %vm705 = vc.u32 %v697, %v701
        %v706 = vsel %vm705, 1, 0
        %v707 = vadd.s32 %v697, %v701
        %v708 = vadd.s32 %v700, %v706
        %vm709 = vc.u32 %v707, %v703
        %v710 = vsel %vm709, 1, 0
        %v711 = vadd.s32 %v707, %v703
        %v712 = vadd.s32 %v708, %v710
        %v713 = vadd.s32 %v712, %v702
        %v714 = vadd.s32 %v713, %v704
        %v715 = vand.u32 %v692, 65535
        %v716 = vshrl.u32 %v692, 16
        %v717 = vand.u32 %v687, 65535
        %v718 = vshrl.u32 %v687, 16
        %v719 = vmul.u32 %v715, %v717
        %v720 = vmul.u32 %v715, %v718
        %v721 = vmul.u32 %v716, %v717
        %v722 = vmul.u32 %v716, %v718
        %v723 = vshll.u32 %v720, 16
        %v724 = vshrl.u32 %v720, 16
        %v725 = vshll.u32 %v721, 16
        %v726 = vshrl.u32 %v721, 16
        %vm727 = vc.u32 %v719, %v723
        %v728 = vsel %vm727, 1, 0
        %v729 = vadd.s32 %v719, %v723
        %v730 = vadd.s32 %v722, %v728
        %vm731 = vc.u32 %v729, %v725
        %v732 = vsel %vm731, 1, 0
        %v733 = vadd.s32 %v729, %v725
        %v734 = vadd.s32 %v730, %v732
        %v735 = vadd.s32 %v734, %v724
        %v736 = vadd.s32 %v735, %v726
        %v737 = vmul.u32 %v692, %v683
        %v738 = vadd.s32 %v714, %v733
        %vm739 = vc.u32 %v714, %v733
        %v740 = vadd.s32 %v736, 1
        %v741 = vsel %vm739, %v740, %v736
        %v742 = vadd.s32 %v737, %v741
        %v743 = vadd.s32 %v742, 536870912
        %v744 = vshrl.u32 %v743, 30
        %v745 = vshll.u32 %v744, 30
        %v746 = vsub.s32 %v742, %v745
        %vm747 = vcmp.lt.s32.totalorder %v746, 0
        %v748 = vsub.s32 0, %v746
        %v749 = vsel %vm747, %v748, %v746
        %v750 = vclz %v749
        %v751 = vsub.s32 %v750, 2
        %vm752 = vcmp.gt.s32.totalorder 0, %v751
        %v753 = vsel %vm752, 0, %v751
        %v754 = vsub.s32 32, %v753
        %v755 = vshll.u32 %v746, %v753
        %v756 = vshrl.u32 %v738, %v754
        %v757 = vor.u32 %v755, %v756
        %v758 = vsub.s32 4294967266, %v753
        %v759 = vadd.s32 %v758, 127
        %v760 = vshll.u32 %v759, 23
        %v761 = vor.u32 4788187, %v760
        %v762 = vand.u32 2147483647, %v761
        %v764 = vcvt.s32.f32 %v757
        %v765 = vmul.f32 %v764, %v762
        %v766 = vxor.u32 %v765, 2147483648
        %v767 = vsel %vm646, %v766, %v765
        %v768 = vsub.s32 4, %v744
        %v769 = vsel %vm646, %v768, %v744
        %v770 = vsel %vm645, %v320, %v767
        %v771 = vsel %vm645, 0, %v769
        %v772 = vmul.f32 %v770, %v770
        %v773 = vmul.f32 %v772, -0.001358992
        %v774 = vadd.f32 %v773, 0.041655596
        %v775 = vmul.f32 %v772, %v774
        %v776 = vadd.f32 %v775, -0.4999988
        %v777 = vmul.f32 %v772, %v776
        %v778 = vadd.f32 1.0, %v777
        %v779 = vmul.f32 %v770, %v770
        %v780 = vmul.f32 %v779, -0.00019511016
        %v781 = vadd.f32 %v780, 0.008332121
        %v782 = vmul.f32 %v779, %v781
        %v783 = vadd.f32 %v782, -0.16666654
        %v784 = vmul.f32 %v779, %v783
        %v785 = vadd.f32 %v784, 1.0
        %v786 = vmul.f32 %v785, %v770
        %vm787 = vweird.f32 %v320
        %v788 = vadd.s32 %v771, 3
        %v789 = vand.u32 %v788, 3
        %vm790 = vcmp.lt.s32.totalorder %v789, 2
        %vm791 = vcmp.eq.s32.totalorder %v789, 0
        %v792 = vxor.u32 %v786, 2147483648
        %v793 = vsel %vm791, %v778, %v792
        %vm794 = vcmp.eq.s32.totalorder %v789, 2
        %v795 = vxor.u32 %v778, 2147483648
        %v796 = vsel %vm794, %v795, %v786
        %v797 = vsel %vm790, %v793, %v796
        %v798 = vsel %vm787, nan, %v797
        %v799 = vand.u32 2147483647, %v321
        %vm800 = vcmp.le.f32.partialorder %v799, 0.7853982
        %vm801 = vcmp.lt.s32.totalorder %v321, 0
        %v802 = vand.u32 %v321, 2139095040
        %v803 = vshrl.u32 %v802, 23
        %v804 = vsub.s32 %v803, 127
        %v805 = vand.u32 2147483647, %v321
        %v806 = vand.u32 %v805, 8388607
        %v807 = vor.u32 %v806, 8388608
        %v808 = vsub.s32 0, %v807
        %v809 = vadd.s32 %v804, 1
        %vm810 = vcmp.gt.s32.totalorder %v809, 0
        %v811 = vsel %vm810, %v809, 0
        %v812 = vshrl.u32 %v811, 5
        %v813 = vand.u32 %v811, 31
        %v814 = vsub.s32 32, %v813
        %v815 = vshrl.u32 683565275, %v814
        %v816 = vshll.u32 683565275, %v813
        %v817 = vshrl.u32 2475754826, %v814
        %v818 = vor.u32 %v816, %v817
        %v819 = vshll.u32 2475754826, %v813
        %v820 = vshrl.u32 2131351028, %v814
        %v821 = vor.u32 %v819, %v820
        %v822 = vshll.u32 2131351028, %v813
        %v823 = vshrl.u32 2102212464, %v814
        %v824 = vor.u32 %v822, %v823
        %v825 = vshll.u32 2102212464, %v813
        %v826 = vshrl.u32 920167782, %v814
        %v827 = vor.u32 %v825, %v826
        %v828 = vshll.u32 920167782, %v813
        %v829 = vshrl.u32 1326507024, %v814
        %v830 = vor.u32 %v828, %v829
        %vm831 = vcmp.lt.s32.totalorder %v812, 1
        %vm832 = vcmp.lt.s32.totalorder %v812, 2
        %vm833 = vcmp.lt.s32.totalorder %v812, 3
        %vm834 = vcmp.lt.s32.totalorder %v812, 4
        %v835 = vsel %vm831, %v815, %v818
        %v836 = vsel %vm834, %v824, 2102212464
        %v837 = vsel %vm833, %v821, %v836
        %v838 = vsel %vm832, %v835, %v837
        %v839 = vsel %vm831, %v818, %v821
        %v840 = vsel %vm834, %v827, 920167782
        %v841 = vsel %vm833, %v824, %v840
        %v842 = vsel %vm832, %v839, %v841
        %v843 = vsel %vm831, %v821, %v824
        %v844 = vsel %vm834, %v830, 1326507024
        %v845 = vsel %vm833, %v827, %v844
        %v846 = vsel %vm832, %v843, %v845
        %v847 = vshll.u32 %v807, 8
        %v848 = vand.u32 %v847, 65535
        %v849 = vshrl.u32 %v847, 16
        %v850 = vand.u32 %v846, 65535
        %v851 = vshrl.u32 %v846, 16
        %v852 = vmul.u32 %v848, %v850
        %v853 = vmul.u32 %v848, %v851
        %v854 = vmul.u32 %v849, %v850
        %v855 = vmul.u32 %v849, %v851
        %v856 = vshll.u32 %v853, 16
        %v857 = vshrl.u32 %v853, 16
        %v858 = vshll.u32 %v854, 16
        %v859 = vshrl.u32 %v854, 16
        %vm860 = vc.u32 %v852, %v856
        %v861 = vsel %vm860, 1, 0
        %v862 = vadd.s32 %v852, %v856
        %v863 = vadd.s32 %v855, %v861
        %vm864 = vc.u32 %v862, %v858
        %v865 = vsel %vm864, 1, 0
        %v866 = vadd.s32 %v862, %v858
        %v867 = vadd.s32 %v863, %v865
        %v868 = vadd.s32 %v867, %v857
        %v869 = vadd.s32 %v868, %v859
        %v870 = vand.u32 %v847, 65535
        %v871 = vshrl.u32 %v847, 16
        %v872 = vand.u32 %v842, 65535
        %v873 = vshrl.u32 %v842, 16
        %v874 = vmul.u32 %v870, %v872
        %v875 = vmul.u32 %v870, %v873
        %v876 = vmul.u32 %v871, %v872
        %v877 = vmul.u32 %v871, %v873
        %v878 = vshll.u32 %v875, 16
        %v879 = vshrl.u32 %v875, 16
        %v880 = vshll.u32 %v876, 16
        %v881 = vshrl.u32 %v876, 16
        %vm882 = vc.u32 %v874, %v878
        %v883 = vsel %vm882, 1, 0
        %v884 = vadd.s32 %v874, %v878
        %v885 = vadd.s32 %v877, %v883
        %vm886 = vc.u32 %v884, %v880
        %v887 = vsel %vm886, 1, 0
        %v888 = vadd.s32 %v884, %v880
        %v889 = vadd.s32 %v885, %v887
        %v890 = vadd.s32 %v889, %v879
        %v891 = vadd.s32 %v890, %v881
        %v892 = vmul.u32 %v847, %v838
        %v893 = vadd.s32 %v869, %v888
        %vm894 = vc.u32 %v869, %v888
        %v895 = vadd.s32 %v891, 1
        %v896 = vsel %vm894, %v895, %v891
        %v897 = vadd.s32 %v892, %v896
        %v898 = vadd.s32 %v897, 536870912
        %v899 = vshrl.u32 %v898, 30
        %v900 = vshll.u32 %v899, 30
        %v901 = vsub.s32 %v897, %v900
        %vm902 = vcmp.lt.s32.totalorder %v901, 0
        %v903 = vsub.s32 0, %v901
        %v904 = vsel %vm902, %v903, %v901
        %v905 = vclz %v904
        %v906 = vsub.s32 %v905, 2
        %vm907 = vcmp.gt.s32.totalorder 0, %v906
        %v908 = vsel %vm907, 0, %v906
        %v909 = vsub.s32 32, %v908
        %v910 = vshll.u32 %v901, %v908
        %v911 = vshrl.u32 %v893, %v909
        %v912 = vor.u32 %v910, %v911
        %v913 = vsub.s32 4294967266, %v908
        %v914 = vadd.s32 %v913, 127
        %v915 = vshll.u32 %v914, 23
        %v916 = vor.u32 4788187, %v915
        %v917 = vand.u32 2147483647, %v916
        %v919 = vcvt.s32.f32 %v912
        %v920 = vmul.f32 %v919, %v917
        %v921 = vxor.u32 %v920, 2147483648
        %v922 = vsel %vm801, %v921, %v920
        %v923 = vsub.s32 4, %v899
        %v924 = vsel %vm801, %v923, %v899
        %v925 = vsel %vm800, %v321, %v922
        %v926 = vsel %vm800, 0, %v924
        %v927 = vmul.f32 %v925, %v925
        %v928 = vmul.f32 %v927, -0.001358992
        %v929 = vadd.f32 %v928, 0.041655596
        %v930 = vmul.f32 %v927, %v929
        %v931 = vadd.f32 %v930, -0.4999988
        %v932 = vmul.f32 %v927, %v931
        %v933 = vadd.f32 1.0, %v932
        %v934 = vmul.f32 %v925, %v925
        %v935 = vmul.f32 %v934, -0.00019511016
        %v936 = vadd.f32 %v935, 0.008332121
        %v937 = vmul.f32 %v934, %v936
        %v938 = vadd.f32 %v937, -0.16666654
        %v939 = vmul.f32 %v934, %v938
        %v940 = vadd.f32 %v939, 1.0
        %v941 = vmul.f32 %v940, %v925
        %vm942 = vweird.f32 %v321
        %v943 = vadd.s32 %v926, 3
        %v944 = vand.u32 %v943, 3
        %vm945 = vcmp.lt.s32.totalorder %v944, 2
        %vm946 = vcmp.eq.s32.totalorder %v944, 0
        %v947 = vxor.u32 %v941, 2147483648
        %v948 = vsel %vm946, %v933, %v947
        %vm949 = vcmp.eq.s32.totalorder %v944, 2
        %v950 = vxor.u32 %v933, 2147483648
        %v951 = vsel %vm949, %v950, %v941
        %v952 = vsel %vm945, %v948, %v951
        %v953 = vsel %vm942, nan, %v952
        %v954 = vand.u32 2147483647, %v322
        %vm955 = vcmp.le.f32.partialorder %v954, 0.7853982
        %vm956 = vcmp.lt.s32.totalorder %v322, 0
        %v957 = vand.u32 %v322, 2139095040
        %v958 = vshrl.u32 %v957, 23
        %v959 = vsub.s32 %v958, 127
        %v960 = vand.u32 2147483647, %v322
        %v961 = vand.u32 %v960, 8388607
        %v962 = vor.u32 %v961, 8388608
        %v963 = vsub.s32 0, %v962
        %v964 = vadd.s32 %v959, 1
        %vm965 = vcmp.gt.s32.totalorder %v964, 0
        %v966 = vsel %vm965, %v964, 0
        %v967 = vshrl.u32 %v966, 5
        %v968 = vand.u32 %v966, 31
        %v969 = vsub.s32 32, %v968
        %v970 = vshrl.u32 683565275, %v969
        %v971 = vshll.u32 683565275, %v968
        %v972 = vshrl.u32 2475754826, %v969
        %v973 = vor.u32 %v971, %v972
        %v974 = vshll.u32 2475754826, %v968
        %v975 = vshrl.u32 2131351028, %v969
        %v976 = vor.u32 %v974, %v975
        %v977 = vshll.u32 2131351028, %v968
        %v978 = vshrl.u32 2102212464, %v969
        %v979 = vor.u32 %v977, %v978
        %v980 = vshll.u32 2102212464, %v968
        %v981 = vshrl.u32 920167782, %v969
        %v982 = vor.u32 %v980, %v981
        %v983 = vshll.u32 920167782, %v968
        %v984 = vshrl.u32 1326507024, %v969
        %v985 = vor.u32 %v983, %v984
        %vm986 = vcmp.lt.s32.totalorder %v967, 1
        %vm987 = vcmp.lt.s32.totalorder %v967, 2
        %vm988 = vcmp.lt.s32.totalorder %v967, 3
        %vm989 = vcmp.lt.s32.totalorder %v967, 4
        %v990 = vsel %vm986, %v970, %v973
        %v991 = vsel %vm989, %v979, 2102212464
        %v992 = vsel %vm988, %v976, %v991
        %v993 = vsel %vm987, %v990, %v992
        %v994 = vsel %vm986, %v973, %v976
        %v995 = vsel %vm989, %v982, 920167782
        %v996 = vsel %vm988, %v979, %v995
        %v997 = vsel %vm987, %v994, %v996
        %v998 = vsel %vm986, %v976, %v979
        %v999 = vsel %vm989, %v985, 1326507024
        %v1000 = vsel %vm988, %v982, %v999
        %v1001 = vsel %vm987, %v998, %v1000
        %v1002 = vshll.u32 %v962, 8
        %v1003 = vand.u32 %v1002, 65535
        %v1004 = vshrl.u32 %v1002, 16
        %v1005 = vand.u32 %v1001, 65535
        %v1006 = vshrl.u32 %v1001, 16
        %v1007 = vmul.u32 %v1003, %v1005
        %v1008 = vmul.u32 %v1003, %v1006
        %v1009 = vmul.u32 %v1004, %v1005
        %v1010 = vmul.u32 %v1004, %v1006
        %v1011 = vshll.u32 %v1008, 16
        %v1012 = vshrl.u32 %v1008, 16
        %v1013 = vshll.u32 %v1009, 16
        %v1014 = vshrl.u32 %v1009, 16
        %vm1015 = vc.u32 %v1007, %v1011
        %v1016 = vsel %vm1015, 1, 0
        %v1017 = vadd.s32 %v1007, %v1011
        %v1018 = vadd.s32 %v1010, %v1016
        %vm1019 = vc.u32 %v1017, %v1013
        %v1020 = vsel %vm1019, 1, 0
        %v1021 = vadd.s32 %v1017, %v1013
        %v1022 = vadd.s32 %v1018, %v1020
        %v1023 = vadd.s32 %v1022, %v1012
        %v1024 = vadd.s32 %v1023, %v1014
        %v1025 = vand.u32 %v1002, 65535
        %v1026 = vshrl.u32 %v1002, 16
        %v1027 = vand.u32 %v997, 65535
        %v1028 = vshrl.u32 %v997, 16
        %v1029 = vmul.u32 %v1025, %v1027
        %v1030 = vmul.u32 %v1025, %v1028
        %v1031 = vmul.u32 %v1026, %v1027
        %v1032 = vmul.u32 %v1026, %v1028
        %v1033 = vshll.u32 %v1030, 16
        %v1034 = vshrl.u32 %v1030, 16
        %v1035 = vshll.u32 %v1031, 16
        %v1036 = vshrl.u32 %v1031, 16
        %vm1037 = vc.u32 %v1029, %v1033
        %v1038 = vsel %vm1037, 1, 0
        %v1039 = vadd.s32 %v1029, %v1033
        %v1040 = vadd.s32 %v1032, %v1038
        %vm1041 = vc.u32 %v1039, %v1035
        %v1042 = vsel %vm1041, 1, 0
        %v1043 = vadd.s32 %v1039, %v1035
        %v1044 = vadd.s32 %v1040, %v1042
        %v1045 = vadd.s32 %v1044, %v1034
        %v1046 = vadd.s32 %v1045, %v1036
        %v1047 = vmul.u32 %v1002, %v993
        %v1048 = vadd.s32 %v1024, %v1043
        %vm1049 = vc.u32 %v1024, %v1043
        %v1050 = vadd.s32 %v1046, 1
        %v1051 = vsel %vm1049, %v1050, %v1046
        %v1052 = vadd.s32 %v1047, %v1051
        %v1053 = vadd.s32 %v1052, 536870912
        %v1054 = vshrl.u32 %v1053, 30
        %v1055 = vshll.u32 %v1054, 30
        %v1056 = vsub.s32 %v1052, %v1055
        %vm1057 = vcmp.lt.s32.totalorder %v1056, 0
        %v1058 = vsub.s32 0, %v1056
        %v1059 = vsel %vm1057, %v1058, %v1056
        %v1060 = vclz %v1059
        %v1061 = vsub.s32 %v1060, 2
        %vm1062 = vcmp.gt.s32.totalorder 0, %v1061
        %v1063 = vsel %vm1062, 0, %v1061
        %v1064 = vsub.s32 32, %v1063
        %v1065 = vshll.u32 %v1056, %v1063
        %v1066 = vshrl.u32 %v1048, %v1064
        %v1067 = vor.u32 %v1065, %v1066
        %v1068 = vsub.s32 4294967266, %v1063
        %v1069 = vadd.s32 %v1068, 127
        %v1070 = vshll.u32 %v1069, 23
        %v1071 = vor.u32 4788187, %v1070
        %v1072 = vand.u32 2147483647, %v1071
        %v1074 = vcvt.s32.f32 %v1067
        %v1075 = vmul.f32 %v1074, %v1072
        %v1076 = vxor.u32 %v1075, 2147483648
        %v1077 = vsel %vm956, %v1076, %v1075
        %v1078 = vsub.s32 4, %v1054
        %v1079 = vsel %vm956, %v1078, %v1054
        %v1080 = vsel %vm955, %v322, %v1077
        %v1081 = vsel %vm955, 0, %v1079
        %v1082 = vmul.f32 %v1080, %v1080
        %v1083 = vmul.f32 %v1082, -0.001358992
        %v1084 = vadd.f32 %v1083, 0.041655596
        %v1085 = vmul.f32 %v1082, %v1084
        %v1086 = vadd.f32 %v1085, -0.4999988
        %v1087 = vmul.f32 %v1082, %v1086
        %v1088 = vadd.f32 1.0, %v1087
        %v1089 = vmul.f32 %v1080, %v1080
        %v1090 = vmul.f32 %v1089, -0.00019511016
        %v1091 = vadd.f32 %v1090, 0.008332121
        %v1092 = vmul.f32 %v1089, %v1091
        %v1093 = vadd.f32 %v1092, -0.16666654
        %v1094 = vmul.f32 %v1089, %v1093
        %v1095 = vadd.f32 %v1094, 1.0
        %v1096 = vmul.f32 %v1095, %v1080
        %vm1097 = vweird.f32 %v322
        %v1098 = vadd.s32 %v1081, 3
        %v1099 = vand.u32 %v1098, 3
        %vm1100 = vcmp.lt.s32.totalorder %v1099, 2
        %vm1101 = vcmp.eq.s32.totalorder %v1099, 0
        %v1102 = vxor.u32 %v1096, 2147483648
        %v1103 = vsel %vm1101, %v1088, %v1102
        %vm1104 = vcmp.eq.s32.totalorder %v1099, 2
        %v1105 = vxor.u32 %v1088, 2147483648
        %v1106 = vsel %vm1104, %v1105, %v1096
        %v1107 = vsel %vm1100, %v1103, %v1106
        %v1108 = vsel %vm1097, nan, %v1107
        %v1109 = vand.u32 2147483647, %v323
        %vm1110 = vcmp.le.f32.partialorder %v1109, 0.7853982
        %vm1111 = vcmp.lt.s32.totalorder %v323, 0
        %v1112 = vand.u32 %v323, 2139095040
        %v1113 = vshrl.u32 %v1112, 23
        %v1114 = vsub.s32 %v1113, 127
        %v1115 = vand.u32 2147483647, %v323
        %v1116 = vand.u32 %v1115, 8388607
        %v1117 = vor.u32 %v1116, 8388608
        %v1118 = vsub.s32 0, %v1117
        %v1119 = vadd.s32 %v1114, 1
        %vm1120 = vcmp.gt.s32.totalorder %v1119, 0
        %v1121 = vsel %vm1120, %v1119, 0
        %v1122 = vshrl.u32 %v1121, 5
        %v1123 = vand.u32 %v1121, 31
        %v1124 = vsub.s32 32, %v1123
        %v1125 = vshrl.u32 683565275, %v1124
        %v1126 = vshll.u32 683565275, %v1123
        %v1127 = vshrl.u32 2475754826, %v1124
        %v1128 = vor.u32 %v1126, %v1127
        %v1129 = vshll.u32 2475754826, %v1123
        %v1130 = vshrl.u32 2131351028, %v1124
        %v1131 = vor.u32 %v1129, %v1130
        %v1132 = vshll.u32 2131351028, %v1123
        %v1133 = vshrl.u32 2102212464, %v1124
        %v1134 = vor.u32 %v1132, %v1133
        %v1135 = vshll.u32 2102212464, %v1123
        %v1136 = vshrl.u32 920167782, %v1124
        %v1137 = vor.u32 %v1135, %v1136
        %v1138 = vshll.u32 920167782, %v1123
        %v1139 = vshrl.u32 1326507024, %v1124
        %v1140 = vor.u32 %v1138, %v1139
        %vm1141 = vcmp.lt.s32.totalorder %v1122, 1
        %vm1142 = vcmp.lt.s32.totalorder %v1122, 2
        %vm1143 = vcmp.lt.s32.totalorder %v1122, 3
        %vm1144 = vcmp.lt.s32.totalorder %v1122, 4
        %v1145 = vsel %vm1141, %v1125, %v1128
        %v1146 = vsel %vm1144, %v1134, 2102212464
        %v1147 = vsel %vm1143, %v1131, %v1146
        %v1148 = vsel %vm1142, %v1145, %v1147
        %v1149 = vsel %vm1141, %v1128, %v1131
        %v1150 = vsel %vm1144, %v1137, 920167782
        %v1151 = vsel %vm1143, %v1134, %v1150
        %v1152 = vsel %vm1142, %v1149, %v1151
        %v1153 = vsel %vm1141, %v1131, %v1134
        %v1154 = vsel %vm1144, %v1140, 1326507024
        %v1155 = vsel %vm1143, %v1137, %v1154
        %v1156 = vsel %vm1142, %v1153, %v1155
        %v1157 = vshll.u32 %v1117, 8
        %v1158 = vand.u32 %v1157, 65535
        %v1159 = vshrl.u32 %v1157, 16
        %v1160 = vand.u32 %v1156, 65535
        %v1161 = vshrl.u32 %v1156, 16
        %v1162 = vmul.u32 %v1158, %v1160
        %v1163 = vmul.u32 %v1158, %v1161
        %v1164 = vmul.u32 %v1159, %v1160
        %v1165 = vmul.u32 %v1159, %v1161
        %v1166 = vshll.u32 %v1163, 16
        %v1167 = vshrl.u32 %v1163, 16
        %v1168 = vshll.u32 %v1164, 16
        %v1169 = vshrl.u32 %v1164, 16
        %vm1170 = vc.u32 %v1162, %v1166
        %v1171 = vsel %vm1170, 1, 0
        %v1172 = vadd.s32 %v1162, %v1166
        %v1173 = vadd.s32 %v1165, %v1171
        %vm1174 = vc.u32 %v1172, %v1168
        %v1175 = vsel %vm1174, 1, 0
        %v1176 = vadd.s32 %v1172, %v1168
        %v1177 = vadd.s32 %v1173, %v1175
        %v1178 = vadd.s32 %v1177, %v1167
        %v1179 = vadd.s32 %v1178, %v1169
        %v1180 = vand.u32 %v1157, 65535
        %v1181 = vshrl.u32 %v1157, 16
        %v1182 = vand.u32 %v1152, 65535
        %v1183 = vshrl.u32 %v1152, 16
        %v1184 = vmul.u32 %v1180, %v1182
        %v1185 = vmul.u32 %v1180, %v1183
        %v1186 = vmul.u32 %v1181, %v1182
        %v1187 = vmul.u32 %v1181, %v1183
        %v1188 = vshll.u32 %v1185, 16
        %v1189 = vshrl.u32 %v1185, 16
        %v1190 = vshll.u32 %v1186, 16
        %v1191 = vshrl.u32 %v1186, 16
        %vm1192 = vc.u32 %v1184, %v1188
        %v1193 = vsel %vm1192, 1, 0
        %v1194 = vadd.s32 %v1184, %v1188
        %v1195 = vadd.s32 %v1187, %v1193
        %vm1196 = vc.u32 %v1194, %v1190
        %v1197 = vsel %vm1196, 1, 0
        %v1198 = vadd.s32 %v1194, %v1190
        %v1199 = vadd.s32 %v1195, %v1197
        %v1200 = vadd.s32 %v1199, %v1189
        %v1201 = vadd.s32 %v1200, %v1191
        %v1202 = vmul.u32 %v1157, %v1148
        %v1203 = vadd.s32 %v1179, %v1198
        %vm1204 = vc.u32 %v1179, %v1198
        %v1205 = vadd.s32 %v1201, 1
        %v1206 = vsel %vm1204, %v1205, %v1201
        %v1207 = vadd.s32 %v1202, %v1206
        %v1208 = vadd.s32 %v1207, 536870912
        %v1209 = vshrl.u32 %v1208, 30
        %v1210 = vshll.u32 %v1209, 30
        %v1211 = vsub.s32 %v1207, %v1210
        %vm1212 = vcmp.lt.s32.totalorder %v1211, 0
        %v1213 = vsub.s32 0, %v1211
        %v1214 = vsel %vm1212, %v1213, %v1211
        %v1215 = vclz %v1214
        %v1216 = vsub.s32 %v1215, 2
        %vm1217 = vcmp.gt.s32.totalorder 0, %v1216
        %v1218 = vsel %vm1217, 0, %v1216
        %v1219 = vsub.s32 32, %v1218
        %v1220 = vshll.u32 %v1211, %v1218
        %v1221 = vshrl.u32 %v1203, %v1219
        %v1222 = vor.u32 %v1220, %v1221
        %v1223 = vsub.s32 4294967266, %v1218
        %v1224 = vadd.s32 %v1223, 127
        %v1225 = vshll.u32 %v1224, 23
        %v1226 = vor.u32 4788187, %v1225
        %v1227 = vand.u32 2147483647, %v1226
        %v1229 = vcvt.s32.f32 %v1222
        %v1230 = vmul.f32 %v1229, %v1227
        %v1231 = vxor.u32 %v1230, 2147483648
        %v1232 = vsel %vm1111, %v1231, %v1230
        %v1233 = vsub.s32 4, %v1209
        %v1234 = vsel %vm1111, %v1233, %v1209
        %v1235 = vsel %vm1110, %v323, %v1232
        %v1236 = vsel %vm1110, 0, %v1234
        %v1237 = vmul.f32 %v1235, %v1235
        %v1238 = vmul.f32 %v1237, -0.001358992
        %v1239 = vadd.f32 %v1238, 0.041655596
        %v1240 = vmul.f32 %v1237, %v1239
        %v1241 = vadd.f32 %v1240, -0.4999988
        %v1242 = vmul.f32 %v1237, %v1241
        %v1243 = vadd.f32 1.0, %v1242
        %v1244 = vmul.f32 %v1235, %v1235
        %v1245 = vmul.f32 %v1244, -0.00019511016
        %v1246 = vadd.f32 %v1245, 0.008332121
        %v1247 = vmul.f32 %v1244, %v1246
        %v1248 = vadd.f32 %v1247, -0.16666654
        %v1249 = vmul.f32 %v1244, %v1248
        %v1250 = vadd.f32 %v1249, 1.0
        %v1251 = vmul.f32 %v1250, %v1235
        %vm1252 = vweird.f32 %v323
        %v1253 = vadd.s32 %v1236, 3
        %v1254 = vand.u32 %v1253, 3
        %vm1255 = vcmp.lt.s32.totalorder %v1254, 2
        %vm1256 = vcmp.eq.s32.totalorder %v1254, 0
        %v1257 = vxor.u32 %v1251, 2147483648
        %v1258 = vsel %vm1256, %v1243, %v1257
        %vm1259 = vcmp.eq.s32.totalorder %v1254, 2
        %v1260 = vxor.u32 %v1243, 2147483648
        %v1261 = vsel %vm1259, %v1260, %v1251
        %v1262 = vsel %vm1255, %v1258, %v1261
        %v1263 = vsel %vm1252, nan, %v1262
        %v1264 = vand.u32 2147483647, %v324
        %vm1265 = vcmp.le.f32.partialorder %v1264, 0.7853982
        %vm1266 = vcmp.lt.s32.totalorder %v324, 0
        %v1267 = vand.u32 %v324, 2139095040
        %v1268 = vshrl.u32 %v1267, 23
        %v1269 = vsub.s32 %v1268, 127
        %v1270 = vand.u32 2147483647, %v324
        %v1271 = vand.u32 %v1270, 8388607
        %v1272 = vor.u32 %v1271, 8388608
        %v1273 = vsub.s32 0, %v1272
        %v1274 = vadd.s32 %v1269, 1
        %vm1275 = vcmp.gt.s32.totalorder %v1274, 0
        %v1276 = vsel %vm1275, %v1274, 0
        %v1277 = vshrl.u32 %v1276, 5
        %v1278 = vand.u32 %v1276, 31
        %v1279 = vsub.s32 32, %v1278
        %v1280 = vshrl.u32 683565275, %v1279
        %v1281 = vshll.u32 683565275, %v1278
        %v1282 = vshrl.u32 2475754826, %v1279
        %v1283 = vor.u32 %v1281, %v1282
        %v1284 = vshll.u32 2475754826, %v1278
        %v1285 = vshrl.u32 2131351028, %v1279
        %v1286 = vor.u32 %v1284, %v1285
        %v1287 = vshll.u32 2131351028, %v1278
        %v1288 = vshrl.u32 2102212464, %v1279
        %v1289 = vor.u32 %v1287, %v1288
        %v1290 = vshll.u32 2102212464, %v1278
        %v1291 = vshrl.u32 920167782, %v1279
        %v1292 = vor.u32 %v1290, %v1291
        %v1293 = vshll.u32 920167782, %v1278
        %v1294 = vshrl.u32 1326507024, %v1279
        %v1295 = vor.u32 %v1293, %v1294
        %vm1296 = vcmp.lt.s32.totalorder %v1277, 1
        %vm1297 = vcmp.lt.s32.totalorder %v1277, 2
        %vm1298 = vcmp.lt.s32.totalorder %v1277, 3
        %vm1299 = vcmp.lt.s32.totalorder %v1277, 4
        %v1300 = vsel %vm1296, %v1280, %v1283
        %v1301 = vsel %vm1299, %v1289, 2102212464
        %v1302 = vsel %vm1298, %v1286, %v1301
        %v1303 = vsel %vm1297, %v1300, %v1302
        %v1304 = vsel %vm1296, %v1283, %v1286
        %v1305 = vsel %vm1299, %v1292, 920167782
        %v1306 = vsel %vm1298, %v1289, %v1305
        %v1307 = vsel %vm1297, %v1304, %v1306
        %v1308 = vsel %vm1296, %v1286, %v1289
        %v1309 = vsel %vm1299, %v1295, 1326507024
        %v1310 = vsel %vm1298, %v1292, %v1309
        %v1311 = vsel %vm1297, %v1308, %v1310
        %v1312 = vshll.u32 %v1272, 8
        %v1313 = vand.u32 %v1312, 65535
        %v1314 = vshrl.u32 %v1312, 16
        %v1315 = vand.u32 %v1311, 65535
        %v1316 = vshrl.u32 %v1311, 16
        %v1317 = vmul.u32 %v1313, %v1315
        %v1318 = vmul.u32 %v1313, %v1316
        %v1319 = vmul.u32 %v1314, %v1315
        %v1320 = vmul.u32 %v1314, %v1316
        %v1321 = vshll.u32 %v1318, 16
        %v1322 = vshrl.u32 %v1318, 16
        %v1323 = vshll.u32 %v1319, 16
        %v1324 = vshrl.u32 %v1319, 16
        %vm1325 = vc.u32 %v1317, %v1321
        %v1326 = vsel %vm1325, 1, 0
        %v1327 = vadd.s32 %v1317, %v1321
        %v1328 = vadd.s32 %v1320, %v1326
        %vm1329 = vc.u32 %v1327, %v1323
        %v1330 = vsel %vm1329, 1, 0
        %v1331 = vadd.s32 %v1327, %v1323
        %v1332 = vadd.s32 %v1328, %v1330
        %v1333 = vadd.s32 %v1332, %v1322
        %v1334 = vadd.s32 %v1333, %v1324
        %v1335 = vand.u32 %v1312, 65535
        %v1336 = vshrl.u32 %v1312, 16
        %v1337 = vand.u32 %v1307, 65535
        %v1338 = vshrl.u32 %v1307, 16
        %v1339 = vmul.u32 %v1335, %v1337
        %v1340 = vmul.u32 %v1335, %v1338
        %v1341 = vmul.u32 %v1336, %v1337
        %v1342 = vmul.u32 %v1336, %v1338
        %v1343 = vshll.u32 %v1340, 16
        %v1344 = vshrl.u32 %v1340, 16
        %v1345 = vshll.u32 %v1341, 16
        %v1346 = vshrl.u32 %v1341, 16
        %vm1347 = vc.u32 %v1339, %v1343
        %v1348 = vsel %vm1347, 1, 0
        %v1349 = vadd.s32 %v1339, %v1343
        %v1350 = vadd.s32 %v1342, %v1348
        %vm1351 = vc.u32 %v1349, %v1345
        %v1352 = vsel %vm1351, 1, 0
        %v1353 = vadd.s32 %v1349, %v1345
        %v1354 = vadd.s32 %v1350, %v1352
        %v1355 = vadd.s32 %v1354, %v1344
        %v1356 = vadd.s32 %v1355, %v1346
        %v1357 = vmul.u32 %v1312, %v1303
        %v1358 = vadd.s32 %v1334, %v1353
        %vm1359 = vc.u32 %v1334, %v1353
        %v1360 = vadd.s32 %v1356, 1
        %v1361 = vsel %vm1359, %v1360, %v1356
        %v1362 = vadd.s32 %v1357, %v1361
        %v1363 = vadd.s32 %v1362, 536870912
        %v1364 = vshrl.u32 %v1363, 30
        %v1365 = vshll.u32 %v1364, 30
        %v1366 = vsub.s32 %v1362, %v1365
        %vm1367 = vcmp.lt.s32.totalorder %v1366, 0
        %v1368 = vsub.s32 0, %v1366
        %v1369 = vsel %vm1367, %v1368, %v1366
        %v1370 = vclz %v1369
        %v1371 = vsub.s32 %v1370, 2
        %vm1372 = vcmp.gt.s32.totalorder 0, %v1371
        %v1373 = vsel %vm1372, 0, %v1371
        %v1374 = vsub.s32 32, %v1373
        %v1375 = vshll.u32 %v1366, %v1373
        %v1376 = vshrl.u32 %v1358, %v1374
        %v1377 = vor.u32 %v1375, %v1376
        %v1378 = vsub.s32 4294967266, %v1373
        %v1379 = vadd.s32 %v1378, 127
        %v1380 = vshll.u32 %v1379, 23
        %v1381 = vor.u32 4788187, %v1380
        %v1382 = vand.u32 2147483647, %v1381
        %v1384 = vcvt.s32.f32 %v1377
        %v1385 = vmul.f32 %v1384, %v1382
        %v1386 = vxor.u32 %v1385, 2147483648
        %v1387 = vsel %vm1266, %v1386, %v1385
        %v1388 = vsub.s32 4, %v1364
        %v1389 = vsel %vm1266, %v1388, %v1364
        %v1390 = vsel %vm1265, %v324, %v1387
        %v1391 = vsel %vm1265, 0, %v1389
        %v1392 = vmul.f32 %v1390, %v1390
        %v1393 = vmul.f32 %v1392, -0.001358992
        %v1394 = vadd.f32 %v1393, 0.041655596
        %v1395 = vmul.f32 %v1392, %v1394
        %v1396 = vadd.f32 %v1395, -0.4999988
        %v1397 = vmul.f32 %v1392, %v1396
        %v1398 = vadd.f32 1.0, %v1397
        %v1399 = vmul.f32 %v1390, %v1390
        %v1400 = vmul.f32 %v1399, -0.00019511016
        %v1401 = vadd.f32 %v1400, 0.008332121
        %v1402 = vmul.f32 %v1399, %v1401
        %v1403 = vadd.f32 %v1402, -0.16666654
        %v1404 = vmul.f32 %v1399, %v1403
        %v1405 = vadd.f32 %v1404, 1.0
        %v1406 = vmul.f32 %v1405, %v1390
        %vm1407 = vweird.f32 %v324
        %v1408 = vadd.s32 %v1391, 3
        %v1409 = vand.u32 %v1408, 3
        %vm1410 = vcmp.lt.s32.totalorder %v1409, 2
        %vm1411 = vcmp.eq.s32.totalorder %v1409, 0
        %v1412 = vxor.u32 %v1406, 2147483648
        %v1413 = vsel %vm1411, %v1398, %v1412
        %vm1414 = vcmp.eq.s32.totalorder %v1409, 2
        %v1415 = vxor.u32 %v1398, 2147483648
        %v1416 = vsel %vm1414, %v1415, %v1406
        %v1417 = vsel %vm1410, %v1413, %v1416
        %v1418 = vsel %vm1407, nan, %v1417
        %v1419 = vand.u32 2147483647, %v325
        %vm1420 = vcmp.le.f32.partialorder %v1419, 0.7853982
        %vm1421 = vcmp.lt.s32.totalorder %v325, 0
        %v1422 = vand.u32 %v325, 2139095040
        %v1423 = vshrl.u32 %v1422, 23
        %v1424 = vsub.s32 %v1423, 127
        %v1425 = vand.u32 2147483647, %v325
        %v1426 = vand.u32 %v1425, 8388607
        %v1427 = vor.u32 %v1426, 8388608
        %v1428 = vsub.s32 0, %v1427
        %v1429 = vadd.s32 %v1424, 1
        %vm1430 = vcmp.gt.s32.totalorder %v1429, 0
        %v1431 = vsel %vm1430, %v1429, 0
        %v1432 = vshrl.u32 %v1431, 5
        %v1433 = vand.u32 %v1431, 31
        %v1434 = vsub.s32 32, %v1433
        %v1435 = vshrl.u32 683565275, %v1434
        %v1436 = vshll.u32 683565275, %v1433
        %v1437 = vshrl.u32 2475754826, %v1434
        %v1438 = vor.u32 %v1436, %v1437
        %v1439 = vshll.u32 2475754826, %v1433
        %v1440 = vshrl.u32 2131351028, %v1434
        %v1441 = vor.u32 %v1439, %v1440
        %v1442 = vshll.u32 2131351028, %v1433
        %v1443 = vshrl.u32 2102212464, %v1434
        %v1444 = vor.u32 %v1442, %v1443
        %v1445 = vshll.u32 2102212464, %v1433
        %v1446 = vshrl.u32 920167782, %v1434
        %v1447 = vor.u32 %v1445, %v1446
        %v1448 = vshll.u32 920167782, %v1433
        %v1449 = vshrl.u32 1326507024, %v1434
        %v1450 = vor.u32 %v1448, %v1449
        %vm1451 = vcmp.lt.s32.totalorder %v1432, 1
        %vm1452 = vcmp.lt.s32.totalorder %v1432, 2
        %vm1453 = vcmp.lt.s32.totalorder %v1432, 3
        %vm1454 = vcmp.lt.s32.totalorder %v1432, 4
        %v1455 = vsel %vm1451, %v1435, %v1438
        %v1456 = vsel %vm1454, %v1444, 2102212464
        %v1457 = vsel %vm1453, %v1441, %v1456
        %v1458 = vsel %vm1452, %v1455, %v1457
        %v1459 = vsel %vm1451, %v1438, %v1441
        %v1460 = vsel %vm1454, %v1447, 920167782
        %v1461 = vsel %vm1453, %v1444, %v1460
        %v1462 = vsel %vm1452, %v1459, %v1461
        %v1463 = vsel %vm1451, %v1441, %v1444
        %v1464 = vsel %vm1454, %v1450, 1326507024
        %v1465 = vsel %vm1453, %v1447, %v1464
        %v1466 = vsel %vm1452, %v1463, %v1465
        %v1467 = vshll.u32 %v1427, 8
        %v1468 = vand.u32 %v1467, 65535
        %v1469 = vshrl.u32 %v1467, 16
        %v1470 = vand.u32 %v1466, 65535
        %v1471 = vshrl.u32 %v1466, 16
        %v1472 = vmul.u32 %v1468, %v1470
        %v1473 = vmul.u32 %v1468, %v1471
        %v1474 = vmul.u32 %v1469, %v1470
        %v1475 = vmul.u32 %v1469, %v1471
        %v1476 = vshll.u32 %v1473, 16
        %v1477 = vshrl.u32 %v1473, 16
        %v1478 = vshll.u32 %v1474, 16
        %v1479 = vshrl.u32 %v1474, 16
        %vm1480 = vc.u32 %v1472, %v1476
        %v1481 = vsel %vm1480, 1, 0
        %v1482 = vadd.s32 %v1472, %v1476
        %v1483 = vadd.s32 %v1475, %v1481
        %vm1484 = vc.u32 %v1482, %v1478
        %v1485 = vsel %vm1484, 1, 0
        %v1486 = vadd.s32 %v1482, %v1478
        %v1487 = vadd.s32 %v1483, %v1485
        %v1488 = vadd.s32 %v1487, %v1477
        %v1489 = vadd.s32 %v1488, %v1479
        %v1490 = vand.u32 %v1467, 65535
        %v1491 = vshrl.u32 %v1467, 16
        %v1492 = vand.u32 %v1462, 65535
        %v1493 = vshrl.u32 %v1462, 16
        %v1494 = vmul.u32 %v1490, %v1492
        %v1495 = vmul.u32 %v1490, %v1493
        %v1496 = vmul.u32 %v1491, %v1492
        %v1497 = vmul.u32 %v1491, %v1493
        %v1498 = vshll.u32 %v1495, 16
        %v1499 = vshrl.u32 %v1495, 16
        %v1500 = vshll.u32 %v1496, 16
        %v1501 = vshrl.u32 %v1496, 16
        %vm1502 = vc.u32 %v1494, %v1498
        %v1503 = vsel %vm1502, 1, 0
        %v1504 = vadd.s32 %v1494, %v1498
        %v1505 = vadd.s32 %v1497, %v1503
        %vm1506 = vc.u32 %v1504, %v1500
        %v1507 = vsel %vm1506, 1, 0
        %v1508 = vadd.s32 %v1504, %v1500
        %v1509 = vadd.s32 %v1505, %v1507
        %v1510 = vadd.s32 %v1509, %v1499
        %v1511 = vadd.s32 %v1510, %v1501
        %v1512 = vmul.u32 %v1467, %v1458
        %v1513 = vadd.s32 %v1489, %v1508
        %vm1514 = vc.u32 %v1489, %v1508
        %v1515 = vadd.s32 %v1511, 1
        %v1516 = vsel %vm1514, %v1515, %v1511
        %v1517 = vadd.s32 %v1512, %v1516
        %v1518 = vadd.s32 %v1517, 536870912
        %v1519 = vshrl.u32 %v1518, 30
        %v1520 = vshll.u32 %v1519, 30
        %v1521 = vsub.s32 %v1517, %v1520
        %vm1522 = vcmp.lt.s32.totalorder %v1521, 0
        %v1523 = vsub.s32 0, %v1521
        %v1524 = vsel %vm1522, %v1523, %v1521
        %v1525 = vclz %v1524
        %v1526 = vsub.s32 %v1525, 2
        %vm1527 = vcmp.gt.s32.totalorder 0, %v1526
        %v1528 = vsel %vm1527, 0, %v1526
        %v1529 = vsub.s32 32, %v1528
        %v1530 = vshll.u32 %v1521, %v1528
        %v1531 = vshrl.u32 %v1513, %v1529
        %v1532 = vor.u32 %v1530, %v1531
        %v1533 = vsub.s32 4294967266, %v1528
        %v1534 = vadd.s32 %v1533, 127
        %v1535 = vshll.u32 %v1534, 23
        %v1536 = vor.u32 4788187, %v1535
        %v1537 = vand.u32 2147483647, %v1536
        %v1539 = vcvt.s32.f32 %v1532
        %v1540 = vmul.f32 %v1539, %v1537
        %v1541 = vxor.u32 %v1540, 2147483648
        %v1542 = vsel %vm1421, %v1541, %v1540
        %v1543 = vsub.s32 4, %v1519
        %v1544 = vsel %vm1421, %v1543, %v1519
        %v1545 = vsel %vm1420, %v325, %v1542
        %v1546 = vsel %vm1420, 0, %v1544
        %v1547 = vmul.f32 %v1545, %v1545
        %v1548 = vmul.f32 %v1547, -0.001358992
        %v1549 = vadd.f32 %v1548, 0.041655596
        %v1550 = vmul.f32 %v1547, %v1549
        %v1551 = vadd.f32 %v1550, -0.4999988
        %v1552 = vmul.f32 %v1547, %v1551
        %v1553 = vadd.f32 1.0, %v1552
        %v1554 = vmul.f32 %v1545, %v1545
        %v1555 = vmul.f32 %v1554, -0.00019511016
        %v1556 = vadd.f32 %v1555, 0.008332121
        %v1557 = vmul.f32 %v1554, %v1556
        %v1558 = vadd.f32 %v1557, -0.16666654
        %v1559 = vmul.f32 %v1554, %v1558
        %v1560 = vadd.f32 %v1559, 1.0
        %v1561 = vmul.f32 %v1560, %v1545
        %vm1562 = vweird.f32 %v325
        %v1563 = vadd.s32 %v1546, 3
        %v1564 = vand.u32 %v1563, 3
        %vm1565 = vcmp.lt.s32.totalorder %v1564, 2
        %vm1566 = vcmp.eq.s32.totalorder %v1564, 0
        %v1567 = vxor.u32 %v1561, 2147483648
        %v1568 = vsel %vm1566, %v1553, %v1567
        %vm1569 = vcmp.eq.s32.totalorder %v1564, 2
        %v1570 = vxor.u32 %v1553, 2147483648
        %v1571 = vsel %vm1569, %v1570, %v1561
        %v1572 = vsel %vm1565, %v1568, %v1571
        %v1573 = vsel %vm1562, nan, %v1572
        %v1574 = vand.u32 2147483647, %v326
        %vm1575 = vcmp.le.f32.partialorder %v1574, 0.7853982
        %vm1576 = vcmp.lt.s32.totalorder %v326, 0
        %v1577 = vand.u32 %v326, 2139095040
        %v1578 = vshrl.u32 %v1577, 23
        %v1579 = vsub.s32 %v1578, 127
        %v1580 = vand.u32 2147483647, %v326
        %v1581 = vand.u32 %v1580, 8388607
        %v1582 = vor.u32 %v1581, 8388608
        %v1583 = vsub.s32 0, %v1582
        %v1584 = vadd.s32 %v1579, 1
        %vm1585 = vcmp.gt.s32.totalorder %v1584, 0
        %v1586 = vsel %vm1585, %v1584, 0
        %v1587 = vshrl.u32 %v1586, 5
        %v1588 = vand.u32 %v1586, 31
        %v1589 = vsub.s32 32, %v1588
        %v1590 = vshrl.u32 683565275, %v1589
        %v1591 = vshll.u32 683565275, %v1588
        %v1592 = vshrl.u32 2475754826, %v1589
        %v1593 = vor.u32 %v1591, %v1592
        %v1594 = vshll.u32 2475754826, %v1588
        %v1595 = vshrl.u32 2131351028, %v1589
        %v1596 = vor.u32 %v1594, %v1595
        %v1597 = vshll.u32 2131351028, %v1588
        %v1598 = vshrl.u32 2102212464, %v1589
        %v1599 = vor.u32 %v1597, %v1598
        %v1600 = vshll.u32 2102212464, %v1588
        %v1601 = vshrl.u32 920167782, %v1589
        %v1602 = vor.u32 %v1600, %v1601
        %v1603 = vshll.u32 920167782, %v1588
        %v1604 = vshrl.u32 1326507024, %v1589
        %v1605 = vor.u32 %v1603, %v1604
        %vm1606 = vcmp.lt.s32.totalorder %v1587, 1
        %vm1607 = vcmp.lt.s32.totalorder %v1587, 2
        %vm1608 = vcmp.lt.s32.totalorder %v1587, 3
        %vm1609 = vcmp.lt.s32.totalorder %v1587, 4
        %v1610 = vsel %vm1606, %v1590, %v1593
        %v1611 = vsel %vm1609, %v1599, 2102212464
        %v1612 = vsel %vm1608, %v1596, %v1611
        %v1613 = vsel %vm1607, %v1610, %v1612
        %v1614 = vsel %vm1606, %v1593, %v1596
        %v1615 = vsel %vm1609, %v1602, 920167782
        %v1616 = vsel %vm1608, %v1599, %v1615
        %v1617 = vsel %vm1607, %v1614, %v1616
        %v1618 = vsel %vm1606, %v1596, %v1599
        %v1619 = vsel %vm1609, %v1605, 1326507024
        %v1620 = vsel %vm1608, %v1602, %v1619
        %v1621 = vsel %vm1607, %v1618, %v1620
        %v1622 = vshll.u32 %v1582, 8
        %v1623 = vand.u32 %v1622, 65535
        %v1624 = vshrl.u32 %v1622, 16
        %v1625 = vand.u32 %v1621, 65535
        %v1626 = vshrl.u32 %v1621, 16
        %v1627 = vmul.u32 %v1623, %v1625
        %v1628 = vmul.u32 %v1623, %v1626
        %v1629 = vmul.u32 %v1624, %v1625
        %v1630 = vmul.u32 %v1624, %v1626
        %v1631 = vshll.u32 %v1628, 16
        %v1632 = vshrl.u32 %v1628, 16
        %v1633 = vshll.u32 %v1629, 16
        %v1634 = vshrl.u32 %v1629, 16
        %vm1635 = vc.u32 %v1627, %v1631
        %v1636 = vsel %vm1635, 1, 0
        %v1637 = vadd.s32 %v1627, %v1631
        %v1638 = vadd.s32 %v1630, %v1636
        %vm1639 = vc.u32 %v1637, %v1633
        %v1640 = vsel %vm1639, 1, 0
        %v1641 = vadd.s32 %v1637, %v1633
        %v1642 = vadd.s32 %v1638, %v1640
        %v1643 = vadd.s32 %v1642, %v1632
        %v1644 = vadd.s32 %v1643, %v1634
        %v1645 = vand.u32 %v1622, 65535
        %v1646 = vshrl.u32 %v1622, 16
        %v1647 = vand.u32 %v1617, 65535
        %v1648 = vshrl.u32 %v1617, 16
        %v1649 = vmul.u32 %v1645, %v1647
        %v1650 = vmul.u32 %v1645, %v1648
        %v1651 = vmul.u32 %v1646, %v1647
        %v1652 = vmul.u32 %v1646, %v1648
        %v1653 = vshll.u32 %v1650, 16
        %v1654 = vshrl.u32 %v1650, 16
        %v1655 = vshll.u32 %v1651, 16
        %v1656 = vshrl.u32 %v1651, 16
        %vm1657 = vc.u32 %v1649, %v1653
        %v1658 = vsel %vm1657, 1, 0
        %v1659 = vadd.s32 %v1649, %v1653
        %v1660 = vadd.s32 %v1652, %v1658
        %vm1661 = vc.u32 %v1659, %v1655
        %v1662 = vsel %vm1661, 1, 0
        %v1663 = vadd.s32 %v1659, %v1655
        %v1664 = vadd.s32 %v1660, %v1662
        %v1665 = vadd.s32 %v1664, %v1654
        %v1666 = vadd.s32 %v1665, %v1656
        %v1667 = vmul.u32 %v1622, %v1613
        %v1668 = vadd.s32 %v1644, %v1663
        %vm1669 = vc.u32 %v1644, %v1663
        %v1670 = vadd.s32 %v1666, 1
        %v1671 = vsel %vm1669, %v1670, %v1666
        %v1672 = vadd.s32 %v1667, %v1671
        %v1673 = vadd.s32 %v1672, 536870912
        %v1674 = vshrl.u32 %v1673, 30
        %v1675 = vshll.u32 %v1674, 30
        %v1676 = vsub.s32 %v1672, %v1675
        %vm1677 = vcmp.lt.s32.totalorder %v1676, 0
        %v1678 = vsub.s32 0, %v1676
        %v1679 = vsel %vm1677, %v1678, %v1676
        %v1680 = vclz %v1679
        %v1681 = vsub.s32 %v1680, 2
        %vm1682 = vcmp.gt.s32.totalorder 0, %v1681
        %v1683 = vsel %vm1682, 0, %v1681
        %v1684 = vsub.s32 32, %v1683
        %v1685 = vshll.u32 %v1676, %v1683
        %v1686 = vshrl.u32 %v1668, %v1684
        %v1687 = vor.u32 %v1685, %v1686
        %v1688 = vsub.s32 4294967266, %v1683
        %v1689 = vadd.s32 %v1688, 127
        %v1690 = vshll.u32 %v1689, 23
        %v1691 = vor.u32 4788187, %v1690
        %v1692 = vand.u32 2147483647, %v1691
        %v1694 = vcvt.s32.f32 %v1687
        %v1695 = vmul.f32 %v1694, %v1692
        %v1696 = vxor.u32 %v1695, 2147483648
        %v1697 = vsel %vm1576, %v1696, %v1695
        %v1698 = vsub.s32 4, %v1674
        %v1699 = vsel %vm1576, %v1698, %v1674
        %v1700 = vsel %vm1575, %v326, %v1697
        %v1701 = vsel %vm1575, 0, %v1699
        %v1702 = vmul.f32 %v1700, %v1700
        %v1703 = vmul.f32 %v1702, -0.001358992
        %v1704 = vadd.f32 %v1703, 0.041655596
        %v1705 = vmul.f32 %v1702, %v1704
        %v1706 = vadd.f32 %v1705, -0.4999988
        %v1707 = vmul.f32 %v1702, %v1706
        %v1708 = vadd.f32 1.0, %v1707
        %v1709 = vmul.f32 %v1700, %v1700
        %v1710 = vmul.f32 %v1709, -0.00019511016
        %v1711 = vadd.f32 %v1710, 0.008332121
        %v1712 = vmul.f32 %v1709, %v1711
        %v1713 = vadd.f32 %v1712, -0.16666654
        %v1714 = vmul.f32 %v1709, %v1713
        %v1715 = vadd.f32 %v1714, 1.0
        %v1716 = vmul.f32 %v1715, %v1700
        %vm1717 = vweird.f32 %v326
        %v1718 = vadd.s32 %v1701, 3
        %v1719 = vand.u32 %v1718, 3
        %vm1720 = vcmp.lt.s32.totalorder %v1719, 2
        %vm1721 = vcmp.eq.s32.totalorder %v1719, 0
        %v1722 = vxor.u32 %v1716, 2147483648
        %v1723 = vsel %vm1721, %v1708, %v1722
        %vm1724 = vcmp.eq.s32.totalorder %v1719, 2
        %v1725 = vxor.u32 %v1708, 2147483648
        %v1726 = vsel %vm1724, %v1725, %v1716
        %v1727 = vsel %vm1720, %v1723, %v1726
        %v1728 = vsel %vm1717, nan, %v1727
        %v1729 = vand.u32 2147483647, %v327
        %vm1730 = vcmp.le.f32.partialorder %v1729, 0.7853982
        %vm1731 = vcmp.lt.s32.totalorder %v327, 0
        %v1732 = vand.u32 %v327, 2139095040
        %v1733 = vshrl.u32 %v1732, 23
        %v1734 = vsub.s32 %v1733, 127
        %v1735 = vand.u32 2147483647, %v327
        %v1736 = vand.u32 %v1735, 8388607
        %v1737 = vor.u32 %v1736, 8388608
        %v1738 = vsub.s32 0, %v1737
        %v1739 = vadd.s32 %v1734, 1
        %vm1740 = vcmp.gt.s32.totalorder %v1739, 0
        %v1741 = vsel %vm1740, %v1739, 0
        %v1742 = vshrl.u32 %v1741, 5
        %v1743 = vand.u32 %v1741, 31
        %v1744 = vsub.s32 32, %v1743
        %v1745 = vshrl.u32 683565275, %v1744
        %v1746 = vshll.u32 683565275, %v1743
        %v1747 = vshrl.u32 2475754826, %v1744
        %v1748 = vor.u32 %v1746, %v1747
        %v1749 = vshll.u32 2475754826, %v1743
        %v1750 = vshrl.u32 2131351028, %v1744
        %v1751 = vor.u32 %v1749, %v1750
        %v1752 = vshll.u32 2131351028, %v1743
        %v1753 = vshrl.u32 2102212464, %v1744
        %v1754 = vor.u32 %v1752, %v1753
        %v1755 = vshll.u32 2102212464, %v1743
        %v1756 = vshrl.u32 920167782, %v1744
        %v1757 = vor.u32 %v1755, %v1756
        %v1758 = vshll.u32 920167782, %v1743
        %v1759 = vshrl.u32 1326507024, %v1744
        %v1760 = vor.u32 %v1758, %v1759
        %vm1761 = vcmp.lt.s32.totalorder %v1742, 1
        %vm1762 = vcmp.lt.s32.totalorder %v1742, 2
        %vm1763 = vcmp.lt.s32.totalorder %v1742, 3
        %vm1764 = vcmp.lt.s32.totalorder %v1742, 4
        %v1765 = vsel %vm1761, %v1745, %v1748
        %v1766 = vsel %vm1764, %v1754, 2102212464
        %v1767 = vsel %vm1763, %v1751, %v1766
        %v1768 = vsel %vm1762, %v1765, %v1767
        %v1769 = vsel %vm1761, %v1748, %v1751
        %v1770 = vsel %vm1764, %v1757, 920167782
        %v1771 = vsel %vm1763, %v1754, %v1770
        %v1772 = vsel %vm1762, %v1769, %v1771
        %v1773 = vsel %vm1761, %v1751, %v1754
        %v1774 = vsel %vm1764, %v1760, 1326507024
        %v1775 = vsel %vm1763, %v1757, %v1774
        %v1776 = vsel %vm1762, %v1773, %v1775
        %v1777 = vshll.u32 %v1737, 8
        %v1778 = vand.u32 %v1777, 65535
        %v1779 = vshrl.u32 %v1777, 16
        %v1780 = vand.u32 %v1776, 65535
        %v1781 = vshrl.u32 %v1776, 16
        %v1782 = vmul.u32 %v1778, %v1780
        %v1783 = vmul.u32 %v1778, %v1781
        %v1784 = vmul.u32 %v1779, %v1780
        %v1785 = vmul.u32 %v1779, %v1781
        %v1786 = vshll.u32 %v1783, 16
        %v1787 = vshrl.u32 %v1783, 16
        %v1788 = vshll.u32 %v1784, 16
        %v1789 = vshrl.u32 %v1784, 16
        %vm1790 = vc.u32 %v1782, %v1786
        %v1791 = vsel %vm1790, 1, 0
        %v1792 = vadd.s32 %v1782, %v1786
        %v1793 = vadd.s32 %v1785, %v1791
        %vm1794 = vc.u32 %v1792, %v1788
        %v1795 = vsel %vm1794, 1, 0
        %v1796 = vadd.s32 %v1792, %v1788
        %v1797 = vadd.s32 %v1793, %v1795
        %v1798 = vadd.s32 %v1797, %v1787
        %v1799 = vadd.s32 %v1798, %v1789
        %v1800 = vand.u32 %v1777, 65535
        %v1801 = vshrl.u32 %v1777, 16
        %v1802 = vand.u32 %v1772, 65535
        %v1803 = vshrl.u32 %v1772, 16
        %v1804 = vmul.u32 %v1800, %v1802
        %v1805 = vmul.u32 %v1800, %v1803
        %v1806 = vmul.u32 %v1801, %v1802
        %v1807 = vmul.u32 %v1801, %v1803
        %v1808 = vshll.u32 %v1805, 16
        %v1809 = vshrl.u32 %v1805, 16
        %v1810 = vshll.u32 %v1806, 16
        %v1811 = vshrl.u32 %v1806, 16
        %vm1812 = vc.u32 %v1804, %v1808
        %v1813 = vsel %vm1812, 1, 0
        %v1814 = vadd.s32 %v1804, %v1808
        %v1815 = vadd.s32 %v1807, %v1813
        %vm1816 = vc.u32 %v1814, %v1810
        %v1817 = vsel %vm1816, 1, 0
        %v1818 = vadd.s32 %v1814, %v1810
        %v1819 = vadd.s32 %v1815, %v1817
        %v1820 = vadd.s32 %v1819, %v1809
        %v1821 = vadd.s32 %v1820, %v1811
        %v1822 = vmul.u32 %v1777, %v1768
        %v1823 = vadd.s32 %v1799, %v1818
        %vm1824 = vc.u32 %v1799, %v1818
        %v1825 = vadd.s32 %v1821, 1
        %v1826 = vsel %vm1824, %v1825, %v1821
        %v1827 = vadd.s32 %v1822, %v1826
        %v1828 = vadd.s32 %v1827, 536870912
        %v1829 = vshrl.u32 %v1828, 30
        %v1830 = vshll.u32 %v1829, 30
        %v1831 = vsub.s32 %v1827, %v1830
        %vm1832 = vcmp.lt.s32.totalorder %v1831, 0
        %v1833 = vsub.s32 0, %v1831
        %v1834 = vsel %vm1832, %v1833, %v1831
        %v1835 = vclz %v1834
        %v1836 = vsub.s32 %v1835, 2
        %vm1837 = vcmp.gt.s32.totalorder 0, %v1836
        %v1838 = vsel %vm1837, 0, %v1836
        %v1839 = vsub.s32 32, %v1838
        %v1840 = vshll.u32 %v1831, %v1838
        %v1841 = vshrl.u32 %v1823, %v1839
        %v1842 = vor.u32 %v1840, %v1841
        %v1843 = vsub.s32 4294967266, %v1838
        %v1844 = vadd.s32 %v1843, 127
        %v1845 = vshll.u32 %v1844, 23
        %v1846 = vor.u32 4788187, %v1845
        %v1847 = vand.u32 2147483647, %v1846
        %v1849 = vcvt.s32.f32 %v1842
        %v1850 = vmul.f32 %v1849, %v1847
        %v1851 = vxor.u32 %v1850, 2147483648
        %v1852 = vsel %vm1731, %v1851, %v1850
        %v1853 = vsub.s32 4, %v1829
        %v1854 = vsel %vm1731, %v1853, %v1829
        %v1855 = vsel %vm1730, %v327, %v1852
        %v1856 = vsel %vm1730, 0, %v1854
        %v1857 = vmul.f32 %v1855, %v1855
        %v1858 = vmul.f32 %v1857, -0.001358992
        %v1859 = vadd.f32 %v1858, 0.041655596
        %v1860 = vmul.f32 %v1857, %v1859
        %v1861 = vadd.f32 %v1860, -0.4999988
        %v1862 = vmul.f32 %v1857, %v1861
        %v1863 = vadd.f32 1.0, %v1862
        %v1864 = vmul.f32 %v1855, %v1855
        %v1865 = vmul.f32 %v1864, -0.00019511016
        %v1866 = vadd.f32 %v1865, 0.008332121
        %v1867 = vmul.f32 %v1864, %v1866
        %v1868 = vadd.f32 %v1867, -0.16666654
        %v1869 = vmul.f32 %v1864, %v1868
        %v1870 = vadd.f32 %v1869, 1.0
        %v1871 = vmul.f32 %v1870, %v1855
        %vm1872 = vweird.f32 %v327
        %v1873 = vadd.s32 %v1856, 3
        %v1874 = vand.u32 %v1873, 3
        %vm1875 = vcmp.lt.s32.totalorder %v1874, 2
        %vm1876 = vcmp.eq.s32.totalorder %v1874, 0
        %v1877 = vxor.u32 %v1871, 2147483648
        %v1878 = vsel %vm1876, %v1863, %v1877
        %vm1879 = vcmp.eq.s32.totalorder %v1874, 2
        %v1880 = vxor.u32 %v1863, 2147483648
        %v1881 = vsel %vm1879, %v1880, %v1871
        %v1882 = vsel %vm1875, %v1878, %v1881
        %v1883 = vsel %vm1872, nan, %v1882
        %v1884 = vand.u32 2147483647, %v328
        %vm1885 = vcmp.le.f32.partialorder %v1884, 0.7853982
        %vm1886 = vcmp.lt.s32.totalorder %v328, 0
        %v1887 = vand.u32 %v328, 2139095040
        %v1888 = vshrl.u32 %v1887, 23
        %v1889 = vsub.s32 %v1888, 127
        %v1890 = vand.u32 2147483647, %v328
        %v1891 = vand.u32 %v1890, 8388607
        %v1892 = vor.u32 %v1891, 8388608
        %v1893 = vsub.s32 0, %v1892
        %v1894 = vadd.s32 %v1889, 1
        %vm1895 = vcmp.gt.s32.totalorder %v1894, 0
        %v1896 = vsel %vm1895, %v1894, 0
        %v1897 = vshrl.u32 %v1896, 5
        %v1898 = vand.u32 %v1896, 31
        %v1899 = vsub.s32 32, %v1898
        %v1900 = vshrl.u32 683565275, %v1899
        %v1901 = vshll.u32 683565275, %v1898
        %v1902 = vshrl.u32 2475754826, %v1899
        %v1903 = vor.u32 %v1901, %v1902
        %v1904 = vshll.u32 2475754826, %v1898
        %v1905 = vshrl.u32 2131351028, %v1899
        %v1906 = vor.u32 %v1904, %v1905
        %v1907 = vshll.u32 2131351028, %v1898
        %v1908 = vshrl.u32 2102212464, %v1899
        %v1909 = vor.u32 %v1907, %v1908
        %v1910 = vshll.u32 2102212464, %v1898
        %v1911 = vshrl.u32 920167782, %v1899
        %v1912 = vor.u32 %v1910, %v1911
        %v1913 = vshll.u32 920167782, %v1898
        %v1914 = vshrl.u32 1326507024, %v1899
        %v1915 = vor.u32 %v1913, %v1914
        %vm1916 = vcmp.lt.s32.totalorder %v1897, 1
        %vm1917 = vcmp.lt.s32.totalorder %v1897, 2
        %vm1918 = vcmp.lt.s32.totalorder %v1897, 3
        %vm1919 = vcmp.lt.s32.totalorder %v1897, 4
        %v1920 = vsel %vm1916, %v1900, %v1903
        %v1921 = vsel %vm1919, %v1909, 2102212464
        %v1922 = vsel %vm1918, %v1906, %v1921
        %v1923 = vsel %vm1917, %v1920, %v1922
        %v1924 = vsel %vm1916, %v1903, %v1906
        %v1925 = vsel %vm1919, %v1912, 920167782
        %v1926 = vsel %vm1918, %v1909, %v1925
        %v1927 = vsel %vm1917, %v1924, %v1926
        %v1928 = vsel %vm1916, %v1906, %v1909
        %v1929 = vsel %vm1919, %v1915, 1326507024
        %v1930 = vsel %vm1918, %v1912, %v1929
        %v1931 = vsel %vm1917, %v1928, %v1930
        %v1932 = vshll.u32 %v1892, 8
        %v1933 = vand.u32 %v1932, 65535
        %v1934 = vshrl.u32 %v1932, 16
        %v1935 = vand.u32 %v1931, 65535
        %v1936 = vshrl.u32 %v1931, 16
        %v1937 = vmul.u32 %v1933, %v1935
        %v1938 = vmul.u32 %v1933, %v1936
        %v1939 = vmul.u32 %v1934, %v1935
        %v1940 = vmul.u32 %v1934, %v1936
        %v1941 = vshll.u32 %v1938, 16
        %v1942 = vshrl.u32 %v1938, 16
        %v1943 = vshll.u32 %v1939, 16
        %v1944 = vshrl.u32 %v1939, 16
        %vm1945 = vc.u32 %v1937, %v1941
        %v1946 = vsel %vm1945, 1, 0
        %v1947 = vadd.s32 %v1937, %v1941
        %v1948 = vadd.s32 %v1940, %v1946
        %vm1949 = vc.u32 %v1947, %v1943
        %v1950 = vsel %vm1949, 1, 0
        %v1951 = vadd.s32 %v1947, %v1943
        %v1952 = vadd.s32 %v1948, %v1950
        %v1953 = vadd.s32 %v1952, %v1942
        %v1954 = vadd.s32 %v1953, %v1944
        %v1955 = vand.u32 %v1932, 65535
        %v1956 = vshrl.u32 %v1932, 16
        %v1957 = vand.u32 %v1927, 65535
        %v1958 = vshrl.u32 %v1927, 16
        %v1959 = vmul.u32 %v1955, %v1957
        %v1960 = vmul.u32 %v1955, %v1958
        %v1961 = vmul.u32 %v1956, %v1957
        %v1962 = vmul.u32 %v1956, %v1958
        %v1963 = vshll.u32 %v1960, 16
        %v1964 = vshrl.u32 %v1960, 16
        %v1965 = vshll.u32 %v1961, 16
        %v1966 = vshrl.u32 %v1961, 16
        %vm1967 = vc.u32 %v1959, %v1963
        %v1968 = vsel %vm1967, 1, 0
        %v1969 = vadd.s32 %v1959, %v1963
        %v1970 = vadd.s32 %v1962, %v1968
        %vm1971 = vc.u32 %v1969, %v1965
        %v1972 = vsel %vm1971, 1, 0
        %v1973 = vadd.s32 %v1969, %v1965
        %v1974 = vadd.s32 %v1970, %v1972
        %v1975 = vadd.s32 %v1974, %v1964
        %v1976 = vadd.s32 %v1975, %v1966
        %v1977 = vmul.u32 %v1932, %v1923
        %v1978 = vadd.s32 %v1954, %v1973
        %vm1979 = vc.u32 %v1954, %v1973
        %v1980 = vadd.s32 %v1976, 1
        %v1981 = vsel %vm1979, %v1980, %v1976
        %v1982 = vadd.s32 %v1977, %v1981
        %v1983 = vadd.s32 %v1982, 536870912
        %v1984 = vshrl.u32 %v1983, 30
        %v1985 = vshll.u32 %v1984, 30
        %v1986 = vsub.s32 %v1982, %v1985
        %vm1987 = vcmp.lt.s32.totalorder %v1986, 0
        %v1988 = vsub.s32 0, %v1986
        %v1989 = vsel %vm1987, %v1988, %v1986
        %v1990 = vclz %v1989
        %v1991 = vsub.s32 %v1990, 2
        %vm1992 = vcmp.gt.s32.totalorder 0, %v1991
        %v1993 = vsel %vm1992, 0, %v1991
        %v1994 = vsub.s32 32, %v1993
        %v1995 = vshll.u32 %v1986, %v1993
        %v1996 = vshrl.u32 %v1978, %v1994
        %v1997 = vor.u32 %v1995, %v1996
        %v1998 = vsub.s32 4294967266, %v1993
        %v1999 = vadd.s32 %v1998, 127
        %v2000 = vshll.u32 %v1999, 23
        %v2001 = vor.u32 4788187, %v2000
        %v2002 = vand.u32 2147483647, %v2001
        %v2004 = vcvt.s32.f32 %v1997
        %v2005 = vmul.f32 %v2004, %v2002
        %v2006 = vxor.u32 %v2005, 2147483648
        %v2007 = vsel %vm1886, %v2006, %v2005
        %v2008 = vsub.s32 4, %v1984
        %v2009 = vsel %vm1886, %v2008, %v1984
        %v2010 = vsel %vm1885, %v328, %v2007
        %v2011 = vsel %vm1885, 0, %v2009
        %v2012 = vmul.f32 %v2010, %v2010
        %v2013 = vmul.f32 %v2012, -0.001358992
        %v2014 = vadd.f32 %v2013, 0.041655596
        %v2015 = vmul.f32 %v2012, %v2014
        %v2016 = vadd.f32 %v2015, -0.4999988
        %v2017 = vmul.f32 %v2012, %v2016
        %v2018 = vadd.f32 1.0, %v2017
        %v2019 = vmul.f32 %v2010, %v2010
        %v2020 = vmul.f32 %v2019, -0.00019511016
        %v2021 = vadd.f32 %v2020, 0.008332121
        %v2022 = vmul.f32 %v2019, %v2021
        %v2023 = vadd.f32 %v2022, -0.16666654
        %v2024 = vmul.f32 %v2019, %v2023
        %v2025 = vadd.f32 %v2024, 1.0
        %v2026 = vmul.f32 %v2025, %v2010
        %vm2027 = vweird.f32 %v328
        %v2028 = vadd.s32 %v2011, 3
        %v2029 = vand.u32 %v2028, 3
        %vm2030 = vcmp.lt.s32.totalorder %v2029, 2
        %vm2031 = vcmp.eq.s32.totalorder %v2029, 0
        %v2032 = vxor.u32 %v2026, 2147483648
        %v2033 = vsel %vm2031, %v2018, %v2032
        %vm2034 = vcmp.eq.s32.totalorder %v2029, 2
        %v2035 = vxor.u32 %v2018, 2147483648
        %v2036 = vsel %vm2034, %v2035, %v2026
        %v2037 = vsel %vm2030, %v2033, %v2036
        %v2038 = vsel %vm2027, nan, %v2037
        %v2039 = vand.u32 2147483647, %v329
        %vm2040 = vcmp.le.f32.partialorder %v2039, 0.7853982
        %vm2041 = vcmp.lt.s32.totalorder %v329, 0
        %v2042 = vand.u32 %v329, 2139095040
        %v2043 = vshrl.u32 %v2042, 23
        %v2044 = vsub.s32 %v2043, 127
        %v2045 = vand.u32 2147483647, %v329
        %v2046 = vand.u32 %v2045, 8388607
        %v2047 = vor.u32 %v2046, 8388608
        %v2048 = vsub.s32 0, %v2047
        %v2049 = vadd.s32 %v2044, 1
        %vm2050 = vcmp.gt.s32.totalorder %v2049, 0
        %v2051 = vsel %vm2050, %v2049, 0
        %v2052 = vshrl.u32 %v2051, 5
        %v2053 = vand.u32 %v2051, 31
        %v2054 = vsub.s32 32, %v2053
        %v2055 = vshrl.u32 683565275, %v2054
        %v2056 = vshll.u32 683565275, %v2053
        %v2057 = vshrl.u32 2475754826, %v2054
        %v2058 = vor.u32 %v2056, %v2057
        %v2059 = vshll.u32 2475754826, %v2053
        %v2060 = vshrl.u32 2131351028, %v2054
        %v2061 = vor.u32 %v2059, %v2060
        %v2062 = vshll.u32 2131351028, %v2053
        %v2063 = vshrl.u32 2102212464, %v2054
        %v2064 = vor.u32 %v2062, %v2063
        %v2065 = vshll.u32 2102212464, %v2053
        %v2066 = vshrl.u32 920167782, %v2054
        %v2067 = vor.u32 %v2065, %v2066
        %v2068 = vshll.u32 920167782, %v2053
        %v2069 = vshrl.u32 1326507024, %v2054
        %v2070 = vor.u32 %v2068, %v2069
        %vm2071 = vcmp.lt.s32.totalorder %v2052, 1
        %vm2072 = vcmp.lt.s32.totalorder %v2052, 2
        %vm2073 = vcmp.lt.s32.totalorder %v2052, 3
        %vm2074 = vcmp.lt.s32.totalorder %v2052, 4
        %v2075 = vsel %vm2071, %v2055, %v2058
        %v2076 = vsel %vm2074, %v2064, 2102212464
        %v2077 = vsel %vm2073, %v2061, %v2076
        %v2078 = vsel %vm2072, %v2075, %v2077
        %v2079 = vsel %vm2071, %v2058, %v2061
        %v2080 = vsel %vm2074, %v2067, 920167782
        %v2081 = vsel %vm2073, %v2064, %v2080
        %v2082 = vsel %vm2072, %v2079, %v2081
        %v2083 = vsel %vm2071, %v2061, %v2064
        %v2084 = vsel %vm2074, %v2070, 1326507024
        %v2085 = vsel %vm2073, %v2067, %v2084
        %v2086 = vsel %vm2072, %v2083, %v2085
        %v2087 = vshll.u32 %v2047, 8
        %v2088 = vand.u32 %v2087, 65535
        %v2089 = vshrl.u32 %v2087, 16
        %v2090 = vand.u32 %v2086, 65535
        %v2091 = vshrl.u32 %v2086, 16
        %v2092 = vmul.u32 %v2088, %v2090
        %v2093 = vmul.u32 %v2088, %v2091
        %v2094 = vmul.u32 %v2089, %v2090
        %v2095 = vmul.u32 %v2089, %v2091
        %v2096 = vshll.u32 %v2093, 16
        %v2097 = vshrl.u32 %v2093, 16
        %v2098 = vshll.u32 %v2094, 16
        %v2099 = vshrl.u32 %v2094, 16
        %vm2100 = vc.u32 %v2092, %v2096
        %v2101 = vsel %vm2100, 1, 0
        %v2102 = vadd.s32 %v2092, %v2096
        %v2103 = vadd.s32 %v2095, %v2101
        %vm2104 = vc.u32 %v2102, %v2098
        %v2105 = vsel %vm2104, 1, 0
        %v2106 = vadd.s32 %v2102, %v2098
        %v2107 = vadd.s32 %v2103, %v2105
        %v2108 = vadd.s32 %v2107, %v2097
        %v2109 = vadd.s32 %v2108, %v2099
        %v2110 = vand.u32 %v2087, 65535
        %v2111 = vshrl.u32 %v2087, 16
        %v2112 = vand.u32 %v2082, 65535
        %v2113 = vshrl.u32 %v2082, 16
        %v2114 = vmul.u32 %v2110, %v2112
        %v2115 = vmul.u32 %v2110, %v2113
        %v2116 = vmul.u32 %v2111, %v2112
        %v2117 = vmul.u32 %v2111, %v2113
        %v2118 = vshll.u32 %v2115, 16
        %v2119 = vshrl.u32 %v2115, 16
        %v2120 = vshll.u32 %v2116, 16
        %v2121 = vshrl.u32 %v2116, 16
        %vm2122 = vc.u32 %v2114, %v2118
        %v2123 = vsel %vm2122, 1, 0
        %v2124 = vadd.s32 %v2114, %v2118
        %v2125 = vadd.s32 %v2117, %v2123
        %vm2126 = vc.u32 %v2124, %v2120
        %v2127 = vsel %vm2126, 1, 0
        %v2128 = vadd.s32 %v2124, %v2120
        %v2129 = vadd.s32 %v2125, %v2127
        %v2130 = vadd.s32 %v2129, %v2119
        %v2131 = vadd.s32 %v2130, %v2121
        %v2132 = vmul.u32 %v2087, %v2078
        %v2133 = vadd.s32 %v2109, %v2128
        %vm2134 = vc.u32 %v2109, %v2128
        %v2135 = vadd.s32 %v2131, 1
        %v2136 = vsel %vm2134, %v2135, %v2131
        %v2137 = vadd.s32 %v2132, %v2136
        %v2138 = vadd.s32 %v2137, 536870912
        %v2139 = vshrl.u32 %v2138, 30
        %v2140 = vshll.u32 %v2139, 30
        %v2141 = vsub.s32 %v2137, %v2140
        %vm2142 = vcmp.lt.s32.totalorder %v2141, 0
        %v2143 = vsub.s32 0, %v2141
        %v2144 = vsel %vm2142, %v2143, %v2141
        %v2145 = vclz %v2144
        %v2146 = vsub.s32 %v2145, 2
        %vm2147 = vcmp.gt.s32.totalorder 0, %v2146
        %v2148 = vsel %vm2147, 0, %v2146
        %v2149 = vsub.s32 32, %v2148
        %v2150 = vshll.u32 %v2141, %v2148
        %v2151 = vshrl.u32 %v2133, %v2149
        %v2152 = vor.u32 %v2150, %v2151
        %v2153 = vsub.s32 4294967266, %v2148
        %v2154 = vadd.s32 %v2153, 127
        %v2155 = vshll.u32 %v2154, 23
        %v2156 = vor.u32 4788187, %v2155
        %v2157 = vand.u32 2147483647, %v2156
        %v2159 = vcvt.s32.f32 %v2152
        %v2160 = vmul.f32 %v2159, %v2157
        %v2161 = vxor.u32 %v2160, 2147483648
        %v2162 = vsel %vm2041, %v2161, %v2160
        %v2163 = vsub.s32 4, %v2139
        %v2164 = vsel %vm2041, %v2163, %v2139
        %v2165 = vsel %vm2040, %v329, %v2162
        %v2166 = vsel %vm2040, 0, %v2164
        %v2167 = vmul.f32 %v2165, %v2165
        %v2168 = vmul.f32 %v2167, -0.001358992
        %v2169 = vadd.f32 %v2168, 0.041655596
        %v2170 = vmul.f32 %v2167, %v2169
        %v2171 = vadd.f32 %v2170, -0.4999988
        %v2172 = vmul.f32 %v2167, %v2171
        %v2173 = vadd.f32 1.0, %v2172
        %v2174 = vmul.f32 %v2165, %v2165
        %v2175 = vmul.f32 %v2174, -0.00019511016
        %v2176 = vadd.f32 %v2175, 0.008332121
        %v2177 = vmul.f32 %v2174, %v2176
        %v2178 = vadd.f32 %v2177, -0.16666654
        %v2179 = vmul.f32 %v2174, %v2178
        %v2180 = vadd.f32 %v2179, 1.0
        %v2181 = vmul.f32 %v2180, %v2165
        %vm2182 = vweird.f32 %v329
        %v2183 = vadd.s32 %v2166, 3
        %v2184 = vand.u32 %v2183, 3
        %vm2185 = vcmp.lt.s32.totalorder %v2184, 2
        %vm2186 = vcmp.eq.s32.totalorder %v2184, 0
        %v2187 = vxor.u32 %v2181, 2147483648
        %v2188 = vsel %vm2186, %v2173, %v2187
        %vm2189 = vcmp.eq.s32.totalorder %v2184, 2
        %v2190 = vxor.u32 %v2173, 2147483648
        %v2191 = vsel %vm2189, %v2190, %v2181
        %v2192 = vsel %vm2185, %v2188, %v2191
        %v2193 = vsel %vm2182, nan, %v2192
        %v2194 = vand.u32 2147483647, %v330
        %vm2195 = vcmp.le.f32.partialorder %v2194, 0.7853982
        %vm2196 = vcmp.lt.s32.totalorder %v330, 0
        %v2197 = vand.u32 %v330, 2139095040
        %v2198 = vshrl.u32 %v2197, 23
        %v2199 = vsub.s32 %v2198, 127
        %v2200 = vand.u32 2147483647, %v330
        %v2201 = vand.u32 %v2200, 8388607
        %v2202 = vor.u32 %v2201, 8388608
        %v2203 = vsub.s32 0, %v2202
        %v2204 = vadd.s32 %v2199, 1
        %vm2205 = vcmp.gt.s32.totalorder %v2204, 0
        %v2206 = vsel %vm2205, %v2204, 0
        %v2207 = vshrl.u32 %v2206, 5
        %v2208 = vand.u32 %v2206, 31
        %v2209 = vsub.s32 32, %v2208
        %v2210 = vshrl.u32 683565275, %v2209
        %v2211 = vshll.u32 683565275, %v2208
        %v2212 = vshrl.u32 2475754826, %v2209
        %v2213 = vor.u32 %v2211, %v2212
        %v2214 = vshll.u32 2475754826, %v2208
        %v2215 = vshrl.u32 2131351028, %v2209
        %v2216 = vor.u32 %v2214, %v2215
        %v2217 = vshll.u32 2131351028, %v2208
        %v2218 = vshrl.u32 2102212464, %v2209
        %v2219 = vor.u32 %v2217, %v2218
        %v2220 = vshll.u32 2102212464, %v2208
        %v2221 = vshrl.u32 920167782, %v2209
        %v2222 = vor.u32 %v2220, %v2221
        %v2223 = vshll.u32 920167782, %v2208
        %v2224 = vshrl.u32 1326507024, %v2209
        %v2225 = vor.u32 %v2223, %v2224
        %vm2226 = vcmp.lt.s32.totalorder %v2207, 1
        %vm2227 = vcmp.lt.s32.totalorder %v2207, 2
        %vm2228 = vcmp.lt.s32.totalorder %v2207, 3
        %vm2229 = vcmp.lt.s32.totalorder %v2207, 4
        %v2230 = vsel %vm2226, %v2210, %v2213
        %v2231 = vsel %vm2229, %v2219, 2102212464
        %v2232 = vsel %vm2228, %v2216, %v2231
        %v2233 = vsel %vm2227, %v2230, %v2232
        %v2234 = vsel %vm2226, %v2213, %v2216
        %v2235 = vsel %vm2229, %v2222, 920167782
        %v2236 = vsel %vm2228, %v2219, %v2235
        %v2237 = vsel %vm2227, %v2234, %v2236
        %v2238 = vsel %vm2226, %v2216, %v2219
        %v2239 = vsel %vm2229, %v2225, 1326507024
        %v2240 = vsel %vm2228, %v2222, %v2239
        %v2241 = vsel %vm2227, %v2238, %v2240
        %v2242 = vshll.u32 %v2202, 8
        %v2243 = vand.u32 %v2242, 65535
        %v2244 = vshrl.u32 %v2242, 16
        %v2245 = vand.u32 %v2241, 65535
        %v2246 = vshrl.u32 %v2241, 16
        %v2247 = vmul.u32 %v2243, %v2245
        %v2248 = vmul.u32 %v2243, %v2246
        %v2249 = vmul.u32 %v2244, %v2245
        %v2250 = vmul.u32 %v2244, %v2246
        %v2251 = vshll.u32 %v2248, 16
        %v2252 = vshrl.u32 %v2248, 16
        %v2253 = vshll.u32 %v2249, 16
        %v2254 = vshrl.u32 %v2249, 16
        %vm2255 = vc.u32 %v2247, %v2251
        %v2256 = vsel %vm2255, 1, 0
        %v2257 = vadd.s32 %v2247, %v2251
        %v2258 = vadd.s32 %v2250, %v2256
        %vm2259 = vc.u32 %v2257, %v2253
        %v2260 = vsel %vm2259, 1, 0
        %v2261 = vadd.s32 %v2257, %v2253
        %v2262 = vadd.s32 %v2258, %v2260
        %v2263 = vadd.s32 %v2262, %v2252
        %v2264 = vadd.s32 %v2263, %v2254
        %v2265 = vand.u32 %v2242, 65535
        %v2266 = vshrl.u32 %v2242, 16
        %v2267 = vand.u32 %v2237, 65535
        %v2268 = vshrl.u32 %v2237, 16
        %v2269 = vmul.u32 %v2265, %v2267
        %v2270 = vmul.u32 %v2265, %v2268
        %v2271 = vmul.u32 %v2266, %v2267
        %v2272 = vmul.u32 %v2266, %v2268
        %v2273 = vshll.u32 %v2270, 16
        %v2274 = vshrl.u32 %v2270, 16
        %v2275 = vshll.u32 %v2271, 16
        %v2276 = vshrl.u32 %v2271, 16
        %vm2277 = vc.u32 %v2269, %v2273
        %v2278 = vsel %vm2277, 1, 0
        %v2279 = vadd.s32 %v2269, %v2273
        %v2280 = vadd.s32 %v2272, %v2278
        %vm2281 = vc.u32 %v2279, %v2275
        %v2282 = vsel %vm2281, 1, 0
        %v2283 = vadd.s32 %v2279, %v2275
        %v2284 = vadd.s32 %v2280, %v2282
        %v2285 = vadd.s32 %v2284, %v2274
        %v2286 = vadd.s32 %v2285, %v2276
        %v2287 = vmul.u32 %v2242, %v2233
        %v2288 = vadd.s32 %v2264, %v2283
        %vm2289 = vc.u32 %v2264, %v2283
        %v2290 = vadd.s32 %v2286, 1
        %v2291 = vsel %vm2289, %v2290, %v2286
        %v2292 = vadd.s32 %v2287, %v2291
        %v2293 = vadd.s32 %v2292, 536870912
        %v2294 = vshrl.u32 %v2293, 30
        %v2295 = vshll.u32 %v2294, 30
        %v2296 = vsub.s32 %v2292, %v2295
        %vm2297 = vcmp.lt.s32.totalorder %v2296, 0
        %v2298 = vsub.s32 0, %v2296
        %v2299 = vsel %vm2297, %v2298, %v2296
        %v2300 = vclz %v2299
        %v2301 = vsub.s32 %v2300, 2
        %vm2302 = vcmp.gt.s32.totalorder 0, %v2301
        %v2303 = vsel %vm2302, 0, %v2301
        %v2304 = vsub.s32 32, %v2303
        %v2305 = vshll.u32 %v2296, %v2303
        %v2306 = vshrl.u32 %v2288, %v2304
        %v2307 = vor.u32 %v2305, %v2306
        %v2308 = vsub.s32 4294967266, %v2303
        %v2309 = vadd.s32 %v2308, 127
        %v2310 = vshll.u32 %v2309, 23
        %v2311 = vor.u32 4788187, %v2310
        %v2312 = vand.u32 2147483647, %v2311
        %v2314 = vcvt.s32.f32 %v2307
        %v2315 = vmul.f32 %v2314, %v2312
        %v2316 = vxor.u32 %v2315, 2147483648
        %v2317 = vsel %vm2196, %v2316, %v2315
        %v2318 = vsub.s32 4, %v2294
        %v2319 = vsel %vm2196, %v2318, %v2294
        %v2320 = vsel %vm2195, %v330, %v2317
        %v2321 = vsel %vm2195, 0, %v2319
        %v2322 = vmul.f32 %v2320, %v2320
        %v2323 = vmul.f32 %v2322, -0.001358992
        %v2324 = vadd.f32 %v2323, 0.041655596
        %v2325 = vmul.f32 %v2322, %v2324
        %v2326 = vadd.f32 %v2325, -0.4999988
        %v2327 = vmul.f32 %v2322, %v2326
        %v2328 = vadd.f32 1.0, %v2327
        %v2329 = vmul.f32 %v2320, %v2320
        %v2330 = vmul.f32 %v2329, -0.00019511016
        %v2331 = vadd.f32 %v2330, 0.008332121
        %v2332 = vmul.f32 %v2329, %v2331
        %v2333 = vadd.f32 %v2332, -0.16666654
        %v2334 = vmul.f32 %v2329, %v2333
        %v2335 = vadd.f32 %v2334, 1.0
        %v2336 = vmul.f32 %v2335, %v2320
        %vm2337 = vweird.f32 %v330
        %v2338 = vadd.s32 %v2321, 3
        %v2339 = vand.u32 %v2338, 3
        %vm2340 = vcmp.lt.s32.totalorder %v2339, 2
        %vm2341 = vcmp.eq.s32.totalorder %v2339, 0
        %v2342 = vxor.u32 %v2336, 2147483648
        %v2343 = vsel %vm2341, %v2328, %v2342
        %vm2344 = vcmp.eq.s32.totalorder %v2339, 2
        %v2345 = vxor.u32 %v2328, 2147483648
        %v2346 = vsel %vm2344, %v2345, %v2336
        %v2347 = vsel %vm2340, %v2343, %v2346
        %v2348 = vsel %vm2337, nan, %v2347
        %v2349 = vand.u32 2147483647, %v331
        %vm2350 = vcmp.le.f32.partialorder %v2349, 0.7853982
        %vm2351 = vcmp.lt.s32.totalorder %v331, 0
        %v2352 = vand.u32 %v331, 2139095040
        %v2353 = vshrl.u32 %v2352, 23
        %v2354 = vsub.s32 %v2353, 127
        %v2355 = vand.u32 2147483647, %v331
        %v2356 = vand.u32 %v2355, 8388607
        %v2357 = vor.u32 %v2356, 8388608
        %v2358 = vsub.s32 0, %v2357
        %v2359 = vadd.s32 %v2354, 1
        %vm2360 = vcmp.gt.s32.totalorder %v2359, 0
        %v2361 = vsel %vm2360, %v2359, 0
        %v2362 = vshrl.u32 %v2361, 5
        %v2363 = vand.u32 %v2361, 31
        %v2364 = vsub.s32 32, %v2363
        %v2365 = vshrl.u32 683565275, %v2364
        %v2366 = vshll.u32 683565275, %v2363
        %v2367 = vshrl.u32 2475754826, %v2364
        %v2368 = vor.u32 %v2366, %v2367
        %v2369 = vshll.u32 2475754826, %v2363
        %v2370 = vshrl.u32 2131351028, %v2364
        %v2371 = vor.u32 %v2369, %v2370
        %v2372 = vshll.u32 2131351028, %v2363
        %v2373 = vshrl.u32 2102212464, %v2364
        %v2374 = vor.u32 %v2372, %v2373
        %v2375 = vshll.u32 2102212464, %v2363
        %v2376 = vshrl.u32 920167782, %v2364
        %v2377 = vor.u32 %v2375, %v2376
        %v2378 = vshll.u32 920167782, %v2363
        %v2379 = vshrl.u32 1326507024, %v2364
        %v2380 = vor.u32 %v2378, %v2379
        %vm2381 = vcmp.lt.s32.totalorder %v2362, 1
        %vm2382 = vcmp.lt.s32.totalorder %v2362, 2
        %vm2383 = vcmp.lt.s32.totalorder %v2362, 3
        %vm2384 = vcmp.lt.s32.totalorder %v2362, 4
        %v2385 = vsel %vm2381, %v2365, %v2368
        %v2386 = vsel %vm2384, %v2374, 2102212464
        %v2387 = vsel %vm2383, %v2371, %v2386
        %v2388 = vsel %vm2382, %v2385, %v2387
        %v2389 = vsel %vm2381, %v2368, %v2371
        %v2390 = vsel %vm2384, %v2377, 920167782
        %v2391 = vsel %vm2383, %v2374, %v2390
        %v2392 = vsel %vm2382, %v2389, %v2391
        %v2393 = vsel %vm2381, %v2371, %v2374
        %v2394 = vsel %vm2384, %v2380, 1326507024
        %v2395 = vsel %vm2383, %v2377, %v2394
        %v2396 = vsel %vm2382, %v2393, %v2395
        %v2397 = vshll.u32 %v2357, 8
        %v2398 = vand.u32 %v2397, 65535
        %v2399 = vshrl.u32 %v2397, 16
        %v2400 = vand.u32 %v2396, 65535
        %v2401 = vshrl.u32 %v2396, 16
        %v2402 = vmul.u32 %v2398, %v2400
        %v2403 = vmul.u32 %v2398, %v2401
        %v2404 = vmul.u32 %v2399, %v2400
        %v2405 = vmul.u32 %v2399, %v2401
        %v2406 = vshll.u32 %v2403, 16
        %v2407 = vshrl.u32 %v2403, 16
        %v2408 = vshll.u32 %v2404, 16
        %v2409 = vshrl.u32 %v2404, 16
        %vm2410 = vc.u32 %v2402, %v2406
        %v2411 = vsel %vm2410, 1, 0
        %v2412 = vadd.s32 %v2402, %v2406
        %v2413 = vadd.s32 %v2405, %v2411
        %vm2414 = vc.u32 %v2412, %v2408
        %v2415 = vsel %vm2414, 1, 0
        %v2416 = vadd.s32 %v2412, %v2408
        %v2417 = vadd.s32 %v2413, %v2415
        %v2418 = vadd.s32 %v2417, %v2407
        %v2419 = vadd.s32 %v2418, %v2409
        %v2420 = vand.u32 %v2397, 65535
        %v2421 = vshrl.u32 %v2397, 16
        %v2422 = vand.u32 %v2392, 65535
        %v2423 = vshrl.u32 %v2392, 16
        %v2424 = vmul.u32 %v2420, %v2422
        %v2425 = vmul.u32 %v2420, %v2423
        %v2426 = vmul.u32 %v2421, %v2422
        %v2427 = vmul.u32 %v2421, %v2423
        %v2428 = vshll.u32 %v2425, 16
        %v2429 = vshrl.u32 %v2425, 16
        %v2430 = vshll.u32 %v2426, 16
        %v2431 = vshrl.u32 %v2426, 16
        %vm2432 = vc.u32 %v2424, %v2428
        %v2433 = vsel %vm2432, 1, 0
        %v2434 = vadd.s32 %v2424, %v2428
        %v2435 = vadd.s32 %v2427, %v2433
        %vm2436 = vc.u32 %v2434, %v2430
        %v2437 = vsel %vm2436, 1, 0
        %v2438 = vadd.s32 %v2434, %v2430
        %v2439 = vadd.s32 %v2435, %v2437
        %v2440 = vadd.s32 %v2439, %v2429
        %v2441 = vadd.s32 %v2440, %v2431
        %v2442 = vmul.u32 %v2397, %v2388
        %v2443 = vadd.s32 %v2419, %v2438
        %vm2444 = vc.u32 %v2419, %v2438
        %v2445 = vadd.s32 %v2441, 1
        %v2446 = vsel %vm2444, %v2445, %v2441
        %v2447 = vadd.s32 %v2442, %v2446
        %v2448 = vadd.s32 %v2447, 536870912
        %v2449 = vshrl.u32 %v2448, 30
        %v2450 = vshll.u32 %v2449, 30
        %v2451 = vsub.s32 %v2447, %v2450
        %vm2452 = vcmp.lt.s32.totalorder %v2451, 0
        %v2453 = vsub.s32 0, %v2451
        %v2454 = vsel %vm2452, %v2453, %v2451
        %v2455 = vclz %v2454
        %v2456 = vsub.s32 %v2455, 2
        %vm2457 = vcmp.gt.s32.totalorder 0, %v2456
        %v2458 = vsel %vm2457, 0, %v2456
        %v2459 = vsub.s32 32, %v2458
        %v2460 = vshll.u32 %v2451, %v2458
        %v2461 = vshrl.u32 %v2443, %v2459
        %v2462 = vor.u32 %v2460, %v2461
        %v2463 = vsub.s32 4294967266, %v2458
        %v2464 = vadd.s32 %v2463, 127
        %v2465 = vshll.u32 %v2464, 23
        %v2466 = vor.u32 4788187, %v2465
        %v2467 = vand.u32 2147483647, %v2466
        %v2469 = vcvt.s32.f32 %v2462
        %v2470 = vmul.f32 %v2469, %v2467
        %v2471 = vxor.u32 %v2470, 2147483648
        %v2472 = vsel %vm2351, %v2471, %v2470
        %v2473 = vsub.s32 4, %v2449
        %v2474 = vsel %vm2351, %v2473, %v2449
        %v2475 = vsel %vm2350, %v331, %v2472
        %v2476 = vsel %vm2350, 0, %v2474
        %v2477 = vmul.f32 %v2475, %v2475
        %v2478 = vmul.f32 %v2477, -0.001358992
        %v2479 = vadd.f32 %v2478, 0.041655596
        %v2480 = vmul.f32 %v2477, %v2479
        %v2481 = vadd.f32 %v2480, -0.4999988
        %v2482 = vmul.f32 %v2477, %v2481
        %v2483 = vadd.f32 1.0, %v2482
        %v2484 = vmul.f32 %v2475, %v2475
        %v2485 = vmul.f32 %v2484, -0.00019511016
        %v2486 = vadd.f32 %v2485, 0.008332121
        %v2487 = vmul.f32 %v2484, %v2486
        %v2488 = vadd.f32 %v2487, -0.16666654
        %v2489 = vmul.f32 %v2484, %v2488
        %v2490 = vadd.f32 %v2489, 1.0
        %v2491 = vmul.f32 %v2490, %v2475
        %vm2492 = vweird.f32 %v331
        %v2493 = vadd.s32 %v2476, 3
        %v2494 = vand.u32 %v2493, 3
        %vm2495 = vcmp.lt.s32.totalorder %v2494, 2
        %vm2496 = vcmp.eq.s32.totalorder %v2494, 0
        %v2497 = vxor.u32 %v2491, 2147483648
        %v2498 = vsel %vm2496, %v2483, %v2497
        %vm2499 = vcmp.eq.s32.totalorder %v2494, 2
        %v2500 = vxor.u32 %v2483, 2147483648
        %v2501 = vsel %vm2499, %v2500, %v2491
        %v2502 = vsel %vm2495, %v2498, %v2501
        %v2503 = vsel %vm2492, nan, %v2502
        %v2504 = vand.u32 2147483647, %v332
        %vm2505 = vcmp.le.f32.partialorder %v2504, 0.7853982
        %vm2506 = vcmp.lt.s32.totalorder %v332, 0
        %v2507 = vand.u32 %v332, 2139095040
        %v2508 = vshrl.u32 %v2507, 23
        %v2509 = vsub.s32 %v2508, 127
        %v2510 = vand.u32 2147483647, %v332
        %v2511 = vand.u32 %v2510, 8388607
        %v2512 = vor.u32 %v2511, 8388608
        %v2513 = vsub.s32 0, %v2512
        %v2514 = vadd.s32 %v2509, 1
        %vm2515 = vcmp.gt.s32.totalorder %v2514, 0
        %v2516 = vsel %vm2515, %v2514, 0
        %v2517 = vshrl.u32 %v2516, 5
        %v2518 = vand.u32 %v2516, 31
        %v2519 = vsub.s32 32, %v2518
        %v2520 = vshrl.u32 683565275, %v2519
        %v2521 = vshll.u32 683565275, %v2518
        %v2522 = vshrl.u32 2475754826, %v2519
        %v2523 = vor.u32 %v2521, %v2522
        %v2524 = vshll.u32 2475754826, %v2518
        %v2525 = vshrl.u32 2131351028, %v2519
        %v2526 = vor.u32 %v2524, %v2525
        %v2527 = vshll.u32 2131351028, %v2518
        %v2528 = vshrl.u32 2102212464, %v2519
        %v2529 = vor.u32 %v2527, %v2528
        %v2530 = vshll.u32 2102212464, %v2518
        %v2531 = vshrl.u32 920167782, %v2519
        %v2532 = vor.u32 %v2530, %v2531
        %v2533 = vshll.u32 920167782, %v2518
        %v2534 = vshrl.u32 1326507024, %v2519
        %v2535 = vor.u32 %v2533, %v2534
        %vm2536 = vcmp.lt.s32.totalorder %v2517, 1
        %vm2537 = vcmp.lt.s32.totalorder %v2517, 2
        %vm2538 = vcmp.lt.s32.totalorder %v2517, 3
        %vm2539 = vcmp.lt.s32.totalorder %v2517, 4
        %v2540 = vsel %vm2536, %v2520, %v2523
        %v2541 = vsel %vm2539, %v2529, 2102212464
        %v2542 = vsel %vm2538, %v2526, %v2541
        %v2543 = vsel %vm2537, %v2540, %v2542
        %v2544 = vsel %vm2536, %v2523, %v2526
        %v2545 = vsel %vm2539, %v2532, 920167782
        %v2546 = vsel %vm2538, %v2529, %v2545
        %v2547 = vsel %vm2537, %v2544, %v2546
        %v2548 = vsel %vm2536, %v2526, %v2529
        %v2549 = vsel %vm2539, %v2535, 1326507024
        %v2550 = vsel %vm2538, %v2532, %v2549
        %v2551 = vsel %vm2537, %v2548, %v2550
        %v2552 = vshll.u32 %v2512, 8
        %v2553 = vand.u32 %v2552, 65535
        %v2554 = vshrl.u32 %v2552, 16
        %v2555 = vand.u32 %v2551, 65535
        %v2556 = vshrl.u32 %v2551, 16
        %v2557 = vmul.u32 %v2553, %v2555
        %v2558 = vmul.u32 %v2553, %v2556
        %v2559 = vmul.u32 %v2554, %v2555
        %v2560 = vmul.u32 %v2554, %v2556
        %v2561 = vshll.u32 %v2558, 16
        %v2562 = vshrl.u32 %v2558, 16
        %v2563 = vshll.u32 %v2559, 16
        %v2564 = vshrl.u32 %v2559, 16
        %vm2565 = vc.u32 %v2557, %v2561
        %v2566 = vsel %vm2565, 1, 0
        %v2567 = vadd.s32 %v2557, %v2561
        %v2568 = vadd.s32 %v2560, %v2566
        %vm2569 = vc.u32 %v2567, %v2563
        %v2570 = vsel %vm2569, 1, 0
        %v2571 = vadd.s32 %v2567, %v2563
        %v2572 = vadd.s32 %v2568, %v2570
        %v2573 = vadd.s32 %v2572, %v2562
        %v2574 = vadd.s32 %v2573, %v2564
        %v2575 = vand.u32 %v2552, 65535
        %v2576 = vshrl.u32 %v2552, 16
        %v2577 = vand.u32 %v2547, 65535
        %v2578 = vshrl.u32 %v2547, 16
        %v2579 = vmul.u32 %v2575, %v2577
        %v2580 = vmul.u32 %v2575, %v2578
        %v2581 = vmul.u32 %v2576, %v2577
        %v2582 = vmul.u32 %v2576, %v2578
        %v2583 = vshll.u32 %v2580, 16
        %v2584 = vshrl.u32 %v2580, 16
        %v2585 = vshll.u32 %v2581, 16
        %v2586 = vshrl.u32 %v2581, 16
        %vm2587 = vc.u32 %v2579, %v2583
        %v2588 = vsel %vm2587, 1, 0
        %v2589 = vadd.s32 %v2579, %v2583
        %v2590 = vadd.s32 %v2582, %v2588
        %vm2591 = vc.u32 %v2589, %v2585
        %v2592 = vsel %vm2591, 1, 0
        %v2593 = vadd.s32 %v2589, %v2585
        %v2594 = vadd.s32 %v2590, %v2592
        %v2595 = vadd.s32 %v2594, %v2584
        %v2596 = vadd.s32 %v2595, %v2586
        %v2597 = vmul.u32 %v2552, %v2543
        %v2598 = vadd.s32 %v2574, %v2593
        %vm2599 = vc.u32 %v2574, %v2593
        %v2600 = vadd.s32 %v2596, 1
        %v2601 = vsel %vm2599, %v2600, %v2596
        %v2602 = vadd.s32 %v2597, %v2601
        %v2603 = vadd.s32 %v2602, 536870912
        %v2604 = vshrl.u32 %v2603, 30
        %v2605 = vshll.u32 %v2604, 30
        %v2606 = vsub.s32 %v2602, %v2605
        %vm2607 = vcmp.lt.s32.totalorder %v2606, 0
        %v2608 = vsub.s32 0, %v2606
        %v2609 = vsel %vm2607, %v2608, %v2606
        %v2610 = vclz %v2609
        %v2611 = vsub.s32 %v2610, 2
        %vm2612 = vcmp.gt.s32.totalorder 0, %v2611
        %v2613 = vsel %vm2612, 0, %v2611
        %v2614 = vsub.s32 32, %v2613
        %v2615 = vshll.u32 %v2606, %v2613
        %v2616 = vshrl.u32 %v2598, %v2614
        %v2617 = vor.u32 %v2615, %v2616
        %v2618 = vsub.s32 4294967266, %v2613
        %v2619 = vadd.s32 %v2618, 127
        %v2620 = vshll.u32 %v2619, 23
        %v2621 = vor.u32 4788187, %v2620
        %v2622 = vand.u32 2147483647, %v2621
        %v2624 = vcvt.s32.f32 %v2617
        %v2625 = vmul.f32 %v2624, %v2622
        %v2626 = vxor.u32 %v2625, 2147483648
        %v2627 = vsel %vm2506, %v2626, %v2625
        %v2628 = vsub.s32 4, %v2604
        %v2629 = vsel %vm2506, %v2628, %v2604
        %v2630 = vsel %vm2505, %v332, %v2627
        %v2631 = vsel %vm2505, 0, %v2629
        %v2632 = vmul.f32 %v2630, %v2630
        %v2633 = vmul.f32 %v2632, -0.001358992
        %v2634 = vadd.f32 %v2633, 0.041655596
        %v2635 = vmul.f32 %v2632, %v2634
        %v2636 = vadd.f32 %v2635, -0.4999988
        %v2637 = vmul.f32 %v2632, %v2636
        %v2638 = vadd.f32 1.0, %v2637
        %v2639 = vmul.f32 %v2630, %v2630
        %v2640 = vmul.f32 %v2639, -0.00019511016
        %v2641 = vadd.f32 %v2640, 0.008332121
        %v2642 = vmul.f32 %v2639, %v2641
        %v2643 = vadd.f32 %v2642, -0.16666654
        %v2644 = vmul.f32 %v2639, %v2643
        %v2645 = vadd.f32 %v2644, 1.0
        %v2646 = vmul.f32 %v2645, %v2630
        %vm2647 = vweird.f32 %v332
        %v2648 = vadd.s32 %v2631, 3
        %v2649 = vand.u32 %v2648, 3
        %vm2650 = vcmp.lt.s32.totalorder %v2649, 2
        %vm2651 = vcmp.eq.s32.totalorder %v2649, 0
        %v2652 = vxor.u32 %v2646, 2147483648
        %v2653 = vsel %vm2651, %v2638, %v2652
        %vm2654 = vcmp.eq.s32.totalorder %v2649, 2
        %v2655 = vxor.u32 %v2638, 2147483648
        %v2656 = vsel %vm2654, %v2655, %v2646
        %v2657 = vsel %vm2650, %v2653, %v2656
        %v2658 = vsel %vm2647, nan, %v2657
        %v2659 = vand.u32 2147483647, %v333
        %vm2660 = vcmp.le.f32.partialorder %v2659, 0.7853982
        %vm2661 = vcmp.lt.s32.totalorder %v333, 0
        %v2662 = vand.u32 %v333, 2139095040
        %v2663 = vshrl.u32 %v2662, 23
        %v2664 = vsub.s32 %v2663, 127
        %v2665 = vand.u32 2147483647, %v333
        %v2666 = vand.u32 %v2665, 8388607
        %v2667 = vor.u32 %v2666, 8388608
        %v2668 = vsub.s32 0, %v2667
        %v2669 = vadd.s32 %v2664, 1
        %vm2670 = vcmp.gt.s32.totalorder %v2669, 0
        %v2671 = vsel %vm2670, %v2669, 0
        %v2672 = vshrl.u32 %v2671, 5
        %v2673 = vand.u32 %v2671, 31
        %v2674 = vsub.s32 32, %v2673
        %v2675 = vshrl.u32 683565275, %v2674
        %v2676 = vshll.u32 683565275, %v2673
        %v2677 = vshrl.u32 2475754826, %v2674
        %v2678 = vor.u32 %v2676, %v2677
        %v2679 = vshll.u32 2475754826, %v2673
        %v2680 = vshrl.u32 2131351028, %v2674
        %v2681 = vor.u32 %v2679, %v2680
        %v2682 = vshll.u32 2131351028, %v2673
        %v2683 = vshrl.u32 2102212464, %v2674
        %v2684 = vor.u32 %v2682, %v2683
        %v2685 = vshll.u32 2102212464, %v2673
        %v2686 = vshrl.u32 920167782, %v2674
        %v2687 = vor.u32 %v2685, %v2686
        %v2688 = vshll.u32 920167782, %v2673
        %v2689 = vshrl.u32 1326507024, %v2674
        %v2690 = vor.u32 %v2688, %v2689
        %vm2691 = vcmp.lt.s32.totalorder %v2672, 1
        %vm2692 = vcmp.lt.s32.totalorder %v2672, 2
        %vm2693 = vcmp.lt.s32.totalorder %v2672, 3
        %vm2694 = vcmp.lt.s32.totalorder %v2672, 4
        %v2695 = vsel %vm2691, %v2675, %v2678
        %v2696 = vsel %vm2694, %v2684, 2102212464
        %v2697 = vsel %vm2693, %v2681, %v2696
        %v2698 = vsel %vm2692, %v2695, %v2697
        %v2699 = vsel %vm2691, %v2678, %v2681
        %v2700 = vsel %vm2694, %v2687, 920167782
        %v2701 = vsel %vm2693, %v2684, %v2700
        %v2702 = vsel %vm2692, %v2699, %v2701
        %v2703 = vsel %vm2691, %v2681, %v2684
        %v2704 = vsel %vm2694, %v2690, 1326507024
        %v2705 = vsel %vm2693, %v2687, %v2704
        %v2706 = vsel %vm2692, %v2703, %v2705
        %v2707 = vshll.u32 %v2667, 8
        %v2708 = vand.u32 %v2707, 65535
        %v2709 = vshrl.u32 %v2707, 16
        %v2710 = vand.u32 %v2706, 65535
        %v2711 = vshrl.u32 %v2706, 16
        %v2712 = vmul.u32 %v2708, %v2710
        %v2713 = vmul.u32 %v2708, %v2711
        %v2714 = vmul.u32 %v2709, %v2710
        %v2715 = vmul.u32 %v2709, %v2711
        %v2716 = vshll.u32 %v2713, 16
        %v2717 = vshrl.u32 %v2713, 16
        %v2718 = vshll.u32 %v2714, 16
        %v2719 = vshrl.u32 %v2714, 16
        %vm2720 = vc.u32 %v2712, %v2716
        %v2721 = vsel %vm2720, 1, 0
        %v2722 = vadd.s32 %v2712, %v2716
        %v2723 = vadd.s32 %v2715, %v2721
        %vm2724 = vc.u32 %v2722, %v2718
        %v2725 = vsel %vm2724, 1, 0
        %v2726 = vadd.s32 %v2722, %v2718
        %v2727 = vadd.s32 %v2723, %v2725
        %v2728 = vadd.s32 %v2727, %v2717
        %v2729 = vadd.s32 %v2728, %v2719
        %v2730 = vand.u32 %v2707, 65535
        %v2731 = vshrl.u32 %v2707, 16
        %v2732 = vand.u32 %v2702, 65535
        %v2733 = vshrl.u32 %v2702, 16
        %v2734 = vmul.u32 %v2730, %v2732
        %v2735 = vmul.u32 %v2730, %v2733
        %v2736 = vmul.u32 %v2731, %v2732
        %v2737 = vmul.u32 %v2731, %v2733
        %v2738 = vshll.u32 %v2735, 16
        %v2739 = vshrl.u32 %v2735, 16
        %v2740 = vshll.u32 %v2736, 16
        %v2741 = vshrl.u32 %v2736, 16
        %vm2742 = vc.u32 %v2734, %v2738
        %v2743 = vsel %vm2742, 1, 0
        %v2744 = vadd.s32 %v2734, %v2738
        %v2745 = vadd.s32 %v2737, %v2743
        %vm2746 = vc.u32 %v2744, %v2740
        %v2747 = vsel %vm2746, 1, 0
        %v2748 = vadd.s32 %v2744, %v2740
        %v2749 = vadd.s32 %v2745, %v2747
        %v2750 = vadd.s32 %v2749, %v2739
        %v2751 = vadd.s32 %v2750, %v2741
        %v2752 = vmul.u32 %v2707, %v2698
        %v2753 = vadd.s32 %v2729, %v2748
        %vm2754 = vc.u32 %v2729, %v2748
        %v2755 = vadd.s32 %v2751, 1
        %v2756 = vsel %vm2754, %v2755, %v2751
        %v2757 = vadd.s32 %v2752, %v2756
        %v2758 = vadd.s32 %v2757, 536870912
        %v2759 = vshrl.u32 %v2758, 30
        %v2760 = vshll.u32 %v2759, 30
        %v2761 = vsub.s32 %v2757, %v2760
        %vm2762 = vcmp.lt.s32.totalorder %v2761, 0
        %v2763 = vsub.s32 0, %v2761
        %v2764 = vsel %vm2762, %v2763, %v2761
        %v2765 = vclz %v2764
        %v2766 = vsub.s32 %v2765, 2
        %vm2767 = vcmp.gt.s32.totalorder 0, %v2766
        %v2768 = vsel %vm2767, 0, %v2766
        %v2769 = vsub.s32 32, %v2768
        %v2770 = vshll.u32 %v2761, %v2768
        %v2771 = vshrl.u32 %v2753, %v2769
        %v2772 = vor.u32 %v2770, %v2771
        %v2773 = vsub.s32 4294967266, %v2768
        %v2774 = vadd.s32 %v2773, 127
        %v2775 = vshll.u32 %v2774, 23
        %v2776 = vor.u32 4788187, %v2775
        %v2777 = vand.u32 2147483647, %v2776
        %v2779 = vcvt.s32.f32 %v2772
        %v2780 = vmul.f32 %v2779, %v2777
        %v2781 = vxor.u32 %v2780, 2147483648
        %v2782 = vsel %vm2661, %v2781, %v2780
        %v2783 = vsub.s32 4, %v2759
        %v2784 = vsel %vm2661, %v2783, %v2759
        %v2785 = vsel %vm2660, %v333, %v2782
        %v2786 = vsel %vm2660, 0, %v2784
        %v2787 = vmul.f32 %v2785, %v2785
        %v2788 = vmul.f32 %v2787, -0.001358992
        %v2789 = vadd.f32 %v2788, 0.041655596
        %v2790 = vmul.f32 %v2787, %v2789
        %v2791 = vadd.f32 %v2790, -0.4999988
        %v2792 = vmul.f32 %v2787, %v2791
        %v2793 = vadd.f32 1.0, %v2792
        %v2794 = vmul.f32 %v2785, %v2785
        %v2795 = vmul.f32 %v2794, -0.00019511016
        %v2796 = vadd.f32 %v2795, 0.008332121
        %v2797 = vmul.f32 %v2794, %v2796
        %v2798 = vadd.f32 %v2797, -0.16666654
        %v2799 = vmul.f32 %v2794, %v2798
        %v2800 = vadd.f32 %v2799, 1.0
        %v2801 = vmul.f32 %v2800, %v2785
        %vm2802 = vweird.f32 %v333
        %v2803 = vadd.s32 %v2786, 3
        %v2804 = vand.u32 %v2803, 3
        %vm2805 = vcmp.lt.s32.totalorder %v2804, 2
        %vm2806 = vcmp.eq.s32.totalorder %v2804, 0
        %v2807 = vxor.u32 %v2801, 2147483648
        %v2808 = vsel %vm2806, %v2793, %v2807
        %vm2809 = vcmp.eq.s32.totalorder %v2804, 2
        %v2810 = vxor.u32 %v2793, 2147483648
        %v2811 = vsel %vm2809, %v2810, %v2801
        %v2812 = vsel %vm2805, %v2808, %v2811
        %v2813 = vsel %vm2802, nan, %v2812
        %2814 = vst [vmem:[%s188] sm:$0xff] %v488
        %2815 = vst [vmem:[%s188 + $0x8] sm:$0xff] %v643
        %2816 = vst [vmem:[%s188 + $0x10] sm:$0xff] %v798
        %2817 = vst [vmem:[%s188 + $0x18] sm:$0xff] %v953
        %2818 = vst [vmem:[%s188 + $0x20] sm:$0xff] %v1108
        %2819 = vst [vmem:[%s188 + $0x28] sm:$0xff] %v1263
        %2820 = vst [vmem:[%s188 + $0x30] sm:$0xff] %v1418
        %2821 = vst [vmem:[%s188 + $0x38] sm:$0xff] %v1573
        %2822 = vst [vmem:[%s188 + $0x40] sm:$0xff] %v1728
        %2823 = vst [vmem:[%s188 + $0x48] sm:$0xff] %v1883
        %2824 = vst [vmem:[%s188 + $0x50] sm:$0xff] %v2038
        %2825 = vst [vmem:[%s188 + $0x58] sm:$0xff] %v2193
        %2826 = vst [vmem:[%s188 + $0x60] sm:$0xff] %v2348
        %2827 = vst [vmem:[%s188 + $0x68] sm:$0xff] %v2503
        %2828 = vst [vmem:[%s188 + $0x70] sm:$0xff] %v2658
        %2829 = vst [vmem:[%s188 + $0x78] sm:$0xff] %v2813
        %s2830 = scalar_lea.vmem %s197, 1
        %v2831 = vld [vmem:[%s2830] ss:$2 sm:$0x3]
        %v2833 = vperm.slane %v2831, 0
        %v2834 = vperm.slane %v2831, 1
        %v2837 = vmul.f32 %v2833, %v225
        %v2838 = vmul.f32 %v2834, %v225
        %v2839 = vmul.f32 %v2833, %v230
        %v2840 = vmul.f32 %v2834, %v230
        %v2841 = vmul.f32 %v2833, %v235
        %v2842 = vmul.f32 %v2834, %v235
        %v2843 = vmul.f32 %v2833, %v240
        %v2844 = vmul.f32 %v2834, %v240
        %v2845 = vmul.f32 %v2833, %v245
        %v2846 = vmul.f32 %v2834, %v245
        %v2847 = vmul.f32 %v2833, %v250
        %v2848 = vmul.f32 %v2834, %v250
        %v2849 = vmul.f32 %v2833, %v255
        %v2850 = vmul.f32 %v2834, %v255
        %v2851 = vmul.f32 %v2833, %v260
        %v2852 = vmul.f32 %v2834, %v260
        %v2853 = vadd.f32 %v2837, %v281
        %v2854 = vadd.f32 %v2838, %v281
        %v2855 = vadd.f32 %v2839, %v286
        %v2856 = vadd.f32 %v2840, %v286
        %v2857 = vadd.f32 %v2841, %v291
        %v2858 = vadd.f32 %v2842, %v291
        %v2859 = vadd.f32 %v2843, %v296
        %v2860 = vadd.f32 %v2844, %v296
        %v2861 = vadd.f32 %v2845, %v301
        %v2862 = vadd.f32 %v2846, %v301
        %v2863 = vadd.f32 %v2847, %v306
        %v2864 = vadd.f32 %v2848, %v306
        %v2865 = vadd.f32 %v2849, %v311
        %v2866 = vadd.f32 %v2850, %v311
        %v2867 = vadd.f32 %v2851, %v316
        %v2868 = vadd.f32 %v2852, %v316
        %v2869 = vand.u32 2147483647, %v2853
        %vm2870 = vcmp.le.f32.partialorder %v2869, 0.7853982
        %vm2871 = vcmp.lt.s32.totalorder %v2853, 0
        %v2872 = vand.u32 %v2853, 2139095040
        %v2873 = vshrl.u32 %v2872, 23
        %v2874 = vsub.s32 %v2873, 127
        %v2875 = vand.u32 2147483647, %v2853
        %v2876 = vand.u32 %v2875, 8388607
        %v2877 = vor.u32 %v2876, 8388608
        %v2878 = vsub.s32 0, %v2877
        %v2879 = vadd.s32 %v2874, 1
        %vm2880 = vcmp.gt.s32.totalorder %v2879, 0
        %v2881 = vsel %vm2880, %v2879, 0
        %v2882 = vshrl.u32 %v2881, 5
        %v2883 = vand.u32 %v2881, 31
        %v2884 = vsub.s32 32, %v2883
        %v2885 = vshrl.u32 683565275, %v2884
        %v2886 = vshll.u32 683565275, %v2883
        %v2887 = vshrl.u32 2475754826, %v2884
        %v2888 = vor.u32 %v2886, %v2887
        %v2889 = vshll.u32 2475754826, %v2883
        %v2890 = vshrl.u32 2131351028, %v2884
        %v2891 = vor.u32 %v2889, %v2890
        %v2892 = vshll.u32 2131351028, %v2883
        %v2893 = vshrl.u32 2102212464, %v2884
        %v2894 = vor.u32 %v2892, %v2893
        %v2895 = vshll.u32 2102212464, %v2883
        %v2896 = vshrl.u32 920167782, %v2884
        %v2897 = vor.u32 %v2895, %v2896
        %v2898 = vshll.u32 920167782, %v2883
        %v2899 = vshrl.u32 1326507024, %v2884
        %v2900 = vor.u32 %v2898, %v2899
        %vm2901 = vcmp.lt.s32.totalorder %v2882, 1
        %vm2902 = vcmp.lt.s32.totalorder %v2882, 2
        %vm2903 = vcmp.lt.s32.totalorder %v2882, 3
        %vm2904 = vcmp.lt.s32.totalorder %v2882, 4
        %v2905 = vsel %vm2901, %v2885, %v2888
        %v2906 = vsel %vm2904, %v2894, 2102212464
        %v2907 = vsel %vm2903, %v2891, %v2906
        %v2908 = vsel %vm2902, %v2905, %v2907
        %v2909 = vsel %vm2901, %v2888, %v2891
        %v2910 = vsel %vm2904, %v2897, 920167782
        %v2911 = vsel %vm2903, %v2894, %v2910
        %v2912 = vsel %vm2902, %v2909, %v2911
        %v2913 = vsel %vm2901, %v2891, %v2894
        %v2914 = vsel %vm2904, %v2900, 1326507024
        %v2915 = vsel %vm2903, %v2897, %v2914
        %v2916 = vsel %vm2902, %v2913, %v2915
        %v2917 = vshll.u32 %v2877, 8
        %v2918 = vand.u32 %v2917, 65535
        %v2919 = vshrl.u32 %v2917, 16
        %v2920 = vand.u32 %v2916, 65535
        %v2921 = vshrl.u32 %v2916, 16
        %v2922 = vmul.u32 %v2918, %v2920
        %v2923 = vmul.u32 %v2918, %v2921
        %v2924 = vmul.u32 %v2919, %v2920
        %v2925 = vmul.u32 %v2919, %v2921
        %v2926 = vshll.u32 %v2923, 16
        %v2927 = vshrl.u32 %v2923, 16
        %v2928 = vshll.u32 %v2924, 16
        %v2929 = vshrl.u32 %v2924, 16
        %vm2930 = vc.u32 %v2922, %v2926
        %v2931 = vsel %vm2930, 1, 0
        %v2932 = vadd.s32 %v2922, %v2926
        %v2933 = vadd.s32 %v2925, %v2931
        %vm2934 = vc.u32 %v2932, %v2928
        %v2935 = vsel %vm2934, 1, 0
        %v2936 = vadd.s32 %v2932, %v2928
        %v2937 = vadd.s32 %v2933, %v2935
        %v2938 = vadd.s32 %v2937, %v2927
        %v2939 = vadd.s32 %v2938, %v2929
        %v2940 = vand.u32 %v2917, 65535
        %v2941 = vshrl.u32 %v2917, 16
        %v2942 = vand.u32 %v2912, 65535
        %v2943 = vshrl.u32 %v2912, 16
        %v2944 = vmul.u32 %v2940, %v2942
        %v2945 = vmul.u32 %v2940, %v2943
        %v2946 = vmul.u32 %v2941, %v2942
        %v2947 = vmul.u32 %v2941, %v2943
        %v2948 = vshll.u32 %v2945, 16
        %v2949 = vshrl.u32 %v2945, 16
        %v2950 = vshll.u32 %v2946, 16
        %v2951 = vshrl.u32 %v2946, 16
        %vm2952 = vc.u32 %v2944, %v2948
        %v2953 = vsel %vm2952, 1, 0
        %v2954 = vadd.s32 %v2944, %v2948
        %v2955 = vadd.s32 %v2947, %v2953
        %vm2956 = vc.u32 %v2954, %v2950
        %v2957 = vsel %vm2956, 1, 0
        %v2958 = vadd.s32 %v2954, %v2950
        %v2959 = vadd.s32 %v2955, %v2957
        %v2960 = vadd.s32 %v2959, %v2949
        %v2961 = vadd.s32 %v2960, %v2951
        %v2962 = vmul.u32 %v2917, %v2908
        %v2963 = vadd.s32 %v2939, %v2958
        %vm2964 = vc.u32 %v2939, %v2958
        %v2965 = vadd.s32 %v2961, 1
        %v2966 = vsel %vm2964, %v2965, %v2961
        %v2967 = vadd.s32 %v2962, %v2966
        %v2968 = vadd.s32 %v2967, 536870912
        %v2969 = vshrl.u32 %v2968, 30
        %v2970 = vshll.u32 %v2969, 30
        %v2971 = vsub.s32 %v2967, %v2970
        %vm2972 = vcmp.lt.s32.totalorder %v2971, 0
        %v2973 = vsub.s32 0, %v2971
        %v2974 = vsel %vm2972, %v2973, %v2971
        %v2975 = vclz %v2974
        %v2976 = vsub.s32 %v2975, 2
        %vm2977 = vcmp.gt.s32.totalorder 0, %v2976
        %v2978 = vsel %vm2977, 0, %v2976
        %v2979 = vsub.s32 32, %v2978
        %v2980 = vshll.u32 %v2971, %v2978
        %v2981 = vshrl.u32 %v2963, %v2979
        %v2982 = vor.u32 %v2980, %v2981
        %v2983 = vsub.s32 4294967266, %v2978
        %v2984 = vadd.s32 %v2983, 127
        %v2985 = vshll.u32 %v2984, 23
        %v2986 = vor.u32 4788187, %v2985
        %v2987 = vand.u32 2147483647, %v2986
        %v2989 = vcvt.s32.f32 %v2982
        %v2990 = vmul.f32 %v2989, %v2987
        %v2991 = vxor.u32 %v2990, 2147483648
        %v2992 = vsel %vm2871, %v2991, %v2990
        %v2993 = vsub.s32 4, %v2969
        %v2994 = vsel %vm2871, %v2993, %v2969
        %v2995 = vsel %vm2870, %v2853, %v2992
        %v2996 = vsel %vm2870, 0, %v2994
        %v2997 = vmul.f32 %v2995, %v2995
        %v2998 = vmul.f32 %v2997, -0.001358992
        %v2999 = vadd.f32 %v2998, 0.041655596
        %v3000 = vmul.f32 %v2997, %v2999
        %v3001 = vadd.f32 %v3000, -0.4999988
        %v3002 = vmul.f32 %v2997, %v3001
        %v3003 = vadd.f32 1.0, %v3002
        %v3004 = vmul.f32 %v2995, %v2995
        %v3005 = vmul.f32 %v3004, -0.00019511016
        %v3006 = vadd.f32 %v3005, 0.008332121
        %v3007 = vmul.f32 %v3004, %v3006
        %v3008 = vadd.f32 %v3007, -0.16666654
        %v3009 = vmul.f32 %v3004, %v3008
        %v3010 = vadd.f32 %v3009, 1.0
        %v3011 = vmul.f32 %v3010, %v2995
        %vm3012 = vweird.f32 %v2853
        %v3013 = vadd.s32 %v2996, 3
        %v3014 = vand.u32 %v3013, 3
        %vm3015 = vcmp.lt.s32.totalorder %v3014, 2
        %vm3016 = vcmp.eq.s32.totalorder %v3014, 0
        %v3017 = vxor.u32 %v3011, 2147483648
        %v3018 = vsel %vm3016, %v3003, %v3017
        %vm3019 = vcmp.eq.s32.totalorder %v3014, 2
        %v3020 = vxor.u32 %v3003, 2147483648
        %v3021 = vsel %vm3019, %v3020, %v3011
        %v3022 = vsel %vm3015, %v3018, %v3021
        %v3023 = vsel %vm3012, nan, %v3022
        %v3024 = vand.u32 2147483647, %v2854
        %vm3025 = vcmp.le.f32.partialorder %v3024, 0.7853982
        %vm3026 = vcmp.lt.s32.totalorder %v2854, 0
        %v3027 = vand.u32 %v2854, 2139095040
        %v3028 = vshrl.u32 %v3027, 23
        %v3029 = vsub.s32 %v3028, 127
        %v3030 = vand.u32 2147483647, %v2854
        %v3031 = vand.u32 %v3030, 8388607
        %v3032 = vor.u32 %v3031, 8388608
        %v3033 = vsub.s32 0, %v3032
        %v3034 = vadd.s32 %v3029, 1
        %vm3035 = vcmp.gt.s32.totalorder %v3034, 0
        %v3036 = vsel %vm3035, %v3034, 0
        %v3037 = vshrl.u32 %v3036, 5
        %v3038 = vand.u32 %v3036, 31
        %v3039 = vsub.s32 32, %v3038
        %v3040 = vshrl.u32 683565275, %v3039
        %v3041 = vshll.u32 683565275, %v3038
        %v3042 = vshrl.u32 2475754826, %v3039
        %v3043 = vor.u32 %v3041, %v3042
        %v3044 = vshll.u32 2475754826, %v3038
        %v3045 = vshrl.u32 2131351028, %v3039
        %v3046 = vor.u32 %v3044, %v3045
        %v3047 = vshll.u32 2131351028, %v3038
        %v3048 = vshrl.u32 2102212464, %v3039
        %v3049 = vor.u32 %v3047, %v3048
        %v3050 = vshll.u32 2102212464, %v3038
        %v3051 = vshrl.u32 920167782, %v3039
        %v3052 = vor.u32 %v3050, %v3051
        %v3053 = vshll.u32 920167782, %v3038
        %v3054 = vshrl.u32 1326507024, %v3039
        %v3055 = vor.u32 %v3053, %v3054
        %vm3056 = vcmp.lt.s32.totalorder %v3037, 1
        %vm3057 = vcmp.lt.s32.totalorder %v3037, 2
        %vm3058 = vcmp.lt.s32.totalorder %v3037, 3
        %vm3059 = vcmp.lt.s32.totalorder %v3037, 4
        %v3060 = vsel %vm3056, %v3040, %v3043
        %v3061 = vsel %vm3059, %v3049, 2102212464
        %v3062 = vsel %vm3058, %v3046, %v3061
        %v3063 = vsel %vm3057, %v3060, %v3062
        %v3064 = vsel %vm3056, %v3043, %v3046
        %v3065 = vsel %vm3059, %v3052, 920167782
        %v3066 = vsel %vm3058, %v3049, %v3065
        %v3067 = vsel %vm3057, %v3064, %v3066
        %v3068 = vsel %vm3056, %v3046, %v3049
        %v3069 = vsel %vm3059, %v3055, 1326507024
        %v3070 = vsel %vm3058, %v3052, %v3069
        %v3071 = vsel %vm3057, %v3068, %v3070
        %v3072 = vshll.u32 %v3032, 8
        %v3073 = vand.u32 %v3072, 65535
        %v3074 = vshrl.u32 %v3072, 16
        %v3075 = vand.u32 %v3071, 65535
        %v3076 = vshrl.u32 %v3071, 16
        %v3077 = vmul.u32 %v3073, %v3075
        %v3078 = vmul.u32 %v3073, %v3076
        %v3079 = vmul.u32 %v3074, %v3075
        %v3080 = vmul.u32 %v3074, %v3076
        %v3081 = vshll.u32 %v3078, 16
        %v3082 = vshrl.u32 %v3078, 16
        %v3083 = vshll.u32 %v3079, 16
        %v3084 = vshrl.u32 %v3079, 16
        %vm3085 = vc.u32 %v3077, %v3081
        %v3086 = vsel %vm3085, 1, 0
        %v3087 = vadd.s32 %v3077, %v3081
        %v3088 = vadd.s32 %v3080, %v3086
        %vm3089 = vc.u32 %v3087, %v3083
        %v3090 = vsel %vm3089, 1, 0
        %v3091 = vadd.s32 %v3087, %v3083
        %v3092 = vadd.s32 %v3088, %v3090
        %v3093 = vadd.s32 %v3092, %v3082
        %v3094 = vadd.s32 %v3093, %v3084
        %v3095 = vand.u32 %v3072, 65535
        %v3096 = vshrl.u32 %v3072, 16
        %v3097 = vand.u32 %v3067, 65535
        %v3098 = vshrl.u32 %v3067, 16
        %v3099 = vmul.u32 %v3095, %v3097
        %v3100 = vmul.u32 %v3095, %v3098
        %v3101 = vmul.u32 %v3096, %v3097
        %v3102 = vmul.u32 %v3096, %v3098
        %v3103 = vshll.u32 %v3100, 16
        %v3104 = vshrl.u32 %v3100, 16
        %v3105 = vshll.u32 %v3101, 16
        %v3106 = vshrl.u32 %v3101, 16
        %vm3107 = vc.u32 %v3099, %v3103
        %v3108 = vsel %vm3107, 1, 0
        %v3109 = vadd.s32 %v3099, %v3103
        %v3110 = vadd.s32 %v3102, %v3108
        %vm3111 = vc.u32 %v3109, %v3105
        %v3112 = vsel %vm3111, 1, 0
        %v3113 = vadd.s32 %v3109, %v3105
        %v3114 = vadd.s32 %v3110, %v3112
        %v3115 = vadd.s32 %v3114, %v3104
        %v3116 = vadd.s32 %v3115, %v3106
        %v3117 = vmul.u32 %v3072, %v3063
        %v3118 = vadd.s32 %v3094, %v3113
        %vm3119 = vc.u32 %v3094, %v3113
        %v3120 = vadd.s32 %v3116, 1
        %v3121 = vsel %vm3119, %v3120, %v3116
        %v3122 = vadd.s32 %v3117, %v3121
        %v3123 = vadd.s32 %v3122, 536870912
        %v3124 = vshrl.u32 %v3123, 30
        %v3125 = vshll.u32 %v3124, 30
        %v3126 = vsub.s32 %v3122, %v3125
        %vm3127 = vcmp.lt.s32.totalorder %v3126, 0
        %v3128 = vsub.s32 0, %v3126
        %v3129 = vsel %vm3127, %v3128, %v3126
        %v3130 = vclz %v3129
        %v3131 = vsub.s32 %v3130, 2
        %vm3132 = vcmp.gt.s32.totalorder 0, %v3131
        %v3133 = vsel %vm3132, 0, %v3131
        %v3134 = vsub.s32 32, %v3133
        %v3135 = vshll.u32 %v3126, %v3133
        %v3136 = vshrl.u32 %v3118, %v3134
        %v3137 = vor.u32 %v3135, %v3136
        %v3138 = vsub.s32 4294967266, %v3133
        %v3139 = vadd.s32 %v3138, 127
        %v3140 = vshll.u32 %v3139, 23
        %v3141 = vor.u32 4788187, %v3140
        %v3142 = vand.u32 2147483647, %v3141
        %v3144 = vcvt.s32.f32 %v3137
        %v3145 = vmul.f32 %v3144, %v3142
        %v3146 = vxor.u32 %v3145, 2147483648
        %v3147 = vsel %vm3026, %v3146, %v3145
        %v3148 = vsub.s32 4, %v3124
        %v3149 = vsel %vm3026, %v3148, %v3124
        %v3150 = vsel %vm3025, %v2854, %v3147
        %v3151 = vsel %vm3025, 0, %v3149
        %v3152 = vmul.f32 %v3150, %v3150
        %v3153 = vmul.f32 %v3152, -0.001358992
        %v3154 = vadd.f32 %v3153, 0.041655596
        %v3155 = vmul.f32 %v3152, %v3154
        %v3156 = vadd.f32 %v3155, -0.4999988
        %v3157 = vmul.f32 %v3152, %v3156
        %v3158 = vadd.f32 1.0, %v3157
        %v3159 = vmul.f32 %v3150, %v3150
        %v3160 = vmul.f32 %v3159, -0.00019511016
        %v3161 = vadd.f32 %v3160, 0.008332121
        %v3162 = vmul.f32 %v3159, %v3161
        %v3163 = vadd.f32 %v3162, -0.16666654
        %v3164 = vmul.f32 %v3159, %v3163
        %v3165 = vadd.f32 %v3164, 1.0
        %v3166 = vmul.f32 %v3165, %v3150
        %vm3167 = vweird.f32 %v2854
        %v3168 = vadd.s32 %v3151, 3
        %v3169 = vand.u32 %v3168, 3
        %vm3170 = vcmp.lt.s32.totalorder %v3169, 2
        %vm3171 = vcmp.eq.s32.totalorder %v3169, 0
        %v3172 = vxor.u32 %v3166, 2147483648
        %v3173 = vsel %vm3171, %v3158, %v3172
        %vm3174 = vcmp.eq.s32.totalorder %v3169, 2
        %v3175 = vxor.u32 %v3158, 2147483648
        %v3176 = vsel %vm3174, %v3175, %v3166
        %v3177 = vsel %vm3170, %v3173, %v3176
        %v3178 = vsel %vm3167, nan, %v3177
        %v3179 = vand.u32 2147483647, %v2855
        %vm3180 = vcmp.le.f32.partialorder %v3179, 0.7853982
        %vm3181 = vcmp.lt.s32.totalorder %v2855, 0
        %v3182 = vand.u32 %v2855, 2139095040
        %v3183 = vshrl.u32 %v3182, 23
        %v3184 = vsub.s32 %v3183, 127
        %v3185 = vand.u32 2147483647, %v2855
        %v3186 = vand.u32 %v3185, 8388607
        %v3187 = vor.u32 %v3186, 8388608
        %v3188 = vsub.s32 0, %v3187
        %v3189 = vadd.s32 %v3184, 1
        %vm3190 = vcmp.gt.s32.totalorder %v3189, 0
        %v3191 = vsel %vm3190, %v3189, 0
        %v3192 = vshrl.u32 %v3191, 5
        %v3193 = vand.u32 %v3191, 31
        %v3194 = vsub.s32 32, %v3193
        %v3195 = vshrl.u32 683565275, %v3194
        %v3196 = vshll.u32 683565275, %v3193
        %v3197 = vshrl.u32 2475754826, %v3194
        %v3198 = vor.u32 %v3196, %v3197
        %v3199 = vshll.u32 2475754826, %v3193
        %v3200 = vshrl.u32 2131351028, %v3194
        %v3201 = vor.u32 %v3199, %v3200
        %v3202 = vshll.u32 2131351028, %v3193
        %v3203 = vshrl.u32 2102212464, %v3194
        %v3204 = vor.u32 %v3202, %v3203
        %v3205 = vshll.u32 2102212464, %v3193
        %v3206 = vshrl.u32 920167782, %v3194
        %v3207 = vor.u32 %v3205, %v3206
        %v3208 = vshll.u32 920167782, %v3193
        %v3209 = vshrl.u32 1326507024, %v3194
        %v3210 = vor.u32 %v3208, %v3209
        %vm3211 = vcmp.lt.s32.totalorder %v3192, 1
        %vm3212 = vcmp.lt.s32.totalorder %v3192, 2
        %vm3213 = vcmp.lt.s32.totalorder %v3192, 3
        %vm3214 = vcmp.lt.s32.totalorder %v3192, 4
        %v3215 = vsel %vm3211, %v3195, %v3198
        %v3216 = vsel %vm3214, %v3204, 2102212464
        %v3217 = vsel %vm3213, %v3201, %v3216
        %v3218 = vsel %vm3212, %v3215, %v3217
        %v3219 = vsel %vm3211, %v3198, %v3201
        %v3220 = vsel %vm3214, %v3207, 920167782
        %v3221 = vsel %vm3213, %v3204, %v3220
        %v3222 = vsel %vm3212, %v3219, %v3221
        %v3223 = vsel %vm3211, %v3201, %v3204
        %v3224 = vsel %vm3214, %v3210, 1326507024
        %v3225 = vsel %vm3213, %v3207, %v3224
        %v3226 = vsel %vm3212, %v3223, %v3225
        %v3227 = vshll.u32 %v3187, 8
        %v3228 = vand.u32 %v3227, 65535
        %v3229 = vshrl.u32 %v3227, 16
        %v3230 = vand.u32 %v3226, 65535
        %v3231 = vshrl.u32 %v3226, 16
        %v3232 = vmul.u32 %v3228, %v3230
        %v3233 = vmul.u32 %v3228, %v3231
        %v3234 = vmul.u32 %v3229, %v3230
        %v3235 = vmul.u32 %v3229, %v3231
        %v3236 = vshll.u32 %v3233, 16
        %v3237 = vshrl.u32 %v3233, 16
        %v3238 = vshll.u32 %v3234, 16
        %v3239 = vshrl.u32 %v3234, 16
        %vm3240 = vc.u32 %v3232, %v3236
        %v3241 = vsel %vm3240, 1, 0
        %v3242 = vadd.s32 %v3232, %v3236
        %v3243 = vadd.s32 %v3235, %v3241
        %vm3244 = vc.u32 %v3242, %v3238
        %v3245 = vsel %vm3244, 1, 0
        %v3246 = vadd.s32 %v3242, %v3238
        %v3247 = vadd.s32 %v3243, %v3245
        %v3248 = vadd.s32 %v3247, %v3237
        %v3249 = vadd.s32 %v3248, %v3239
        %v3250 = vand.u32 %v3227, 65535
        %v3251 = vshrl.u32 %v3227, 16
        %v3252 = vand.u32 %v3222, 65535
        %v3253 = vshrl.u32 %v3222, 16
        %v3254 = vmul.u32 %v3250, %v3252
        %v3255 = vmul.u32 %v3250, %v3253
        %v3256 = vmul.u32 %v3251, %v3252
        %v3257 = vmul.u32 %v3251, %v3253
        %v3258 = vshll.u32 %v3255, 16
        %v3259 = vshrl.u32 %v3255, 16
        %v3260 = vshll.u32 %v3256, 16
        %v3261 = vshrl.u32 %v3256, 16
        %vm3262 = vc.u32 %v3254, %v3258
        %v3263 = vsel %vm3262, 1, 0
        %v3264 = vadd.s32 %v3254, %v3258
        %v3265 = vadd.s32 %v3257, %v3263
        %vm3266 = vc.u32 %v3264, %v3260
        %v3267 = vsel %vm3266, 1, 0
        %v3268 = vadd.s32 %v3264, %v3260
        %v3269 = vadd.s32 %v3265, %v3267
        %v3270 = vadd.s32 %v3269, %v3259
        %v3271 = vadd.s32 %v3270, %v3261
        %v3272 = vmul.u32 %v3227, %v3218
        %v3273 = vadd.s32 %v3249, %v3268
        %vm3274 = vc.u32 %v3249, %v3268
        %v3275 = vadd.s32 %v3271, 1
        %v3276 = vsel %vm3274, %v3275, %v3271
        %v3277 = vadd.s32 %v3272, %v3276
        %v3278 = vadd.s32 %v3277, 536870912
        %v3279 = vshrl.u32 %v3278, 30
        %v3280 = vshll.u32 %v3279, 30
        %v3281 = vsub.s32 %v3277, %v3280
        %vm3282 = vcmp.lt.s32.totalorder %v3281, 0
        %v3283 = vsub.s32 0, %v3281
        %v3284 = vsel %vm3282, %v3283, %v3281
        %v3285 = vclz %v3284
        %v3286 = vsub.s32 %v3285, 2
        %vm3287 = vcmp.gt.s32.totalorder 0, %v3286
        %v3288 = vsel %vm3287, 0, %v3286
        %v3289 = vsub.s32 32, %v3288
        %v3290 = vshll.u32 %v3281, %v3288
        %v3291 = vshrl.u32 %v3273, %v3289
        %v3292 = vor.u32 %v3290, %v3291
        %v3293 = vsub.s32 4294967266, %v3288
        %v3294 = vadd.s32 %v3293, 127
        %v3295 = vshll.u32 %v3294, 23
        %v3296 = vor.u32 4788187, %v3295
        %v3297 = vand.u32 2147483647, %v3296
        %v3299 = vcvt.s32.f32 %v3292
        %v3300 = vmul.f32 %v3299, %v3297
        %v3301 = vxor.u32 %v3300, 2147483648
        %v3302 = vsel %vm3181, %v3301, %v3300
        %v3303 = vsub.s32 4, %v3279
        %v3304 = vsel %vm3181, %v3303, %v3279
        %v3305 = vsel %vm3180, %v2855, %v3302
        %v3306 = vsel %vm3180, 0, %v3304
        %v3307 = vmul.f32 %v3305, %v3305
        %v3308 = vmul.f32 %v3307, -0.001358992
        %v3309 = vadd.f32 %v3308, 0.041655596
        %v3310 = vmul.f32 %v3307, %v3309
        %v3311 = vadd.f32 %v3310, -0.4999988
        %v3312 = vmul.f32 %v3307, %v3311
        %v3313 = vadd.f32 1.0, %v3312
        %v3314 = vmul.f32 %v3305, %v3305
        %v3315 = vmul.f32 %v3314, -0.00019511016
        %v3316 = vadd.f32 %v3315, 0.008332121
        %v3317 = vmul.f32 %v3314, %v3316
        %v3318 = vadd.f32 %v3317, -0.16666654
        %v3319 = vmul.f32 %v3314, %v3318
        %v3320 = vadd.f32 %v3319, 1.0
        %v3321 = vmul.f32 %v3320, %v3305
        %vm3322 = vweird.f32 %v2855
        %v3323 = vadd.s32 %v3306, 3
        %v3324 = vand.u32 %v3323, 3
        %vm3325 = vcmp.lt.s32.totalorder %v3324, 2
        %vm3326 = vcmp.eq.s32.totalorder %v3324, 0
        %v3327 = vxor.u32 %v3321, 2147483648
        %v3328 = vsel %vm3326, %v3313, %v3327
        %vm3329 = vcmp.eq.s32.totalorder %v3324, 2
        %v3330 = vxor.u32 %v3313, 2147483648
        %v3331 = vsel %vm3329, %v3330, %v3321
        %v3332 = vsel %vm3325, %v3328, %v3331
        %v3333 = vsel %vm3322, nan, %v3332
        %v3334 = vand.u32 2147483647, %v2856
        %vm3335 = vcmp.le.f32.partialorder %v3334, 0.7853982
        %vm3336 = vcmp.lt.s32.totalorder %v2856, 0
        %v3337 = vand.u32 %v2856, 2139095040
        %v3338 = vshrl.u32 %v3337, 23
        %v3339 = vsub.s32 %v3338, 127
        %v3340 = vand.u32 2147483647, %v2856
        %v3341 = vand.u32 %v3340, 8388607
        %v3342 = vor.u32 %v3341, 8388608
        %v3343 = vsub.s32 0, %v3342
        %v3344 = vadd.s32 %v3339, 1
        %vm3345 = vcmp.gt.s32.totalorder %v3344, 0
        %v3346 = vsel %vm3345, %v3344, 0
        %v3347 = vshrl.u32 %v3346, 5
        %v3348 = vand.u32 %v3346, 31
        %v3349 = vsub.s32 32, %v3348
        %v3350 = vshrl.u32 683565275, %v3349
        %v3351 = vshll.u32 683565275, %v3348
        %v3352 = vshrl.u32 2475754826, %v3349
        %v3353 = vor.u32 %v3351, %v3352
        %v3354 = vshll.u32 2475754826, %v3348
        %v3355 = vshrl.u32 2131351028, %v3349
        %v3356 = vor.u32 %v3354, %v3355
        %v3357 = vshll.u32 2131351028, %v3348
        %v3358 = vshrl.u32 2102212464, %v3349
        %v3359 = vor.u32 %v3357, %v3358
        %v3360 = vshll.u32 2102212464, %v3348
        %v3361 = vshrl.u32 920167782, %v3349
        %v3362 = vor.u32 %v3360, %v3361
        %v3363 = vshll.u32 920167782, %v3348
        %v3364 = vshrl.u32 1326507024, %v3349
        %v3365 = vor.u32 %v3363, %v3364
        %vm3366 = vcmp.lt.s32.totalorder %v3347, 1
        %vm3367 = vcmp.lt.s32.totalorder %v3347, 2
        %vm3368 = vcmp.lt.s32.totalorder %v3347, 3
        %vm3369 = vcmp.lt.s32.totalorder %v3347, 4
        %v3370 = vsel %vm3366, %v3350, %v3353
        %v3371 = vsel %vm3369, %v3359, 2102212464
        %v3372 = vsel %vm3368, %v3356, %v3371
        %v3373 = vsel %vm3367, %v3370, %v3372
        %v3374 = vsel %vm3366, %v3353, %v3356
        %v3375 = vsel %vm3369, %v3362, 920167782
        %v3376 = vsel %vm3368, %v3359, %v3375
        %v3377 = vsel %vm3367, %v3374, %v3376
        %v3378 = vsel %vm3366, %v3356, %v3359
        %v3379 = vsel %vm3369, %v3365, 1326507024
        %v3380 = vsel %vm3368, %v3362, %v3379
        %v3381 = vsel %vm3367, %v3378, %v3380
        %v3382 = vshll.u32 %v3342, 8
        %v3383 = vand.u32 %v3382, 65535
        %v3384 = vshrl.u32 %v3382, 16
        %v3385 = vand.u32 %v3381, 65535
        %v3386 = vshrl.u32 %v3381, 16
        %v3387 = vmul.u32 %v3383, %v3385
        %v3388 = vmul.u32 %v3383, %v3386
        %v3389 = vmul.u32 %v3384, %v3385
        %v3390 = vmul.u32 %v3384, %v3386
        %v3391 = vshll.u32 %v3388, 16
        %v3392 = vshrl.u32 %v3388, 16
        %v3393 = vshll.u32 %v3389, 16
        %v3394 = vshrl.u32 %v3389, 16
        %vm3395 = vc.u32 %v3387, %v3391
        %v3396 = vsel %vm3395, 1, 0
        %v3397 = vadd.s32 %v3387, %v3391
        %v3398 = vadd.s32 %v3390, %v3396
        %vm3399 = vc.u32 %v3397, %v3393
        %v3400 = vsel %vm3399, 1, 0
        %v3401 = vadd.s32 %v3397, %v3393
        %v3402 = vadd.s32 %v3398, %v3400
        %v3403 = vadd.s32 %v3402, %v3392
        %v3404 = vadd.s32 %v3403, %v3394
        %v3405 = vand.u32 %v3382, 65535
        %v3406 = vshrl.u32 %v3382, 16
        %v3407 = vand.u32 %v3377, 65535
        %v3408 = vshrl.u32 %v3377, 16
        %v3409 = vmul.u32 %v3405, %v3407
        %v3410 = vmul.u32 %v3405, %v3408
        %v3411 = vmul.u32 %v3406, %v3407
        %v3412 = vmul.u32 %v3406, %v3408
        %v3413 = vshll.u32 %v3410, 16
        %v3414 = vshrl.u32 %v3410, 16
        %v3415 = vshll.u32 %v3411, 16
        %v3416 = vshrl.u32 %v3411, 16
        %vm3417 = vc.u32 %v3409, %v3413
        %v3418 = vsel %vm3417, 1, 0
        %v3419 = vadd.s32 %v3409, %v3413
        %v3420 = vadd.s32 %v3412, %v3418
        %vm3421 = vc.u32 %v3419, %v3415
        %v3422 = vsel %vm3421, 1, 0
        %v3423 = vadd.s32 %v3419, %v3415
        %v3424 = vadd.s32 %v3420, %v3422
        %v3425 = vadd.s32 %v3424, %v3414
        %v3426 = vadd.s32 %v3425, %v3416
        %v3427 = vmul.u32 %v3382, %v3373
        %v3428 = vadd.s32 %v3404, %v3423
        %vm3429 = vc.u32 %v3404, %v3423
        %v3430 = vadd.s32 %v3426, 1
        %v3431 = vsel %vm3429, %v3430, %v3426
        %v3432 = vadd.s32 %v3427, %v3431
        %v3433 = vadd.s32 %v3432, 536870912
        %v3434 = vshrl.u32 %v3433, 30
        %v3435 = vshll.u32 %v3434, 30
        %v3436 = vsub.s32 %v3432, %v3435
        %vm3437 = vcmp.lt.s32.totalorder %v3436, 0
        %v3438 = vsub.s32 0, %v3436
        %v3439 = vsel %vm3437, %v3438, %v3436
        %v3440 = vclz %v3439
        %v3441 = vsub.s32 %v3440, 2
        %vm3442 = vcmp.gt.s32.totalorder 0, %v3441
        %v3443 = vsel %vm3442, 0, %v3441
        %v3444 = vsub.s32 32, %v3443
        %v3445 = vshll.u32 %v3436, %v3443
        %v3446 = vshrl.u32 %v3428, %v3444
        %v3447 = vor.u32 %v3445, %v3446
        %v3448 = vsub.s32 4294967266, %v3443
        %v3449 = vadd.s32 %v3448, 127
        %v3450 = vshll.u32 %v3449, 23
        %v3451 = vor.u32 4788187, %v3450
        %v3452 = vand.u32 2147483647, %v3451
        %v3454 = vcvt.s32.f32 %v3447
        %v3455 = vmul.f32 %v3454, %v3452
        %v3456 = vxor.u32 %v3455, 2147483648
        %v3457 = vsel %vm3336, %v3456, %v3455
        %v3458 = vsub.s32 4, %v3434
        %v3459 = vsel %vm3336, %v3458, %v3434
        %v3460 = vsel %vm3335, %v2856, %v3457
        %v3461 = vsel %vm3335, 0, %v3459
        %v3462 = vmul.f32 %v3460, %v3460
        %v3463 = vmul.f32 %v3462, -0.001358992
        %v3464 = vadd.f32 %v3463, 0.041655596
        %v3465 = vmul.f32 %v3462, %v3464
        %v3466 = vadd.f32 %v3465, -0.4999988
        %v3467 = vmul.f32 %v3462, %v3466
        %v3468 = vadd.f32 1.0, %v3467
        %v3469 = vmul.f32 %v3460, %v3460
        %v3470 = vmul.f32 %v3469, -0.00019511016
        %v3471 = vadd.f32 %v3470, 0.008332121
        %v3472 = vmul.f32 %v3469, %v3471
        %v3473 = vadd.f32 %v3472, -0.16666654
        %v3474 = vmul.f32 %v3469, %v3473
        %v3475 = vadd.f32 %v3474, 1.0
        %v3476 = vmul.f32 %v3475, %v3460
        %vm3477 = vweird.f32 %v2856
        %v3478 = vadd.s32 %v3461, 3
        %v3479 = vand.u32 %v3478, 3
        %vm3480 = vcmp.lt.s32.totalorder %v3479, 2
        %vm3481 = vcmp.eq.s32.totalorder %v3479, 0
        %v3482 = vxor.u32 %v3476, 2147483648
        %v3483 = vsel %vm3481, %v3468, %v3482
        %vm3484 = vcmp.eq.s32.totalorder %v3479, 2
        %v3485 = vxor.u32 %v3468, 2147483648
        %v3486 = vsel %vm3484, %v3485, %v3476
        %v3487 = vsel %vm3480, %v3483, %v3486
        %v3488 = vsel %vm3477, nan, %v3487
        %v3489 = vand.u32 2147483647, %v2857
        %vm3490 = vcmp.le.f32.partialorder %v3489, 0.7853982
        %vm3491 = vcmp.lt.s32.totalorder %v2857, 0
        %v3492 = vand.u32 %v2857, 2139095040
        %v3493 = vshrl.u32 %v3492, 23
        %v3494 = vsub.s32 %v3493, 127
        %v3495 = vand.u32 2147483647, %v2857
        %v3496 = vand.u32 %v3495, 8388607
        %v3497 = vor.u32 %v3496, 8388608
        %v3498 = vsub.s32 0, %v3497
        %v3499 = vadd.s32 %v3494, 1
        %vm3500 = vcmp.gt.s32.totalorder %v3499, 0
        %v3501 = vsel %vm3500, %v3499, 0
        %v3502 = vshrl.u32 %v3501, 5
        %v3503 = vand.u32 %v3501, 31
        %v3504 = vsub.s32 32, %v3503
        %v3505 = vshrl.u32 683565275, %v3504
        %v3506 = vshll.u32 683565275, %v3503
        %v3507 = vshrl.u32 2475754826, %v3504
        %v3508 = vor.u32 %v3506, %v3507
        %v3509 = vshll.u32 2475754826, %v3503
        %v3510 = vshrl.u32 2131351028, %v3504
        %v3511 = vor.u32 %v3509, %v3510
        %v3512 = vshll.u32 2131351028, %v3503
        %v3513 = vshrl.u32 2102212464, %v3504
        %v3514 = vor.u32 %v3512, %v3513
        %v3515 = vshll.u32 2102212464, %v3503
        %v3516 = vshrl.u32 920167782, %v3504
        %v3517 = vor.u32 %v3515, %v3516
        %v3518 = vshll.u32 920167782, %v3503
        %v3519 = vshrl.u32 1326507024, %v3504
        %v3520 = vor.u32 %v3518, %v3519
        %vm3521 = vcmp.lt.s32.totalorder %v3502, 1
        %vm3522 = vcmp.lt.s32.totalorder %v3502, 2
        %vm3523 = vcmp.lt.s32.totalorder %v3502, 3
        %vm3524 = vcmp.lt.s32.totalorder %v3502, 4
        %v3525 = vsel %vm3521, %v3505, %v3508
        %v3526 = vsel %vm3524, %v3514, 2102212464
        %v3527 = vsel %vm3523, %v3511, %v3526
        %v3528 = vsel %vm3522, %v3525, %v3527
        %v3529 = vsel %vm3521, %v3508, %v3511
        %v3530 = vsel %vm3524, %v3517, 920167782
        %v3531 = vsel %vm3523, %v3514, %v3530
        %v3532 = vsel %vm3522, %v3529, %v3531
        %v3533 = vsel %vm3521, %v3511, %v3514
        %v3534 = vsel %vm3524, %v3520, 1326507024
        %v3535 = vsel %vm3523, %v3517, %v3534
        %v3536 = vsel %vm3522, %v3533, %v3535
        %v3537 = vshll.u32 %v3497, 8
        %v3538 = vand.u32 %v3537, 65535
        %v3539 = vshrl.u32 %v3537, 16
        %v3540 = vand.u32 %v3536, 65535
        %v3541 = vshrl.u32 %v3536, 16
        %v3542 = vmul.u32 %v3538, %v3540
        %v3543 = vmul.u32 %v3538, %v3541
        %v3544 = vmul.u32 %v3539, %v3540
        %v3545 = vmul.u32 %v3539, %v3541
        %v3546 = vshll.u32 %v3543, 16
        %v3547 = vshrl.u32 %v3543, 16
        %v3548 = vshll.u32 %v3544, 16
        %v3549 = vshrl.u32 %v3544, 16
        %vm3550 = vc.u32 %v3542, %v3546
        %v3551 = vsel %vm3550, 1, 0
        %v3552 = vadd.s32 %v3542, %v3546
        %v3553 = vadd.s32 %v3545, %v3551
        %vm3554 = vc.u32 %v3552, %v3548
        %v3555 = vsel %vm3554, 1, 0
        %v3556 = vadd.s32 %v3552, %v3548
        %v3557 = vadd.s32 %v3553, %v3555
        %v3558 = vadd.s32 %v3557, %v3547
        %v3559 = vadd.s32 %v3558, %v3549
        %v3560 = vand.u32 %v3537, 65535
        %v3561 = vshrl.u32 %v3537, 16
        %v3562 = vand.u32 %v3532, 65535
        %v3563 = vshrl.u32 %v3532, 16
        %v3564 = vmul.u32 %v3560, %v3562
        %v3565 = vmul.u32 %v3560, %v3563
        %v3566 = vmul.u32 %v3561, %v3562
        %v3567 = vmul.u32 %v3561, %v3563
        %v3568 = vshll.u32 %v3565, 16
        %v3569 = vshrl.u32 %v3565, 16
        %v3570 = vshll.u32 %v3566, 16
        %v3571 = vshrl.u32 %v3566, 16
        %vm3572 = vc.u32 %v3564, %v3568
        %v3573 = vsel %vm3572, 1, 0
        %v3574 = vadd.s32 %v3564, %v3568
        %v3575 = vadd.s32 %v3567, %v3573
        %vm3576 = vc.u32 %v3574, %v3570
        %v3577 = vsel %vm3576, 1, 0
        %v3578 = vadd.s32 %v3574, %v3570
        %v3579 = vadd.s32 %v3575, %v3577
        %v3580 = vadd.s32 %v3579, %v3569
        %v3581 = vadd.s32 %v3580, %v3571
        %v3582 = vmul.u32 %v3537, %v3528
        %v3583 = vadd.s32 %v3559, %v3578
        %vm3584 = vc.u32 %v3559, %v3578
        %v3585 = vadd.s32 %v3581, 1
        %v3586 = vsel %vm3584, %v3585, %v3581
        %v3587 = vadd.s32 %v3582, %v3586
        %v3588 = vadd.s32 %v3587, 536870912
        %v3589 = vshrl.u32 %v3588, 30
        %v3590 = vshll.u32 %v3589, 30
        %v3591 = vsub.s32 %v3587, %v3590
        %vm3592 = vcmp.lt.s32.totalorder %v3591, 0
        %v3593 = vsub.s32 0, %v3591
        %v3594 = vsel %vm3592, %v3593, %v3591
        %v3595 = vclz %v3594
        %v3596 = vsub.s32 %v3595, 2
        %vm3597 = vcmp.gt.s32.totalorder 0, %v3596
        %v3598 = vsel %vm3597, 0, %v3596
        %v3599 = vsub.s32 32, %v3598
        %v3600 = vshll.u32 %v3591, %v3598
        %v3601 = vshrl.u32 %v3583, %v3599
        %v3602 = vor.u32 %v3600, %v3601
        %v3603 = vsub.s32 4294967266, %v3598
        %v3604 = vadd.s32 %v3603, 127
        %v3605 = vshll.u32 %v3604, 23
        %v3606 = vor.u32 4788187, %v3605
        %v3607 = vand.u32 2147483647, %v3606
        %v3609 = vcvt.s32.f32 %v3602
        %v3610 = vmul.f32 %v3609, %v3607
        %v3611 = vxor.u32 %v3610, 2147483648
        %v3612 = vsel %vm3491, %v3611, %v3610
        %v3613 = vsub.s32 4, %v3589
        %v3614 = vsel %vm3491, %v3613, %v3589
        %v3615 = vsel %vm3490, %v2857, %v3612
        %v3616 = vsel %vm3490, 0, %v3614
        %v3617 = vmul.f32 %v3615, %v3615
        %v3618 = vmul.f32 %v3617, -0.001358992
        %v3619 = vadd.f32 %v3618, 0.041655596
        %v3620 = vmul.f32 %v3617, %v3619
        %v3621 = vadd.f32 %v3620, -0.4999988
        %v3622 = vmul.f32 %v3617, %v3621
        %v3623 = vadd.f32 1.0, %v3622
        %v3624 = vmul.f32 %v3615, %v3615
        %v3625 = vmul.f32 %v3624, -0.00019511016
        %v3626 = vadd.f32 %v3625, 0.008332121
        %v3627 = vmul.f32 %v3624, %v3626
        %v3628 = vadd.f32 %v3627, -0.16666654
        %v3629 = vmul.f32 %v3624, %v3628
        %v3630 = vadd.f32 %v3629, 1.0
        %v3631 = vmul.f32 %v3630, %v3615
        %vm3632 = vweird.f32 %v2857
        %v3633 = vadd.s32 %v3616, 3
        %v3634 = vand.u32 %v3633, 3
        %vm3635 = vcmp.lt.s32.totalorder %v3634, 2
        %vm3636 = vcmp.eq.s32.totalorder %v3634, 0
        %v3637 = vxor.u32 %v3631, 2147483648
        %v3638 = vsel %vm3636, %v3623, %v3637
        %vm3639 = vcmp.eq.s32.totalorder %v3634, 2
        %v3640 = vxor.u32 %v3623, 2147483648
        %v3641 = vsel %vm3639, %v3640, %v3631
        %v3642 = vsel %vm3635, %v3638, %v3641
        %v3643 = vsel %vm3632, nan, %v3642
        %v3644 = vand.u32 2147483647, %v2858
        %vm3645 = vcmp.le.f32.partialorder %v3644, 0.7853982
        %vm3646 = vcmp.lt.s32.totalorder %v2858, 0
        %v3647 = vand.u32 %v2858, 2139095040
        %v3648 = vshrl.u32 %v3647, 23
        %v3649 = vsub.s32 %v3648, 127
        %v3650 = vand.u32 2147483647, %v2858
        %v3651 = vand.u32 %v3650, 8388607
        %v3652 = vor.u32 %v3651, 8388608
        %v3653 = vsub.s32 0, %v3652
        %v3654 = vadd.s32 %v3649, 1
        %vm3655 = vcmp.gt.s32.totalorder %v3654, 0
        %v3656 = vsel %vm3655, %v3654, 0
        %v3657 = vshrl.u32 %v3656, 5
        %v3658 = vand.u32 %v3656, 31
        %v3659 = vsub.s32 32, %v3658
        %v3660 = vshrl.u32 683565275, %v3659
        %v3661 = vshll.u32 683565275, %v3658
        %v3662 = vshrl.u32 2475754826, %v3659
        %v3663 = vor.u32 %v3661, %v3662
        %v3664 = vshll.u32 2475754826, %v3658
        %v3665 = vshrl.u32 2131351028, %v3659
        %v3666 = vor.u32 %v3664, %v3665
        %v3667 = vshll.u32 2131351028, %v3658
        %v3668 = vshrl.u32 2102212464, %v3659
        %v3669 = vor.u32 %v3667, %v3668
        %v3670 = vshll.u32 2102212464, %v3658
        %v3671 = vshrl.u32 920167782, %v3659
        %v3672 = vor.u32 %v3670, %v3671
        %v3673 = vshll.u32 920167782, %v3658
        %v3674 = vshrl.u32 1326507024, %v3659
        %v3675 = vor.u32 %v3673, %v3674
        %vm3676 = vcmp.lt.s32.totalorder %v3657, 1
        %vm3677 = vcmp.lt.s32.totalorder %v3657, 2
        %vm3678 = vcmp.lt.s32.totalorder %v3657, 3
        %vm3679 = vcmp.lt.s32.totalorder %v3657, 4
        %v3680 = vsel %vm3676, %v3660, %v3663
        %v3681 = vsel %vm3679, %v3669, 2102212464
        %v3682 = vsel %vm3678, %v3666, %v3681
        %v3683 = vsel %vm3677, %v3680, %v3682
        %v3684 = vsel %vm3676, %v3663, %v3666
        %v3685 = vsel %vm3679, %v3672, 920167782
        %v3686 = vsel %vm3678, %v3669, %v3685
        %v3687 = vsel %vm3677, %v3684, %v3686
        %v3688 = vsel %vm3676, %v3666, %v3669
        %v3689 = vsel %vm3679, %v3675, 1326507024
        %v3690 = vsel %vm3678, %v3672, %v3689
        %v3691 = vsel %vm3677, %v3688, %v3690
        %v3692 = vshll.u32 %v3652, 8
        %v3693 = vand.u32 %v3692, 65535
        %v3694 = vshrl.u32 %v3692, 16
        %v3695 = vand.u32 %v3691, 65535
        %v3696 = vshrl.u32 %v3691, 16
        %v3697 = vmul.u32 %v3693, %v3695
        %v3698 = vmul.u32 %v3693, %v3696
        %v3699 = vmul.u32 %v3694, %v3695
        %v3700 = vmul.u32 %v3694, %v3696
        %v3701 = vshll.u32 %v3698, 16
        %v3702 = vshrl.u32 %v3698, 16
        %v3703 = vshll.u32 %v3699, 16
        %v3704 = vshrl.u32 %v3699, 16
        %vm3705 = vc.u32 %v3697, %v3701
        %v3706 = vsel %vm3705, 1, 0
        %v3707 = vadd.s32 %v3697, %v3701
        %v3708 = vadd.s32 %v3700, %v3706
        %vm3709 = vc.u32 %v3707, %v3703
        %v3710 = vsel %vm3709, 1, 0
        %v3711 = vadd.s32 %v3707, %v3703
        %v3712 = vadd.s32 %v3708, %v3710
        %v3713 = vadd.s32 %v3712, %v3702
        %v3714 = vadd.s32 %v3713, %v3704
        %v3715 = vand.u32 %v3692, 65535
        %v3716 = vshrl.u32 %v3692, 16
        %v3717 = vand.u32 %v3687, 65535
        %v3718 = vshrl.u32 %v3687, 16
        %v3719 = vmul.u32 %v3715, %v3717
        %v3720 = vmul.u32 %v3715, %v3718
        %v3721 = vmul.u32 %v3716, %v3717
        %v3722 = vmul.u32 %v3716, %v3718
        %v3723 = vshll.u32 %v3720, 16
        %v3724 = vshrl.u32 %v3720, 16
        %v3725 = vshll.u32 %v3721, 16
        %v3726 = vshrl.u32 %v3721, 16
        %vm3727 = vc.u32 %v3719, %v3723
        %v3728 = vsel %vm3727, 1, 0
        %v3729 = vadd.s32 %v3719, %v3723
        %v3730 = vadd.s32 %v3722, %v3728
        %vm3731 = vc.u32 %v3729, %v3725
        %v3732 = vsel %vm3731, 1, 0
        %v3733 = vadd.s32 %v3729, %v3725
        %v3734 = vadd.s32 %v3730, %v3732
        %v3735 = vadd.s32 %v3734, %v3724
        %v3736 = vadd.s32 %v3735, %v3726
        %v3737 = vmul.u32 %v3692, %v3683
        %v3738 = vadd.s32 %v3714, %v3733
        %vm3739 = vc.u32 %v3714, %v3733
        %v3740 = vadd.s32 %v3736, 1
        %v3741 = vsel %vm3739, %v3740, %v3736
        %v3742 = vadd.s32 %v3737, %v3741
        %v3743 = vadd.s32 %v3742, 536870912
        %v3744 = vshrl.u32 %v3743, 30
        %v3745 = vshll.u32 %v3744, 30
        %v3746 = vsub.s32 %v3742, %v3745
        %vm3747 = vcmp.lt.s32.totalorder %v3746, 0
        %v3748 = vsub.s32 0, %v3746
        %v3749 = vsel %vm3747, %v3748, %v3746
        %v3750 = vclz %v3749
        %v3751 = vsub.s32 %v3750, 2
        %vm3752 = vcmp.gt.s32.totalorder 0, %v3751
        %v3753 = vsel %vm3752, 0, %v3751
        %v3754 = vsub.s32 32, %v3753
        %v3755 = vshll.u32 %v3746, %v3753
        %v3756 = vshrl.u32 %v3738, %v3754
        %v3757 = vor.u32 %v3755, %v3756
        %v3758 = vsub.s32 4294967266, %v3753
        %v3759 = vadd.s32 %v3758, 127
        %v3760 = vshll.u32 %v3759, 23
        %v3761 = vor.u32 4788187, %v3760
        %v3762 = vand.u32 2147483647, %v3761
        %v3764 = vcvt.s32.f32 %v3757
        %v3765 = vmul.f32 %v3764, %v3762
        %v3766 = vxor.u32 %v3765, 2147483648
        %v3767 = vsel %vm3646, %v3766, %v3765
        %v3768 = vsub.s32 4, %v3744
        %v3769 = vsel %vm3646, %v3768, %v3744
        %v3770 = vsel %vm3645, %v2858, %v3767
        %v3771 = vsel %vm3645, 0, %v3769
        %v3772 = vmul.f32 %v3770, %v3770
        %v3773 = vmul.f32 %v3772, -0.001358992
        %v3774 = vadd.f32 %v3773, 0.041655596
        %v3775 = vmul.f32 %v3772, %v3774
        %v3776 = vadd.f32 %v3775, -0.4999988
        %v3777 = vmul.f32 %v3772, %v3776
        %v3778 = vadd.f32 1.0, %v3777
        %v3779 = vmul.f32 %v3770, %v3770
        %v3780 = vmul.f32 %v3779, -0.00019511016
        %v3781 = vadd.f32 %v3780, 0.008332121
        %v3782 = vmul.f32 %v3779, %v3781
        %v3783 = vadd.f32 %v3782, -0.16666654
        %v3784 = vmul.f32 %v3779, %v3783
        %v3785 = vadd.f32 %v3784, 1.0
        %v3786 = vmul.f32 %v3785, %v3770
        %vm3787 = vweird.f32 %v2858
        %v3788 = vadd.s32 %v3771, 3
        %v3789 = vand.u32 %v3788, 3
        %vm3790 = vcmp.lt.s32.totalorder %v3789, 2
        %vm3791 = vcmp.eq.s32.totalorder %v3789, 0
        %v3792 = vxor.u32 %v3786, 2147483648
        %v3793 = vsel %vm3791, %v3778, %v3792
        %vm3794 = vcmp.eq.s32.totalorder %v3789, 2
        %v3795 = vxor.u32 %v3778, 2147483648
        %v3796 = vsel %vm3794, %v3795, %v3786
        %v3797 = vsel %vm3790, %v3793, %v3796
        %v3798 = vsel %vm3787, nan, %v3797
        %v3799 = vand.u32 2147483647, %v2859
        %vm3800 = vcmp.le.f32.partialorder %v3799, 0.7853982
        %vm3801 = vcmp.lt.s32.totalorder %v2859, 0
        %v3802 = vand.u32 %v2859, 2139095040
        %v3803 = vshrl.u32 %v3802, 23
        %v3804 = vsub.s32 %v3803, 127
        %v3805 = vand.u32 2147483647, %v2859
        %v3806 = vand.u32 %v3805, 8388607
        %v3807 = vor.u32 %v3806, 8388608
        %v3808 = vsub.s32 0, %v3807
        %v3809 = vadd.s32 %v3804, 1
        %vm3810 = vcmp.gt.s32.totalorder %v3809, 0
        %v3811 = vsel %vm3810, %v3809, 0
        %v3812 = vshrl.u32 %v3811, 5
        %v3813 = vand.u32 %v3811, 31
        %v3814 = vsub.s32 32, %v3813
        %v3815 = vshrl.u32 683565275, %v3814
        %v3816 = vshll.u32 683565275, %v3813
        %v3817 = vshrl.u32 2475754826, %v3814
        %v3818 = vor.u32 %v3816, %v3817
        %v3819 = vshll.u32 2475754826, %v3813
        %v3820 = vshrl.u32 2131351028, %v3814
        %v3821 = vor.u32 %v3819, %v3820
        %v3822 = vshll.u32 2131351028, %v3813
        %v3823 = vshrl.u32 2102212464, %v3814
        %v3824 = vor.u32 %v3822, %v3823
        %v3825 = vshll.u32 2102212464, %v3813
        %v3826 = vshrl.u32 920167782, %v3814
        %v3827 = vor.u32 %v3825, %v3826
        %v3828 = vshll.u32 920167782, %v3813
        %v3829 = vshrl.u32 1326507024, %v3814
        %v3830 = vor.u32 %v3828, %v3829
        %vm3831 = vcmp.lt.s32.totalorder %v3812, 1
        %vm3832 = vcmp.lt.s32.totalorder %v3812, 2
        %vm3833 = vcmp.lt.s32.totalorder %v3812, 3
        %vm3834 = vcmp.lt.s32.totalorder %v3812, 4
        %v3835 = vsel %vm3831, %v3815, %v3818
        %v3836 = vsel %vm3834, %v3824, 2102212464
        %v3837 = vsel %vm3833, %v3821, %v3836
        %v3838 = vsel %vm3832, %v3835, %v3837
        %v3839 = vsel %vm3831, %v3818, %v3821
        %v3840 = vsel %vm3834, %v3827, 920167782
        %v3841 = vsel %vm3833, %v3824, %v3840
        %v3842 = vsel %vm3832, %v3839, %v3841
        %v3843 = vsel %vm3831, %v3821, %v3824
        %v3844 = vsel %vm3834, %v3830, 1326507024
        %v3845 = vsel %vm3833, %v3827, %v3844
        %v3846 = vsel %vm3832, %v3843, %v3845
        %v3847 = vshll.u32 %v3807, 8
        %v3848 = vand.u32 %v3847, 65535
        %v3849 = vshrl.u32 %v3847, 16
        %v3850 = vand.u32 %v3846, 65535
        %v3851 = vshrl.u32 %v3846, 16
        %v3852 = vmul.u32 %v3848, %v3850
        %v3853 = vmul.u32 %v3848, %v3851
        %v3854 = vmul.u32 %v3849, %v3850
        %v3855 = vmul.u32 %v3849, %v3851
        %v3856 = vshll.u32 %v3853, 16
        %v3857 = vshrl.u32 %v3853, 16
        %v3858 = vshll.u32 %v3854, 16
        %v3859 = vshrl.u32 %v3854, 16
        %vm3860 = vc.u32 %v3852, %v3856
        %v3861 = vsel %vm3860, 1, 0
        %v3862 = vadd.s32 %v3852, %v3856
        %v3863 = vadd.s32 %v3855, %v3861
        %vm3864 = vc.u32 %v3862, %v3858
        %v3865 = vsel %vm3864, 1, 0
        %v3866 = vadd.s32 %v3862, %v3858
        %v3867 = vadd.s32 %v3863, %v3865
        %v3868 = vadd.s32 %v3867, %v3857
        %v3869 = vadd.s32 %v3868, %v3859
        %v3870 = vand.u32 %v3847, 65535
        %v3871 = vshrl.u32 %v3847, 16
        %v3872 = vand.u32 %v3842, 65535
        %v3873 = vshrl.u32 %v3842, 16
        %v3874 = vmul.u32 %v3870, %v3872
        %v3875 = vmul.u32 %v3870, %v3873
        %v3876 = vmul.u32 %v3871, %v3872
        %v3877 = vmul.u32 %v3871, %v3873
        %v3878 = vshll.u32 %v3875, 16
        %v3879 = vshrl.u32 %v3875, 16
        %v3880 = vshll.u32 %v3876, 16
        %v3881 = vshrl.u32 %v3876, 16
        %vm3882 = vc.u32 %v3874, %v3878
        %v3883 = vsel %vm3882, 1, 0
        %v3884 = vadd.s32 %v3874, %v3878
        %v3885 = vadd.s32 %v3877, %v3883
        %vm3886 = vc.u32 %v3884, %v3880
        %v3887 = vsel %vm3886, 1, 0
        %v3888 = vadd.s32 %v3884, %v3880
        %v3889 = vadd.s32 %v3885, %v3887
        %v3890 = vadd.s32 %v3889, %v3879
        %v3891 = vadd.s32 %v3890, %v3881
        %v3892 = vmul.u32 %v3847, %v3838
        %v3893 = vadd.s32 %v3869, %v3888
        %vm3894 = vc.u32 %v3869, %v3888
        %v3895 = vadd.s32 %v3891, 1
        %v3896 = vsel %vm3894, %v3895, %v3891
        %v3897 = vadd.s32 %v3892, %v3896
        %v3898 = vadd.s32 %v3897, 536870912
        %v3899 = vshrl.u32 %v3898, 30
        %v3900 = vshll.u32 %v3899, 30
        %v3901 = vsub.s32 %v3897, %v3900
        %vm3902 = vcmp.lt.s32.totalorder %v3901, 0
        %v3903 = vsub.s32 0, %v3901
        %v3904 = vsel %vm3902, %v3903, %v3901
        %v3905 = vclz %v3904
        %v3906 = vsub.s32 %v3905, 2
        %vm3907 = vcmp.gt.s32.totalorder 0, %v3906
        %v3908 = vsel %vm3907, 0, %v3906
        %v3909 = vsub.s32 32, %v3908
        %v3910 = vshll.u32 %v3901, %v3908
        %v3911 = vshrl.u32 %v3893, %v3909
        %v3912 = vor.u32 %v3910, %v3911
        %v3913 = vsub.s32 4294967266, %v3908
        %v3914 = vadd.s32 %v3913, 127
        %v3915 = vshll.u32 %v3914, 23
        %v3916 = vor.u32 4788187, %v3915
        %v3917 = vand.u32 2147483647, %v3916
        %v3919 = vcvt.s32.f32 %v3912
        %v3920 = vmul.f32 %v3919, %v3917
        %v3921 = vxor.u32 %v3920, 2147483648
        %v3922 = vsel %vm3801, %v3921, %v3920
        %v3923 = vsub.s32 4, %v3899
        %v3924 = vsel %vm3801, %v3923, %v3899
        %v3925 = vsel %vm3800, %v2859, %v3922
        %v3926 = vsel %vm3800, 0, %v3924
        %v3927 = vmul.f32 %v3925, %v3925
        %v3928 = vmul.f32 %v3927, -0.001358992
        %v3929 = vadd.f32 %v3928, 0.041655596
        %v3930 = vmul.f32 %v3927, %v3929
        %v3931 = vadd.f32 %v3930, -0.4999988
        %v3932 = vmul.f32 %v3927, %v3931
        %v3933 = vadd.f32 1.0, %v3932
        %v3934 = vmul.f32 %v3925, %v3925
        %v3935 = vmul.f32 %v3934, -0.00019511016
        %v3936 = vadd.f32 %v3935, 0.008332121
        %v3937 = vmul.f32 %v3934, %v3936
        %v3938 = vadd.f32 %v3937, -0.16666654
        %v3939 = vmul.f32 %v3934, %v3938
        %v3940 = vadd.f32 %v3939, 1.0
        %v3941 = vmul.f32 %v3940, %v3925
        %vm3942 = vweird.f32 %v2859
        %v3943 = vadd.s32 %v3926, 3
        %v3944 = vand.u32 %v3943, 3
        %vm3945 = vcmp.lt.s32.totalorder %v3944, 2
        %vm3946 = vcmp.eq.s32.totalorder %v3944, 0
        %v3947 = vxor.u32 %v3941, 2147483648
        %v3948 = vsel %vm3946, %v3933, %v3947
        %vm3949 = vcmp.eq.s32.totalorder %v3944, 2
        %v3950 = vxor.u32 %v3933, 2147483648
        %v3951 = vsel %vm3949, %v3950, %v3941
        %v3952 = vsel %vm3945, %v3948, %v3951
        %v3953 = vsel %vm3942, nan, %v3952
        %v3954 = vand.u32 2147483647, %v2860
        %vm3955 = vcmp.le.f32.partialorder %v3954, 0.7853982
        %vm3956 = vcmp.lt.s32.totalorder %v2860, 0
        %v3957 = vand.u32 %v2860, 2139095040
        %v3958 = vshrl.u32 %v3957, 23
        %v3959 = vsub.s32 %v3958, 127
        %v3960 = vand.u32 2147483647, %v2860
        %v3961 = vand.u32 %v3960, 8388607
        %v3962 = vor.u32 %v3961, 8388608
        %v3963 = vsub.s32 0, %v3962
        %v3964 = vadd.s32 %v3959, 1
        %vm3965 = vcmp.gt.s32.totalorder %v3964, 0
        %v3966 = vsel %vm3965, %v3964, 0
        %v3967 = vshrl.u32 %v3966, 5
        %v3968 = vand.u32 %v3966, 31
        %v3969 = vsub.s32 32, %v3968
        %v3970 = vshrl.u32 683565275, %v3969
        %v3971 = vshll.u32 683565275, %v3968
        %v3972 = vshrl.u32 2475754826, %v3969
        %v3973 = vor.u32 %v3971, %v3972
        %v3974 = vshll.u32 2475754826, %v3968
        %v3975 = vshrl.u32 2131351028, %v3969
        %v3976 = vor.u32 %v3974, %v3975
        %v3977 = vshll.u32 2131351028, %v3968
        %v3978 = vshrl.u32 2102212464, %v3969
        %v3979 = vor.u32 %v3977, %v3978
        %v3980 = vshll.u32 2102212464, %v3968
        %v3981 = vshrl.u32 920167782, %v3969
        %v3982 = vor.u32 %v3980, %v3981
        %v3983 = vshll.u32 920167782, %v3968
        %v3984 = vshrl.u32 1326507024, %v3969
        %v3985 = vor.u32 %v3983, %v3984
        %vm3986 = vcmp.lt.s32.totalorder %v3967, 1
        %vm3987 = vcmp.lt.s32.totalorder %v3967, 2
        %vm3988 = vcmp.lt.s32.totalorder %v3967, 3
        %vm3989 = vcmp.lt.s32.totalorder %v3967, 4
        %v3990 = vsel %vm3986, %v3970, %v3973
        %v3991 = vsel %vm3989, %v3979, 2102212464
        %v3992 = vsel %vm3988, %v3976, %v3991
        %v3993 = vsel %vm3987, %v3990, %v3992
        %v3994 = vsel %vm3986, %v3973, %v3976
        %v3995 = vsel %vm3989, %v3982, 920167782
        %v3996 = vsel %vm3988, %v3979, %v3995
        %v3997 = vsel %vm3987, %v3994, %v3996
        %v3998 = vsel %vm3986, %v3976, %v3979
        %v3999 = vsel %vm3989, %v3985, 1326507024
        %v4000 = vsel %vm3988, %v3982, %v3999
        %v4001 = vsel %vm3987, %v3998, %v4000
        %v4002 = vshll.u32 %v3962, 8
        %v4003 = vand.u32 %v4002, 65535
        %v4004 = vshrl.u32 %v4002, 16
        %v4005 = vand.u32 %v4001, 65535
        %v4006 = vshrl.u32 %v4001, 16
        %v4007 = vmul.u32 %v4003, %v4005
        %v4008 = vmul.u32 %v4003, %v4006
        %v4009 = vmul.u32 %v4004, %v4005
        %v4010 = vmul.u32 %v4004, %v4006
        %v4011 = vshll.u32 %v4008, 16
        %v4012 = vshrl.u32 %v4008, 16
        %v4013 = vshll.u32 %v4009, 16
        %v4014 = vshrl.u32 %v4009, 16
        %vm4015 = vc.u32 %v4007, %v4011
        %v4016 = vsel %vm4015, 1, 0
        %v4017 = vadd.s32 %v4007, %v4011
        %v4018 = vadd.s32 %v4010, %v4016
        %vm4019 = vc.u32 %v4017, %v4013
        %v4020 = vsel %vm4019, 1, 0
        %v4021 = vadd.s32 %v4017, %v4013
        %v4022 = vadd.s32 %v4018, %v4020
        %v4023 = vadd.s32 %v4022, %v4012
        %v4024 = vadd.s32 %v4023, %v4014
        %v4025 = vand.u32 %v4002, 65535
        %v4026 = vshrl.u32 %v4002, 16
        %v4027 = vand.u32 %v3997, 65535
        %v4028 = vshrl.u32 %v3997, 16
        %v4029 = vmul.u32 %v4025, %v4027
        %v4030 = vmul.u32 %v4025, %v4028
        %v4031 = vmul.u32 %v4026, %v4027
        %v4032 = vmul.u32 %v4026, %v4028
        %v4033 = vshll.u32 %v4030, 16
        %v4034 = vshrl.u32 %v4030, 16
        %v4035 = vshll.u32 %v4031, 16
        %v4036 = vshrl.u32 %v4031, 16
        %vm4037 = vc.u32 %v4029, %v4033
        %v4038 = vsel %vm4037, 1, 0
        %v4039 = vadd.s32 %v4029, %v4033
        %v4040 = vadd.s32 %v4032, %v4038
        %vm4041 = vc.u32 %v4039, %v4035
        %v4042 = vsel %vm4041, 1, 0
        %v4043 = vadd.s32 %v4039, %v4035
        %v4044 = vadd.s32 %v4040, %v4042
        %v4045 = vadd.s32 %v4044, %v4034
        %v4046 = vadd.s32 %v4045, %v4036
        %v4047 = vmul.u32 %v4002, %v3993
        %v4048 = vadd.s32 %v4024, %v4043
        %vm4049 = vc.u32 %v4024, %v4043
        %v4050 = vadd.s32 %v4046, 1
        %v4051 = vsel %vm4049, %v4050, %v4046
        %v4052 = vadd.s32 %v4047, %v4051
        %v4053 = vadd.s32 %v4052, 536870912
        %v4054 = vshrl.u32 %v4053, 30
        %v4055 = vshll.u32 %v4054, 30
        %v4056 = vsub.s32 %v4052, %v4055
        %vm4057 = vcmp.lt.s32.totalorder %v4056, 0
        %v4058 = vsub.s32 0, %v4056
        %v4059 = vsel %vm4057, %v4058, %v4056
        %v4060 = vclz %v4059
        %v4061 = vsub.s32 %v4060, 2
        %vm4062 = vcmp.gt.s32.totalorder 0, %v4061
        %v4063 = vsel %vm4062, 0, %v4061
        %v4064 = vsub.s32 32, %v4063
        %v4065 = vshll.u32 %v4056, %v4063
        %v4066 = vshrl.u32 %v4048, %v4064
        %v4067 = vor.u32 %v4065, %v4066
        %v4068 = vsub.s32 4294967266, %v4063
        %v4069 = vadd.s32 %v4068, 127
        %v4070 = vshll.u32 %v4069, 23
        %v4071 = vor.u32 4788187, %v4070
        %v4072 = vand.u32 2147483647, %v4071
        %v4074 = vcvt.s32.f32 %v4067
        %v4075 = vmul.f32 %v4074, %v4072
        %v4076 = vxor.u32 %v4075, 2147483648
        %v4077 = vsel %vm3956, %v4076, %v4075
        %v4078 = vsub.s32 4, %v4054
        %v4079 = vsel %vm3956, %v4078, %v4054
        %v4080 = vsel %vm3955, %v2860, %v4077
        %v4081 = vsel %vm3955, 0, %v4079
        %v4082 = vmul.f32 %v4080, %v4080
        %v4083 = vmul.f32 %v4082, -0.001358992
        %v4084 = vadd.f32 %v4083, 0.041655596
        %v4085 = vmul.f32 %v4082, %v4084
        %v4086 = vadd.f32 %v4085, -0.4999988
        %v4087 = vmul.f32 %v4082, %v4086
        %v4088 = vadd.f32 1.0, %v4087
        %v4089 = vmul.f32 %v4080, %v4080
        %v4090 = vmul.f32 %v4089, -0.00019511016
        %v4091 = vadd.f32 %v4090, 0.008332121
        %v4092 = vmul.f32 %v4089, %v4091
        %v4093 = vadd.f32 %v4092, -0.16666654
        %v4094 = vmul.f32 %v4089, %v4093
        %v4095 = vadd.f32 %v4094, 1.0
        %v4096 = vmul.f32 %v4095, %v4080
        %vm4097 = vweird.f32 %v2860
        %v4098 = vadd.s32 %v4081, 3
        %v4099 = vand.u32 %v4098, 3
        %vm4100 = vcmp.lt.s32.totalorder %v4099, 2
        %vm4101 = vcmp.eq.s32.totalorder %v4099, 0
        %v4102 = vxor.u32 %v4096, 2147483648
        %v4103 = vsel %vm4101, %v4088, %v4102
        %vm4104 = vcmp.eq.s32.totalorder %v4099, 2
        %v4105 = vxor.u32 %v4088, 2147483648
        %v4106 = vsel %vm4104, %v4105, %v4096
        %v4107 = vsel %vm4100, %v4103, %v4106
        %v4108 = vsel %vm4097, nan, %v4107
        %v4109 = vand.u32 2147483647, %v2861
        %vm4110 = vcmp.le.f32.partialorder %v4109, 0.7853982
        %vm4111 = vcmp.lt.s32.totalorder %v2861, 0
        %v4112 = vand.u32 %v2861, 2139095040
        %v4113 = vshrl.u32 %v4112, 23
        %v4114 = vsub.s32 %v4113, 127
        %v4115 = vand.u32 2147483647, %v2861
        %v4116 = vand.u32 %v4115, 8388607
        %v4117 = vor.u32 %v4116, 8388608
        %v4118 = vsub.s32 0, %v4117
        %v4119 = vadd.s32 %v4114, 1
        %vm4120 = vcmp.gt.s32.totalorder %v4119, 0
        %v4121 = vsel %vm4120, %v4119, 0
        %v4122 = vshrl.u32 %v4121, 5
        %v4123 = vand.u32 %v4121, 31
        %v4124 = vsub.s32 32, %v4123
        %v4125 = vshrl.u32 683565275, %v4124
        %v4126 = vshll.u32 683565275, %v4123
        %v4127 = vshrl.u32 2475754826, %v4124
        %v4128 = vor.u32 %v4126, %v4127
        %v4129 = vshll.u32 2475754826, %v4123
        %v4130 = vshrl.u32 2131351028, %v4124
        %v4131 = vor.u32 %v4129, %v4130
        %v4132 = vshll.u32 2131351028, %v4123
        %v4133 = vshrl.u32 2102212464, %v4124
        %v4134 = vor.u32 %v4132, %v4133
        %v4135 = vshll.u32 2102212464, %v4123
        %v4136 = vshrl.u32 920167782, %v4124
        %v4137 = vor.u32 %v4135, %v4136
        %v4138 = vshll.u32 920167782, %v4123
        %v4139 = vshrl.u32 1326507024, %v4124
        %v4140 = vor.u32 %v4138, %v4139
        %vm4141 = vcmp.lt.s32.totalorder %v4122, 1
        %vm4142 = vcmp.lt.s32.totalorder %v4122, 2
        %vm4143 = vcmp.lt.s32.totalorder %v4122, 3
        %vm4144 = vcmp.lt.s32.totalorder %v4122, 4
        %v4145 = vsel %vm4141, %v4125, %v4128
        %v4146 = vsel %vm4144, %v4134, 2102212464
        %v4147 = vsel %vm4143, %v4131, %v4146
        %v4148 = vsel %vm4142, %v4145, %v4147
        %v4149 = vsel %vm4141, %v4128, %v4131
        %v4150 = vsel %vm4144, %v4137, 920167782
        %v4151 = vsel %vm4143, %v4134, %v4150
        %v4152 = vsel %vm4142, %v4149, %v4151
        %v4153 = vsel %vm4141, %v4131, %v4134
        %v4154 = vsel %vm4144, %v4140, 1326507024
        %v4155 = vsel %vm4143, %v4137, %v4154
        %v4156 = vsel %vm4142, %v4153, %v4155
        %v4157 = vshll.u32 %v4117, 8
        %v4158 = vand.u32 %v4157, 65535
        %v4159 = vshrl.u32 %v4157, 16
        %v4160 = vand.u32 %v4156, 65535
        %v4161 = vshrl.u32 %v4156, 16
        %v4162 = vmul.u32 %v4158, %v4160
        %v4163 = vmul.u32 %v4158, %v4161
        %v4164 = vmul.u32 %v4159, %v4160
        %v4165 = vmul.u32 %v4159, %v4161
        %v4166 = vshll.u32 %v4163, 16
        %v4167 = vshrl.u32 %v4163, 16
        %v4168 = vshll.u32 %v4164, 16
        %v4169 = vshrl.u32 %v4164, 16
        %vm4170 = vc.u32 %v4162, %v4166
        %v4171 = vsel %vm4170, 1, 0
        %v4172 = vadd.s32 %v4162, %v4166
        %v4173 = vadd.s32 %v4165, %v4171
        %vm4174 = vc.u32 %v4172, %v4168
        %v4175 = vsel %vm4174, 1, 0
        %v4176 = vadd.s32 %v4172, %v4168
        %v4177 = vadd.s32 %v4173, %v4175
        %v4178 = vadd.s32 %v4177, %v4167
        %v4179 = vadd.s32 %v4178, %v4169
        %v4180 = vand.u32 %v4157, 65535
        %v4181 = vshrl.u32 %v4157, 16
        %v4182 = vand.u32 %v4152, 65535
        %v4183 = vshrl.u32 %v4152, 16
        %v4184 = vmul.u32 %v4180, %v4182
        %v4185 = vmul.u32 %v4180, %v4183
        %v4186 = vmul.u32 %v4181, %v4182
        %v4187 = vmul.u32 %v4181, %v4183
        %v4188 = vshll.u32 %v4185, 16
        %v4189 = vshrl.u32 %v4185, 16
        %v4190 = vshll.u32 %v4186, 16
        %v4191 = vshrl.u32 %v4186, 16
        %vm4192 = vc.u32 %v4184, %v4188
        %v4193 = vsel %vm4192, 1, 0
        %v4194 = vadd.s32 %v4184, %v4188
        %v4195 = vadd.s32 %v4187, %v4193
        %vm4196 = vc.u32 %v4194, %v4190
        %v4197 = vsel %vm4196, 1, 0
        %v4198 = vadd.s32 %v4194, %v4190
        %v4199 = vadd.s32 %v4195, %v4197
        %v4200 = vadd.s32 %v4199, %v4189
        %v4201 = vadd.s32 %v4200, %v4191
        %v4202 = vmul.u32 %v4157, %v4148
        %v4203 = vadd.s32 %v4179, %v4198
        %vm4204 = vc.u32 %v4179, %v4198
        %v4205 = vadd.s32 %v4201, 1
        %v4206 = vsel %vm4204, %v4205, %v4201
        %v4207 = vadd.s32 %v4202, %v4206
        %v4208 = vadd.s32 %v4207, 536870912
        %v4209 = vshrl.u32 %v4208, 30
        %v4210 = vshll.u32 %v4209, 30
        %v4211 = vsub.s32 %v4207, %v4210
        %vm4212 = vcmp.lt.s32.totalorder %v4211, 0
        %v4213 = vsub.s32 0, %v4211
        %v4214 = vsel %vm4212, %v4213, %v4211
        %v4215 = vclz %v4214
        %v4216 = vsub.s32 %v4215, 2
        %vm4217 = vcmp.gt.s32.totalorder 0, %v4216
        %v4218 = vsel %vm4217, 0, %v4216
        %v4219 = vsub.s32 32, %v4218
        %v4220 = vshll.u32 %v4211, %v4218
        %v4221 = vshrl.u32 %v4203, %v4219
        %v4222 = vor.u32 %v4220, %v4221
        %v4223 = vsub.s32 4294967266, %v4218
        %v4224 = vadd.s32 %v4223, 127
        %v4225 = vshll.u32 %v4224, 23
        %v4226 = vor.u32 4788187, %v4225
        %v4227 = vand.u32 2147483647, %v4226
        %v4229 = vcvt.s32.f32 %v4222
        %v4230 = vmul.f32 %v4229, %v4227
        %v4231 = vxor.u32 %v4230, 2147483648
        %v4232 = vsel %vm4111, %v4231, %v4230
        %v4233 = vsub.s32 4, %v4209
        %v4234 = vsel %vm4111, %v4233, %v4209
        %v4235 = vsel %vm4110, %v2861, %v4232
        %v4236 = vsel %vm4110, 0, %v4234
        %v4237 = vmul.f32 %v4235, %v4235
        %v4238 = vmul.f32 %v4237, -0.001358992
        %v4239 = vadd.f32 %v4238, 0.041655596
        %v4240 = vmul.f32 %v4237, %v4239
        %v4241 = vadd.f32 %v4240, -0.4999988
        %v4242 = vmul.f32 %v4237, %v4241
        %v4243 = vadd.f32 1.0, %v4242
        %v4244 = vmul.f32 %v4235, %v4235
        %v4245 = vmul.f32 %v4244, -0.00019511016
        %v4246 = vadd.f32 %v4245, 0.008332121
        %v4247 = vmul.f32 %v4244, %v4246
        %v4248 = vadd.f32 %v4247, -0.16666654
        %v4249 = vmul.f32 %v4244, %v4248
        %v4250 = vadd.f32 %v4249, 1.0
        %v4251 = vmul.f32 %v4250, %v4235
        %vm4252 = vweird.f32 %v2861
        %v4253 = vadd.s32 %v4236, 3
        %v4254 = vand.u32 %v4253, 3
        %vm4255 = vcmp.lt.s32.totalorder %v4254, 2
        %vm4256 = vcmp.eq.s32.totalorder %v4254, 0
        %v4257 = vxor.u32 %v4251, 2147483648
        %v4258 = vsel %vm4256, %v4243, %v4257
        %vm4259 = vcmp.eq.s32.totalorder %v4254, 2
        %v4260 = vxor.u32 %v4243, 2147483648
        %v4261 = vsel %vm4259, %v4260, %v4251
        %v4262 = vsel %vm4255, %v4258, %v4261
        %v4263 = vsel %vm4252, nan, %v4262
        %v4264 = vand.u32 2147483647, %v2862
        %vm4265 = vcmp.le.f32.partialorder %v4264, 0.7853982
        %vm4266 = vcmp.lt.s32.totalorder %v2862, 0
        %v4267 = vand.u32 %v2862, 2139095040
        %v4268 = vshrl.u32 %v4267, 23
        %v4269 = vsub.s32 %v4268, 127
        %v4270 = vand.u32 2147483647, %v2862
        %v4271 = vand.u32 %v4270, 8388607
        %v4272 = vor.u32 %v4271, 8388608
        %v4273 = vsub.s32 0, %v4272
        %v4274 = vadd.s32 %v4269, 1
        %vm4275 = vcmp.gt.s32.totalorder %v4274, 0
        %v4276 = vsel %vm4275, %v4274, 0
        %v4277 = vshrl.u32 %v4276, 5
        %v4278 = vand.u32 %v4276, 31
        %v4279 = vsub.s32 32, %v4278
        %v4280 = vshrl.u32 683565275, %v4279
        %v4281 = vshll.u32 683565275, %v4278
        %v4282 = vshrl.u32 2475754826, %v4279
        %v4283 = vor.u32 %v4281, %v4282
        %v4284 = vshll.u32 2475754826, %v4278
        %v4285 = vshrl.u32 2131351028, %v4279
        %v4286 = vor.u32 %v4284, %v4285
        %v4287 = vshll.u32 2131351028, %v4278
        %v4288 = vshrl.u32 2102212464, %v4279
        %v4289 = vor.u32 %v4287, %v4288
        %v4290 = vshll.u32 2102212464, %v4278
        %v4291 = vshrl.u32 920167782, %v4279
        %v4292 = vor.u32 %v4290, %v4291
        %v4293 = vshll.u32 920167782, %v4278
        %v4294 = vshrl.u32 1326507024, %v4279
        %v4295 = vor.u32 %v4293, %v4294
        %vm4296 = vcmp.lt.s32.totalorder %v4277, 1
        %vm4297 = vcmp.lt.s32.totalorder %v4277, 2
        %vm4298 = vcmp.lt.s32.totalorder %v4277, 3
        %vm4299 = vcmp.lt.s32.totalorder %v4277, 4
        %v4300 = vsel %vm4296, %v4280, %v4283
        %v4301 = vsel %vm4299, %v4289, 2102212464
        %v4302 = vsel %vm4298, %v4286, %v4301
        %v4303 = vsel %vm4297, %v4300, %v4302
        %v4304 = vsel %vm4296, %v4283, %v4286
        %v4305 = vsel %vm4299, %v4292, 920167782
        %v4306 = vsel %vm4298, %v4289, %v4305
        %v4307 = vsel %vm4297, %v4304, %v4306
        %v4308 = vsel %vm4296, %v4286, %v4289
        %v4309 = vsel %vm4299, %v4295, 1326507024
        %v4310 = vsel %vm4298, %v4292, %v4309
        %v4311 = vsel %vm4297, %v4308, %v4310
        %v4312 = vshll.u32 %v4272, 8
        %v4313 = vand.u32 %v4312, 65535
        %v4314 = vshrl.u32 %v4312, 16
        %v4315 = vand.u32 %v4311, 65535
        %v4316 = vshrl.u32 %v4311, 16
        %v4317 = vmul.u32 %v4313, %v4315
        %v4318 = vmul.u32 %v4313, %v4316
        %v4319 = vmul.u32 %v4314, %v4315
        %v4320 = vmul.u32 %v4314, %v4316
        %v4321 = vshll.u32 %v4318, 16
        %v4322 = vshrl.u32 %v4318, 16
        %v4323 = vshll.u32 %v4319, 16
        %v4324 = vshrl.u32 %v4319, 16
        %vm4325 = vc.u32 %v4317, %v4321
        %v4326 = vsel %vm4325, 1, 0
        %v4327 = vadd.s32 %v4317, %v4321
        %v4328 = vadd.s32 %v4320, %v4326
        %vm4329 = vc.u32 %v4327, %v4323
        %v4330 = vsel %vm4329, 1, 0
        %v4331 = vadd.s32 %v4327, %v4323
        %v4332 = vadd.s32 %v4328, %v4330
        %v4333 = vadd.s32 %v4332, %v4322
        %v4334 = vadd.s32 %v4333, %v4324
        %v4335 = vand.u32 %v4312, 65535
        %v4336 = vshrl.u32 %v4312, 16
        %v4337 = vand.u32 %v4307, 65535
        %v4338 = vshrl.u32 %v4307, 16
        %v4339 = vmul.u32 %v4335, %v4337
        %v4340 = vmul.u32 %v4335, %v4338
        %v4341 = vmul.u32 %v4336, %v4337
        %v4342 = vmul.u32 %v4336, %v4338
        %v4343 = vshll.u32 %v4340, 16
        %v4344 = vshrl.u32 %v4340, 16
        %v4345 = vshll.u32 %v4341, 16
        %v4346 = vshrl.u32 %v4341, 16
        %vm4347 = vc.u32 %v4339, %v4343
        %v4348 = vsel %vm4347, 1, 0
        %v4349 = vadd.s32 %v4339, %v4343
        %v4350 = vadd.s32 %v4342, %v4348
        %vm4351 = vc.u32 %v4349, %v4345
        %v4352 = vsel %vm4351, 1, 0
        %v4353 = vadd.s32 %v4349, %v4345
        %v4354 = vadd.s32 %v4350, %v4352
        %v4355 = vadd.s32 %v4354, %v4344
        %v4356 = vadd.s32 %v4355, %v4346
        %v4357 = vmul.u32 %v4312, %v4303
        %v4358 = vadd.s32 %v4334, %v4353
        %vm4359 = vc.u32 %v4334, %v4353
        %v4360 = vadd.s32 %v4356, 1
        %v4361 = vsel %vm4359, %v4360, %v4356
        %v4362 = vadd.s32 %v4357, %v4361
        %v4363 = vadd.s32 %v4362, 536870912
        %v4364 = vshrl.u32 %v4363, 30
        %v4365 = vshll.u32 %v4364, 30
        %v4366 = vsub.s32 %v4362, %v4365
        %vm4367 = vcmp.lt.s32.totalorder %v4366, 0
        %v4368 = vsub.s32 0, %v4366
        %v4369 = vsel %vm4367, %v4368, %v4366
        %v4370 = vclz %v4369
        %v4371 = vsub.s32 %v4370, 2
        %vm4372 = vcmp.gt.s32.totalorder 0, %v4371
        %v4373 = vsel %vm4372, 0, %v4371
        %v4374 = vsub.s32 32, %v4373
        %v4375 = vshll.u32 %v4366, %v4373
        %v4376 = vshrl.u32 %v4358, %v4374
        %v4377 = vor.u32 %v4375, %v4376
        %v4378 = vsub.s32 4294967266, %v4373
        %v4379 = vadd.s32 %v4378, 127
        %v4380 = vshll.u32 %v4379, 23
        %v4381 = vor.u32 4788187, %v4380
        %v4382 = vand.u32 2147483647, %v4381
        %v4384 = vcvt.s32.f32 %v4377
        %v4385 = vmul.f32 %v4384, %v4382
        %v4386 = vxor.u32 %v4385, 2147483648
        %v4387 = vsel %vm4266, %v4386, %v4385
        %v4388 = vsub.s32 4, %v4364
        %v4389 = vsel %vm4266, %v4388, %v4364
        %v4390 = vsel %vm4265, %v2862, %v4387
        %v4391 = vsel %vm4265, 0, %v4389
        %v4392 = vmul.f32 %v4390, %v4390
        %v4393 = vmul.f32 %v4392, -0.001358992
        %v4394 = vadd.f32 %v4393, 0.041655596
        %v4395 = vmul.f32 %v4392, %v4394
        %v4396 = vadd.f32 %v4395, -0.4999988
        %v4397 = vmul.f32 %v4392, %v4396
        %v4398 = vadd.f32 1.0, %v4397
        %v4399 = vmul.f32 %v4390, %v4390
        %v4400 = vmul.f32 %v4399, -0.00019511016
        %v4401 = vadd.f32 %v4400, 0.008332121
        %v4402 = vmul.f32 %v4399, %v4401
        %v4403 = vadd.f32 %v4402, -0.16666654
        %v4404 = vmul.f32 %v4399, %v4403
        %v4405 = vadd.f32 %v4404, 1.0
        %v4406 = vmul.f32 %v4405, %v4390
        %vm4407 = vweird.f32 %v2862
        %v4408 = vadd.s32 %v4391, 3
        %v4409 = vand.u32 %v4408, 3
        %vm4410 = vcmp.lt.s32.totalorder %v4409, 2
        %vm4411 = vcmp.eq.s32.totalorder %v4409, 0
        %v4412 = vxor.u32 %v4406, 2147483648
        %v4413 = vsel %vm4411, %v4398, %v4412
        %vm4414 = vcmp.eq.s32.totalorder %v4409, 2
        %v4415 = vxor.u32 %v4398, 2147483648
        %v4416 = vsel %vm4414, %v4415, %v4406
        %v4417 = vsel %vm4410, %v4413, %v4416
        %v4418 = vsel %vm4407, nan, %v4417
        %v4419 = vand.u32 2147483647, %v2863
        %vm4420 = vcmp.le.f32.partialorder %v4419, 0.7853982
        %vm4421 = vcmp.lt.s32.totalorder %v2863, 0
        %v4422 = vand.u32 %v2863, 2139095040
        %v4423 = vshrl.u32 %v4422, 23
        %v4424 = vsub.s32 %v4423, 127
        %v4425 = vand.u32 2147483647, %v2863
        %v4426 = vand.u32 %v4425, 8388607
        %v4427 = vor.u32 %v4426, 8388608
        %v4428 = vsub.s32 0, %v4427
        %v4429 = vadd.s32 %v4424, 1
        %vm4430 = vcmp.gt.s32.totalorder %v4429, 0
        %v4431 = vsel %vm4430, %v4429, 0
        %v4432 = vshrl.u32 %v4431, 5
        %v4433 = vand.u32 %v4431, 31
        %v4434 = vsub.s32 32, %v4433
        %v4435 = vshrl.u32 683565275, %v4434
        %v4436 = vshll.u32 683565275, %v4433
        %v4437 = vshrl.u32 2475754826, %v4434
        %v4438 = vor.u32 %v4436, %v4437
        %v4439 = vshll.u32 2475754826, %v4433
        %v4440 = vshrl.u32 2131351028, %v4434
        %v4441 = vor.u32 %v4439, %v4440
        %v4442 = vshll.u32 2131351028, %v4433
        %v4443 = vshrl.u32 2102212464, %v4434
        %v4444 = vor.u32 %v4442, %v4443
        %v4445 = vshll.u32 2102212464, %v4433
        %v4446 = vshrl.u32 920167782, %v4434
        %v4447 = vor.u32 %v4445, %v4446
        %v4448 = vshll.u32 920167782, %v4433
        %v4449 = vshrl.u32 1326507024, %v4434
        %v4450 = vor.u32 %v4448, %v4449
        %vm4451 = vcmp.lt.s32.totalorder %v4432, 1
        %vm4452 = vcmp.lt.s32.totalorder %v4432, 2
        %vm4453 = vcmp.lt.s32.totalorder %v4432, 3
        %vm4454 = vcmp.lt.s32.totalorder %v4432, 4
        %v4455 = vsel %vm4451, %v4435, %v4438
        %v4456 = vsel %vm4454, %v4444, 2102212464
        %v4457 = vsel %vm4453, %v4441, %v4456
        %v4458 = vsel %vm4452, %v4455, %v4457
        %v4459 = vsel %vm4451, %v4438, %v4441
        %v4460 = vsel %vm4454, %v4447, 920167782
        %v4461 = vsel %vm4453, %v4444, %v4460
        %v4462 = vsel %vm4452, %v4459, %v4461
        %v4463 = vsel %vm4451, %v4441, %v4444
        %v4464 = vsel %vm4454, %v4450, 1326507024
        %v4465 = vsel %vm4453, %v4447, %v4464
        %v4466 = vsel %vm4452, %v4463, %v4465
        %v4467 = vshll.u32 %v4427, 8
        %v4468 = vand.u32 %v4467, 65535
        %v4469 = vshrl.u32 %v4467, 16
        %v4470 = vand.u32 %v4466, 65535
        %v4471 = vshrl.u32 %v4466, 16
        %v4472 = vmul.u32 %v4468, %v4470
        %v4473 = vmul.u32 %v4468, %v4471
        %v4474 = vmul.u32 %v4469, %v4470
        %v4475 = vmul.u32 %v4469, %v4471
        %v4476 = vshll.u32 %v4473, 16
        %v4477 = vshrl.u32 %v4473, 16
        %v4478 = vshll.u32 %v4474, 16
        %v4479 = vshrl.u32 %v4474, 16
        %vm4480 = vc.u32 %v4472, %v4476
        %v4481 = vsel %vm4480, 1, 0
        %v4482 = vadd.s32 %v4472, %v4476
        %v4483 = vadd.s32 %v4475, %v4481
        %vm4484 = vc.u32 %v4482, %v4478
        %v4485 = vsel %vm4484, 1, 0
        %v4486 = vadd.s32 %v4482, %v4478
        %v4487 = vadd.s32 %v4483, %v4485
        %v4488 = vadd.s32 %v4487, %v4477
        %v4489 = vadd.s32 %v4488, %v4479
        %v4490 = vand.u32 %v4467, 65535
        %v4491 = vshrl.u32 %v4467, 16
        %v4492 = vand.u32 %v4462, 65535
        %v4493 = vshrl.u32 %v4462, 16
        %v4494 = vmul.u32 %v4490, %v4492
        %v4495 = vmul.u32 %v4490, %v4493
        %v4496 = vmul.u32 %v4491, %v4492
        %v4497 = vmul.u32 %v4491, %v4493
        %v4498 = vshll.u32 %v4495, 16
        %v4499 = vshrl.u32 %v4495, 16
        %v4500 = vshll.u32 %v4496, 16
        %v4501 = vshrl.u32 %v4496, 16
        %vm4502 = vc.u32 %v4494, %v4498
        %v4503 = vsel %vm4502, 1, 0
        %v4504 = vadd.s32 %v4494, %v4498
        %v4505 = vadd.s32 %v4497, %v4503
        %vm4506 = vc.u32 %v4504, %v4500
        %v4507 = vsel %vm4506, 1, 0
        %v4508 = vadd.s32 %v4504, %v4500
        %v4509 = vadd.s32 %v4505, %v4507
        %v4510 = vadd.s32 %v4509, %v4499
        %v4511 = vadd.s32 %v4510, %v4501
        %v4512 = vmul.u32 %v4467, %v4458
        %v4513 = vadd.s32 %v4489, %v4508
        %vm4514 = vc.u32 %v4489, %v4508
        %v4515 = vadd.s32 %v4511, 1
        %v4516 = vsel %vm4514, %v4515, %v4511
        %v4517 = vadd.s32 %v4512, %v4516
        %v4518 = vadd.s32 %v4517, 536870912
        %v4519 = vshrl.u32 %v4518, 30
        %v4520 = vshll.u32 %v4519, 30
        %v4521 = vsub.s32 %v4517, %v4520
        %vm4522 = vcmp.lt.s32.totalorder %v4521, 0
        %v4523 = vsub.s32 0, %v4521
        %v4524 = vsel %vm4522, %v4523, %v4521
        %v4525 = vclz %v4524
        %v4526 = vsub.s32 %v4525, 2
        %vm4527 = vcmp.gt.s32.totalorder 0, %v4526
        %v4528 = vsel %vm4527, 0, %v4526
        %v4529 = vsub.s32 32, %v4528
        %v4530 = vshll.u32 %v4521, %v4528
        %v4531 = vshrl.u32 %v4513, %v4529
        %v4532 = vor.u32 %v4530, %v4531
        %v4533 = vsub.s32 4294967266, %v4528
        %v4534 = vadd.s32 %v4533, 127
        %v4535 = vshll.u32 %v4534, 23
        %v4536 = vor.u32 4788187, %v4535
        %v4537 = vand.u32 2147483647, %v4536
        %v4539 = vcvt.s32.f32 %v4532
        %v4540 = vmul.f32 %v4539, %v4537
        %v4541 = vxor.u32 %v4540, 2147483648
        %v4542 = vsel %vm4421, %v4541, %v4540
        %v4543 = vsub.s32 4, %v4519
        %v4544 = vsel %vm4421, %v4543, %v4519
        %v4545 = vsel %vm4420, %v2863, %v4542
        %v4546 = vsel %vm4420, 0, %v4544
        %v4547 = vmul.f32 %v4545, %v4545
        %v4548 = vmul.f32 %v4547, -0.001358992
        %v4549 = vadd.f32 %v4548, 0.041655596
        %v4550 = vmul.f32 %v4547, %v4549
        %v4551 = vadd.f32 %v4550, -0.4999988
        %v4552 = vmul.f32 %v4547, %v4551
        %v4553 = vadd.f32 1.0, %v4552
        %v4554 = vmul.f32 %v4545, %v4545
        %v4555 = vmul.f32 %v4554, -0.00019511016
        %v4556 = vadd.f32 %v4555, 0.008332121
        %v4557 = vmul.f32 %v4554, %v4556
        %v4558 = vadd.f32 %v4557, -0.16666654
        %v4559 = vmul.f32 %v4554, %v4558
        %v4560 = vadd.f32 %v4559, 1.0
        %v4561 = vmul.f32 %v4560, %v4545
        %vm4562 = vweird.f32 %v2863
        %v4563 = vadd.s32 %v4546, 3
        %v4564 = vand.u32 %v4563, 3
        %vm4565 = vcmp.lt.s32.totalorder %v4564, 2
        %vm4566 = vcmp.eq.s32.totalorder %v4564, 0
        %v4567 = vxor.u32 %v4561, 2147483648
        %v4568 = vsel %vm4566, %v4553, %v4567
        %vm4569 = vcmp.eq.s32.totalorder %v4564, 2
        %v4570 = vxor.u32 %v4553, 2147483648
        %v4571 = vsel %vm4569, %v4570, %v4561
        %v4572 = vsel %vm4565, %v4568, %v4571
        %v4573 = vsel %vm4562, nan, %v4572
        %v4574 = vand.u32 2147483647, %v2864
        %vm4575 = vcmp.le.f32.partialorder %v4574, 0.7853982
        %vm4576 = vcmp.lt.s32.totalorder %v2864, 0
        %v4577 = vand.u32 %v2864, 2139095040
        %v4578 = vshrl.u32 %v4577, 23
        %v4579 = vsub.s32 %v4578, 127
        %v4580 = vand.u32 2147483647, %v2864
        %v4581 = vand.u32 %v4580, 8388607
        %v4582 = vor.u32 %v4581, 8388608
        %v4583 = vsub.s32 0, %v4582
        %v4584 = vadd.s32 %v4579, 1
        %vm4585 = vcmp.gt.s32.totalorder %v4584, 0
        %v4586 = vsel %vm4585, %v4584, 0
        %v4587 = vshrl.u32 %v4586, 5
        %v4588 = vand.u32 %v4586, 31
        %v4589 = vsub.s32 32, %v4588
        %v4590 = vshrl.u32 683565275, %v4589
        %v4591 = vshll.u32 683565275, %v4588
        %v4592 = vshrl.u32 2475754826, %v4589
        %v4593 = vor.u32 %v4591, %v4592
        %v4594 = vshll.u32 2475754826, %v4588
        %v4595 = vshrl.u32 2131351028, %v4589
        %v4596 = vor.u32 %v4594, %v4595
        %v4597 = vshll.u32 2131351028, %v4588
        %v4598 = vshrl.u32 2102212464, %v4589
        %v4599 = vor.u32 %v4597, %v4598
        %v4600 = vshll.u32 2102212464, %v4588
        %v4601 = vshrl.u32 920167782, %v4589
        %v4602 = vor.u32 %v4600, %v4601
        %v4603 = vshll.u32 920167782, %v4588
        %v4604 = vshrl.u32 1326507024, %v4589
        %v4605 = vor.u32 %v4603, %v4604
        %vm4606 = vcmp.lt.s32.totalorder %v4587, 1
        %vm4607 = vcmp.lt.s32.totalorder %v4587, 2
        %vm4608 = vcmp.lt.s32.totalorder %v4587, 3
        %vm4609 = vcmp.lt.s32.totalorder %v4587, 4
        %v4610 = vsel %vm4606, %v4590, %v4593
        %v4611 = vsel %vm4609, %v4599, 2102212464
        %v4612 = vsel %vm4608, %v4596, %v4611
        %v4613 = vsel %vm4607, %v4610, %v4612
        %v4614 = vsel %vm4606, %v4593, %v4596
        %v4615 = vsel %vm4609, %v4602, 920167782
        %v4616 = vsel %vm4608, %v4599, %v4615
        %v4617 = vsel %vm4607, %v4614, %v4616
        %v4618 = vsel %vm4606, %v4596, %v4599
        %v4619 = vsel %vm4609, %v4605, 1326507024
        %v4620 = vsel %vm4608, %v4602, %v4619
        %v4621 = vsel %vm4607, %v4618, %v4620
        %v4622 = vshll.u32 %v4582, 8
        %v4623 = vand.u32 %v4622, 65535
        %v4624 = vshrl.u32 %v4622, 16
        %v4625 = vand.u32 %v4621, 65535
        %v4626 = vshrl.u32 %v4621, 16
        %v4627 = vmul.u32 %v4623, %v4625
        %v4628 = vmul.u32 %v4623, %v4626
        %v4629 = vmul.u32 %v4624, %v4625
        %v4630 = vmul.u32 %v4624, %v4626
        %v4631 = vshll.u32 %v4628, 16
        %v4632 = vshrl.u32 %v4628, 16
        %v4633 = vshll.u32 %v4629, 16
        %v4634 = vshrl.u32 %v4629, 16
        %vm4635 = vc.u32 %v4627, %v4631
        %v4636 = vsel %vm4635, 1, 0
        %v4637 = vadd.s32 %v4627, %v4631
        %v4638 = vadd.s32 %v4630, %v4636
        %vm4639 = vc.u32 %v4637, %v4633
        %v4640 = vsel %vm4639, 1, 0
        %v4641 = vadd.s32 %v4637, %v4633
        %v4642 = vadd.s32 %v4638, %v4640
        %v4643 = vadd.s32 %v4642, %v4632
        %v4644 = vadd.s32 %v4643, %v4634
        %v4645 = vand.u32 %v4622, 65535
        %v4646 = vshrl.u32 %v4622, 16
        %v4647 = vand.u32 %v4617, 65535
        %v4648 = vshrl.u32 %v4617, 16
        %v4649 = vmul.u32 %v4645, %v4647
        %v4650 = vmul.u32 %v4645, %v4648
        %v4651 = vmul.u32 %v4646, %v4647
        %v4652 = vmul.u32 %v4646, %v4648
        %v4653 = vshll.u32 %v4650, 16
        %v4654 = vshrl.u32 %v4650, 16
        %v4655 = vshll.u32 %v4651, 16
        %v4656 = vshrl.u32 %v4651, 16
        %vm4657 = vc.u32 %v4649, %v4653
        %v4658 = vsel %vm4657, 1, 0
        %v4659 = vadd.s32 %v4649, %v4653
        %v4660 = vadd.s32 %v4652, %v4658
        %vm4661 = vc.u32 %v4659, %v4655
        %v4662 = vsel %vm4661, 1, 0
        %v4663 = vadd.s32 %v4659, %v4655
        %v4664 = vadd.s32 %v4660, %v4662
        %v4665 = vadd.s32 %v4664, %v4654
        %v4666 = vadd.s32 %v4665, %v4656
        %v4667 = vmul.u32 %v4622, %v4613
        %v4668 = vadd.s32 %v4644, %v4663
        %vm4669 = vc.u32 %v4644, %v4663
        %v4670 = vadd.s32 %v4666, 1
        %v4671 = vsel %vm4669, %v4670, %v4666
        %v4672 = vadd.s32 %v4667, %v4671
        %v4673 = vadd.s32 %v4672, 536870912
        %v4674 = vshrl.u32 %v4673, 30
        %v4675 = vshll.u32 %v4674, 30
        %v4676 = vsub.s32 %v4672, %v4675
        %vm4677 = vcmp.lt.s32.totalorder %v4676, 0
        %v4678 = vsub.s32 0, %v4676
        %v4679 = vsel %vm4677, %v4678, %v4676
        %v4680 = vclz %v4679
        %v4681 = vsub.s32 %v4680, 2
        %vm4682 = vcmp.gt.s32.totalorder 0, %v4681
        %v4683 = vsel %vm4682, 0, %v4681
        %v4684 = vsub.s32 32, %v4683
        %v4685 = vshll.u32 %v4676, %v4683
        %v4686 = vshrl.u32 %v4668, %v4684
        %v4687 = vor.u32 %v4685, %v4686
        %v4688 = vsub.s32 4294967266, %v4683
        %v4689 = vadd.s32 %v4688, 127
        %v4690 = vshll.u32 %v4689, 23
        %v4691 = vor.u32 4788187, %v4690
        %v4692 = vand.u32 2147483647, %v4691
        %v4694 = vcvt.s32.f32 %v4687
        %v4695 = vmul.f32 %v4694, %v4692
        %v4696 = vxor.u32 %v4695, 2147483648
        %v4697 = vsel %vm4576, %v4696, %v4695
        %v4698 = vsub.s32 4, %v4674
        %v4699 = vsel %vm4576, %v4698, %v4674
        %v4700 = vsel %vm4575, %v2864, %v4697
        %v4701 = vsel %vm4575, 0, %v4699
        %v4702 = vmul.f32 %v4700, %v4700
        %v4703 = vmul.f32 %v4702, -0.001358992
        %v4704 = vadd.f32 %v4703, 0.041655596
        %v4705 = vmul.f32 %v4702, %v4704
        %v4706 = vadd.f32 %v4705, -0.4999988
        %v4707 = vmul.f32 %v4702, %v4706
        %v4708 = vadd.f32 1.0, %v4707
        %v4709 = vmul.f32 %v4700, %v4700
        %v4710 = vmul.f32 %v4709, -0.00019511016
        %v4711 = vadd.f32 %v4710, 0.008332121
        %v4712 = vmul.f32 %v4709, %v4711
        %v4713 = vadd.f32 %v4712, -0.16666654
        %v4714 = vmul.f32 %v4709, %v4713
        %v4715 = vadd.f32 %v4714, 1.0
        %v4716 = vmul.f32 %v4715, %v4700
        %vm4717 = vweird.f32 %v2864
        %v4718 = vadd.s32 %v4701, 3
        %v4719 = vand.u32 %v4718, 3
        %vm4720 = vcmp.lt.s32.totalorder %v4719, 2
        %vm4721 = vcmp.eq.s32.totalorder %v4719, 0
        %v4722 = vxor.u32 %v4716, 2147483648
        %v4723 = vsel %vm4721, %v4708, %v4722
        %vm4724 = vcmp.eq.s32.totalorder %v4719, 2
        %v4725 = vxor.u32 %v4708, 2147483648
        %v4726 = vsel %vm4724, %v4725, %v4716
        %v4727 = vsel %vm4720, %v4723, %v4726
        %v4728 = vsel %vm4717, nan, %v4727
        %v4729 = vand.u32 2147483647, %v2865
        %vm4730 = vcmp.le.f32.partialorder %v4729, 0.7853982
        %vm4731 = vcmp.lt.s32.totalorder %v2865, 0
        %v4732 = vand.u32 %v2865, 2139095040
        %v4733 = vshrl.u32 %v4732, 23
        %v4734 = vsub.s32 %v4733, 127
        %v4735 = vand.u32 2147483647, %v2865
        %v4736 = vand.u32 %v4735, 8388607
        %v4737 = vor.u32 %v4736, 8388608
        %v4738 = vsub.s32 0, %v4737
        %v4739 = vadd.s32 %v4734, 1
        %vm4740 = vcmp.gt.s32.totalorder %v4739, 0
        %v4741 = vsel %vm4740, %v4739, 0
        %v4742 = vshrl.u32 %v4741, 5
        %v4743 = vand.u32 %v4741, 31
        %v4744 = vsub.s32 32, %v4743
        %v4745 = vshrl.u32 683565275, %v4744
        %v4746 = vshll.u32 683565275, %v4743
        %v4747 = vshrl.u32 2475754826, %v4744
        %v4748 = vor.u32 %v4746, %v4747
        %v4749 = vshll.u32 2475754826, %v4743
        %v4750 = vshrl.u32 2131351028, %v4744
        %v4751 = vor.u32 %v4749, %v4750
        %v4752 = vshll.u32 2131351028, %v4743
        %v4753 = vshrl.u32 2102212464, %v4744
        %v4754 = vor.u32 %v4752, %v4753
        %v4755 = vshll.u32 2102212464, %v4743
        %v4756 = vshrl.u32 920167782, %v4744
        %v4757 = vor.u32 %v4755, %v4756
        %v4758 = vshll.u32 920167782, %v4743
        %v4759 = vshrl.u32 1326507024, %v4744
        %v4760 = vor.u32 %v4758, %v4759
        %vm4761 = vcmp.lt.s32.totalorder %v4742, 1
        %vm4762 = vcmp.lt.s32.totalorder %v4742, 2
        %vm4763 = vcmp.lt.s32.totalorder %v4742, 3
        %vm4764 = vcmp.lt.s32.totalorder %v4742, 4
        %v4765 = vsel %vm4761, %v4745, %v4748
        %v4766 = vsel %vm4764, %v4754, 2102212464
        %v4767 = vsel %vm4763, %v4751, %v4766
        %v4768 = vsel %vm4762, %v4765, %v4767
        %v4769 = vsel %vm4761, %v4748, %v4751
        %v4770 = vsel %vm4764, %v4757, 920167782
        %v4771 = vsel %vm4763, %v4754, %v4770
        %v4772 = vsel %vm4762, %v4769, %v4771
        %v4773 = vsel %vm4761, %v4751, %v4754
        %v4774 = vsel %vm4764, %v4760, 1326507024
        %v4775 = vsel %vm4763, %v4757, %v4774
        %v4776 = vsel %vm4762, %v4773, %v4775
        %v4777 = vshll.u32 %v4737, 8
        %v4778 = vand.u32 %v4777, 65535
        %v4779 = vshrl.u32 %v4777, 16
        %v4780 = vand.u32 %v4776, 65535
        %v4781 = vshrl.u32 %v4776, 16
        %v4782 = vmul.u32 %v4778, %v4780
        %v4783 = vmul.u32 %v4778, %v4781
        %v4784 = vmul.u32 %v4779, %v4780
        %v4785 = vmul.u32 %v4779, %v4781
        %v4786 = vshll.u32 %v4783, 16
        %v4787 = vshrl.u32 %v4783, 16
        %v4788 = vshll.u32 %v4784, 16
        %v4789 = vshrl.u32 %v4784, 16
        %vm4790 = vc.u32 %v4782, %v4786
        %v4791 = vsel %vm4790, 1, 0
        %v4792 = vadd.s32 %v4782, %v4786
        %v4793 = vadd.s32 %v4785, %v4791
        %vm4794 = vc.u32 %v4792, %v4788
        %v4795 = vsel %vm4794, 1, 0
        %v4796 = vadd.s32 %v4792, %v4788
        %v4797 = vadd.s32 %v4793, %v4795
        %v4798 = vadd.s32 %v4797, %v4787
        %v4799 = vadd.s32 %v4798, %v4789
        %v4800 = vand.u32 %v4777, 65535
        %v4801 = vshrl.u32 %v4777, 16
        %v4802 = vand.u32 %v4772, 65535
        %v4803 = vshrl.u32 %v4772, 16
        %v4804 = vmul.u32 %v4800, %v4802
        %v4805 = vmul.u32 %v4800, %v4803
        %v4806 = vmul.u32 %v4801, %v4802
        %v4807 = vmul.u32 %v4801, %v4803
        %v4808 = vshll.u32 %v4805, 16
        %v4809 = vshrl.u32 %v4805, 16
        %v4810 = vshll.u32 %v4806, 16
        %v4811 = vshrl.u32 %v4806, 16
        %vm4812 = vc.u32 %v4804, %v4808
        %v4813 = vsel %vm4812, 1, 0
        %v4814 = vadd.s32 %v4804, %v4808
        %v4815 = vadd.s32 %v4807, %v4813
        %vm4816 = vc.u32 %v4814, %v4810
        %v4817 = vsel %vm4816, 1, 0
        %v4818 = vadd.s32 %v4814, %v4810
        %v4819 = vadd.s32 %v4815, %v4817
        %v4820 = vadd.s32 %v4819, %v4809
        %v4821 = vadd.s32 %v4820, %v4811
        %v4822 = vmul.u32 %v4777, %v4768
        %v4823 = vadd.s32 %v4799, %v4818
        %vm4824 = vc.u32 %v4799, %v4818
        %v4825 = vadd.s32 %v4821, 1
        %v4826 = vsel %vm4824, %v4825, %v4821
        %v4827 = vadd.s32 %v4822, %v4826
        %v4828 = vadd.s32 %v4827, 536870912
        %v4829 = vshrl.u32 %v4828, 30
        %v4830 = vshll.u32 %v4829, 30
        %v4831 = vsub.s32 %v4827, %v4830
        %vm4832 = vcmp.lt.s32.totalorder %v4831, 0
        %v4833 = vsub.s32 0, %v4831
        %v4834 = vsel %vm4832, %v4833, %v4831
        %v4835 = vclz %v4834
        %v4836 = vsub.s32 %v4835, 2
        %vm4837 = vcmp.gt.s32.totalorder 0, %v4836
        %v4838 = vsel %vm4837, 0, %v4836
        %v4839 = vsub.s32 32, %v4838
        %v4840 = vshll.u32 %v4831, %v4838
        %v4841 = vshrl.u32 %v4823, %v4839
        %v4842 = vor.u32 %v4840, %v4841
        %v4843 = vsub.s32 4294967266, %v4838
        %v4844 = vadd.s32 %v4843, 127
        %v4845 = vshll.u32 %v4844, 23
        %v4846 = vor.u32 4788187, %v4845
        %v4847 = vand.u32 2147483647, %v4846
        %v4849 = vcvt.s32.f32 %v4842
        %v4850 = vmul.f32 %v4849, %v4847
        %v4851 = vxor.u32 %v4850, 2147483648
        %v4852 = vsel %vm4731, %v4851, %v4850
        %v4853 = vsub.s32 4, %v4829
        %v4854 = vsel %vm4731, %v4853, %v4829
        %v4855 = vsel %vm4730, %v2865, %v4852
        %v4856 = vsel %vm4730, 0, %v4854
        %v4857 = vmul.f32 %v4855, %v4855
        %v4858 = vmul.f32 %v4857, -0.001358992
        %v4859 = vadd.f32 %v4858, 0.041655596
        %v4860 = vmul.f32 %v4857, %v4859
        %v4861 = vadd.f32 %v4860, -0.4999988
        %v4862 = vmul.f32 %v4857, %v4861
        %v4863 = vadd.f32 1.0, %v4862
        %v4864 = vmul.f32 %v4855, %v4855
        %v4865 = vmul.f32 %v4864, -0.00019511016
        %v4866 = vadd.f32 %v4865, 0.008332121
        %v4867 = vmul.f32 %v4864, %v4866
        %v4868 = vadd.f32 %v4867, -0.16666654
        %v4869 = vmul.f32 %v4864, %v4868
        %v4870 = vadd.f32 %v4869, 1.0
        %v4871 = vmul.f32 %v4870, %v4855
        %vm4872 = vweird.f32 %v2865
        %v4873 = vadd.s32 %v4856, 3
        %v4874 = vand.u32 %v4873, 3
        %vm4875 = vcmp.lt.s32.totalorder %v4874, 2
        %vm4876 = vcmp.eq.s32.totalorder %v4874, 0
        %v4877 = vxor.u32 %v4871, 2147483648
        %v4878 = vsel %vm4876, %v4863, %v4877
        %vm4879 = vcmp.eq.s32.totalorder %v4874, 2
        %v4880 = vxor.u32 %v4863, 2147483648
        %v4881 = vsel %vm4879, %v4880, %v4871
        %v4882 = vsel %vm4875, %v4878, %v4881
        %v4883 = vsel %vm4872, nan, %v4882
        %v4884 = vand.u32 2147483647, %v2866
        %vm4885 = vcmp.le.f32.partialorder %v4884, 0.7853982
        %vm4886 = vcmp.lt.s32.totalorder %v2866, 0
        %v4887 = vand.u32 %v2866, 2139095040
        %v4888 = vshrl.u32 %v4887, 23
        %v4889 = vsub.s32 %v4888, 127
        %v4890 = vand.u32 2147483647, %v2866
        %v4891 = vand.u32 %v4890, 8388607
        %v4892 = vor.u32 %v4891, 8388608
        %v4893 = vsub.s32 0, %v4892
        %v4894 = vadd.s32 %v4889, 1
        %vm4895 = vcmp.gt.s32.totalorder %v4894, 0
        %v4896 = vsel %vm4895, %v4894, 0
        %v4897 = vshrl.u32 %v4896, 5
        %v4898 = vand.u32 %v4896, 31
        %v4899 = vsub.s32 32, %v4898
        %v4900 = vshrl.u32 683565275, %v4899
        %v4901 = vshll.u32 683565275, %v4898
        %v4902 = vshrl.u32 2475754826, %v4899
        %v4903 = vor.u32 %v4901, %v4902
        %v4904 = vshll.u32 2475754826, %v4898
        %v4905 = vshrl.u32 2131351028, %v4899
        %v4906 = vor.u32 %v4904, %v4905
        %v4907 = vshll.u32 2131351028, %v4898
        %v4908 = vshrl.u32 2102212464, %v4899
        %v4909 = vor.u32 %v4907, %v4908
        %v4910 = vshll.u32 2102212464, %v4898
        %v4911 = vshrl.u32 920167782, %v4899
        %v4912 = vor.u32 %v4910, %v4911
        %v4913 = vshll.u32 920167782, %v4898
        %v4914 = vshrl.u32 1326507024, %v4899
        %v4915 = vor.u32 %v4913, %v4914
        %vm4916 = vcmp.lt.s32.totalorder %v4897, 1
        %vm4917 = vcmp.lt.s32.totalorder %v4897, 2
        %vm4918 = vcmp.lt.s32.totalorder %v4897, 3
        %vm4919 = vcmp.lt.s32.totalorder %v4897, 4
        %v4920 = vsel %vm4916, %v4900, %v4903
        %v4921 = vsel %vm4919, %v4909, 2102212464
        %v4922 = vsel %vm4918, %v4906, %v4921
        %v4923 = vsel %vm4917, %v4920, %v4922
        %v4924 = vsel %vm4916, %v4903, %v4906
        %v4925 = vsel %vm4919, %v4912, 920167782
        %v4926 = vsel %vm4918, %v4909, %v4925
        %v4927 = vsel %vm4917, %v4924, %v4926
        %v4928 = vsel %vm4916, %v4906, %v4909
        %v4929 = vsel %vm4919, %v4915, 1326507024
        %v4930 = vsel %vm4918, %v4912, %v4929
        %v4931 = vsel %vm4917, %v4928, %v4930
        %v4932 = vshll.u32 %v4892, 8
        %v4933 = vand.u32 %v4932, 65535
        %v4934 = vshrl.u32 %v4932, 16
        %v4935 = vand.u32 %v4931, 65535
        %v4936 = vshrl.u32 %v4931, 16
        %v4937 = vmul.u32 %v4933, %v4935
        %v4938 = vmul.u32 %v4933, %v4936
        %v4939 = vmul.u32 %v4934, %v4935
        %v4940 = vmul.u32 %v4934, %v4936
        %v4941 = vshll.u32 %v4938, 16
        %v4942 = vshrl.u32 %v4938, 16
        %v4943 = vshll.u32 %v4939, 16
        %v4944 = vshrl.u32 %v4939, 16
        %vm4945 = vc.u32 %v4937, %v4941
        %v4946 = vsel %vm4945, 1, 0
        %v4947 = vadd.s32 %v4937, %v4941
        %v4948 = vadd.s32 %v4940, %v4946
        %vm4949 = vc.u32 %v4947, %v4943
        %v4950 = vsel %vm4949, 1, 0
        %v4951 = vadd.s32 %v4947, %v4943
        %v4952 = vadd.s32 %v4948, %v4950
        %v4953 = vadd.s32 %v4952, %v4942
        %v4954 = vadd.s32 %v4953, %v4944
        %v4955 = vand.u32 %v4932, 65535
        %v4956 = vshrl.u32 %v4932, 16
        %v4957 = vand.u32 %v4927, 65535
        %v4958 = vshrl.u32 %v4927, 16
        %v4959 = vmul.u32 %v4955, %v4957
        %v4960 = vmul.u32 %v4955, %v4958
        %v4961 = vmul.u32 %v4956, %v4957
        %v4962 = vmul.u32 %v4956, %v4958
        %v4963 = vshll.u32 %v4960, 16
        %v4964 = vshrl.u32 %v4960, 16
        %v4965 = vshll.u32 %v4961, 16
        %v4966 = vshrl.u32 %v4961, 16
        %vm4967 = vc.u32 %v4959, %v4963
        %v4968 = vsel %vm4967, 1, 0
        %v4969 = vadd.s32 %v4959, %v4963
        %v4970 = vadd.s32 %v4962, %v4968
        %vm4971 = vc.u32 %v4969, %v4965
        %v4972 = vsel %vm4971, 1, 0
        %v4973 = vadd.s32 %v4969, %v4965
        %v4974 = vadd.s32 %v4970, %v4972
        %v4975 = vadd.s32 %v4974, %v4964
        %v4976 = vadd.s32 %v4975, %v4966
        %v4977 = vmul.u32 %v4932, %v4923
        %v4978 = vadd.s32 %v4954, %v4973
        %vm4979 = vc.u32 %v4954, %v4973
        %v4980 = vadd.s32 %v4976, 1
        %v4981 = vsel %vm4979, %v4980, %v4976
        %v4982 = vadd.s32 %v4977, %v4981
        %v4983 = vadd.s32 %v4982, 536870912
        %v4984 = vshrl.u32 %v4983, 30
        %v4985 = vshll.u32 %v4984, 30
        %v4986 = vsub.s32 %v4982, %v4985
        %vm4987 = vcmp.lt.s32.totalorder %v4986, 0
        %v4988 = vsub.s32 0, %v4986
        %v4989 = vsel %vm4987, %v4988, %v4986
        %v4990 = vclz %v4989
        %v4991 = vsub.s32 %v4990, 2
        %vm4992 = vcmp.gt.s32.totalorder 0, %v4991
        %v4993 = vsel %vm4992, 0, %v4991
        %v4994 = vsub.s32 32, %v4993
        %v4995 = vshll.u32 %v4986, %v4993
        %v4996 = vshrl.u32 %v4978, %v4994
        %v4997 = vor.u32 %v4995, %v4996
        %v4998 = vsub.s32 4294967266, %v4993
        %v4999 = vadd.s32 %v4998, 127
        %v5000 = vshll.u32 %v4999, 23
        %v5001 = vor.u32 4788187, %v5000
        %v5002 = vand.u32 2147483647, %v5001
        %v5004 = vcvt.s32.f32 %v4997
        %v5005 = vmul.f32 %v5004, %v5002
        %v5006 = vxor.u32 %v5005, 2147483648
        %v5007 = vsel %vm4886, %v5006, %v5005
        %v5008 = vsub.s32 4, %v4984
        %v5009 = vsel %vm4886, %v5008, %v4984
        %v5010 = vsel %vm4885, %v2866, %v5007
        %v5011 = vsel %vm4885, 0, %v5009
        %v5012 = vmul.f32 %v5010, %v5010
        %v5013 = vmul.f32 %v5012, -0.001358992
        %v5014 = vadd.f32 %v5013, 0.041655596
        %v5015 = vmul.f32 %v5012, %v5014
        %v5016 = vadd.f32 %v5015, -0.4999988
        %v5017 = vmul.f32 %v5012, %v5016
        %v5018 = vadd.f32 1.0, %v5017
        %v5019 = vmul.f32 %v5010, %v5010
        %v5020 = vmul.f32 %v5019, -0.00019511016
        %v5021 = vadd.f32 %v5020, 0.008332121
        %v5022 = vmul.f32 %v5019, %v5021
        %v5023 = vadd.f32 %v5022, -0.16666654
        %v5024 = vmul.f32 %v5019, %v5023
        %v5025 = vadd.f32 %v5024, 1.0
        %v5026 = vmul.f32 %v5025, %v5010
        %vm5027 = vweird.f32 %v2866
        %v5028 = vadd.s32 %v5011, 3
        %v5029 = vand.u32 %v5028, 3
        %vm5030 = vcmp.lt.s32.totalorder %v5029, 2
        %vm5031 = vcmp.eq.s32.totalorder %v5029, 0
        %v5032 = vxor.u32 %v5026, 2147483648
        %v5033 = vsel %vm5031, %v5018, %v5032
        %vm5034 = vcmp.eq.s32.totalorder %v5029, 2
        %v5035 = vxor.u32 %v5018, 2147483648
        %v5036 = vsel %vm5034, %v5035, %v5026
        %v5037 = vsel %vm5030, %v5033, %v5036
        %v5038 = vsel %vm5027, nan, %v5037
        %v5039 = vand.u32 2147483647, %v2867
        %vm5040 = vcmp.le.f32.partialorder %v5039, 0.7853982
        %vm5041 = vcmp.lt.s32.totalorder %v2867, 0
        %v5042 = vand.u32 %v2867, 2139095040
        %v5043 = vshrl.u32 %v5042, 23
        %v5044 = vsub.s32 %v5043, 127
        %v5045 = vand.u32 2147483647, %v2867
        %v5046 = vand.u32 %v5045, 8388607
        %v5047 = vor.u32 %v5046, 8388608
        %v5048 = vsub.s32 0, %v5047
        %v5049 = vadd.s32 %v5044, 1
        %vm5050 = vcmp.gt.s32.totalorder %v5049, 0
        %v5051 = vsel %vm5050, %v5049, 0
        %v5052 = vshrl.u32 %v5051, 5
        %v5053 = vand.u32 %v5051, 31
        %v5054 = vsub.s32 32, %v5053
        %v5055 = vshrl.u32 683565275, %v5054
        %v5056 = vshll.u32 683565275, %v5053
        %v5057 = vshrl.u32 2475754826, %v5054
        %v5058 = vor.u32 %v5056, %v5057
        %v5059 = vshll.u32 2475754826, %v5053
        %v5060 = vshrl.u32 2131351028, %v5054
        %v5061 = vor.u32 %v5059, %v5060
        %v5062 = vshll.u32 2131351028, %v5053
        %v5063 = vshrl.u32 2102212464, %v5054
        %v5064 = vor.u32 %v5062, %v5063
        %v5065 = vshll.u32 2102212464, %v5053
        %v5066 = vshrl.u32 920167782, %v5054
        %v5067 = vor.u32 %v5065, %v5066
        %v5068 = vshll.u32 920167782, %v5053
        %v5069 = vshrl.u32 1326507024, %v5054
        %v5070 = vor.u32 %v5068, %v5069
        %vm5071 = vcmp.lt.s32.totalorder %v5052, 1
        %vm5072 = vcmp.lt.s32.totalorder %v5052, 2
        %vm5073 = vcmp.lt.s32.totalorder %v5052, 3
        %vm5074 = vcmp.lt.s32.totalorder %v5052, 4
        %v5075 = vsel %vm5071, %v5055, %v5058
        %v5076 = vsel %vm5074, %v5064, 2102212464
        %v5077 = vsel %vm5073, %v5061, %v5076
        %v5078 = vsel %vm5072, %v5075, %v5077
        %v5079 = vsel %vm5071, %v5058, %v5061
        %v5080 = vsel %vm5074, %v5067, 920167782
        %v5081 = vsel %vm5073, %v5064, %v5080
        %v5082 = vsel %vm5072, %v5079, %v5081
        %v5083 = vsel %vm5071, %v5061, %v5064
        %v5084 = vsel %vm5074, %v5070, 1326507024
        %v5085 = vsel %vm5073, %v5067, %v5084
        %v5086 = vsel %vm5072, %v5083, %v5085
        %v5087 = vshll.u32 %v5047, 8
        %v5088 = vand.u32 %v5087, 65535
        %v5089 = vshrl.u32 %v5087, 16
        %v5090 = vand.u32 %v5086, 65535
        %v5091 = vshrl.u32 %v5086, 16
        %v5092 = vmul.u32 %v5088, %v5090
        %v5093 = vmul.u32 %v5088, %v5091
        %v5094 = vmul.u32 %v5089, %v5090
        %v5095 = vmul.u32 %v5089, %v5091
        %v5096 = vshll.u32 %v5093, 16
        %v5097 = vshrl.u32 %v5093, 16
        %v5098 = vshll.u32 %v5094, 16
        %v5099 = vshrl.u32 %v5094, 16
        %vm5100 = vc.u32 %v5092, %v5096
        %v5101 = vsel %vm5100, 1, 0
        %v5102 = vadd.s32 %v5092, %v5096
        %v5103 = vadd.s32 %v5095, %v5101
        %vm5104 = vc.u32 %v5102, %v5098
        %v5105 = vsel %vm5104, 1, 0
        %v5106 = vadd.s32 %v5102, %v5098
        %v5107 = vadd.s32 %v5103, %v5105
        %v5108 = vadd.s32 %v5107, %v5097
        %v5109 = vadd.s32 %v5108, %v5099
        %v5110 = vand.u32 %v5087, 65535
        %v5111 = vshrl.u32 %v5087, 16
        %v5112 = vand.u32 %v5082, 65535
        %v5113 = vshrl.u32 %v5082, 16
        %v5114 = vmul.u32 %v5110, %v5112
        %v5115 = vmul.u32 %v5110, %v5113
        %v5116 = vmul.u32 %v5111, %v5112
        %v5117 = vmul.u32 %v5111, %v5113
        %v5118 = vshll.u32 %v5115, 16
        %v5119 = vshrl.u32 %v5115, 16
        %v5120 = vshll.u32 %v5116, 16
        %v5121 = vshrl.u32 %v5116, 16
        %vm5122 = vc.u32 %v5114, %v5118
        %v5123 = vsel %vm5122, 1, 0
        %v5124 = vadd.s32 %v5114, %v5118
        %v5125 = vadd.s32 %v5117, %v5123
        %vm5126 = vc.u32 %v5124, %v5120
        %v5127 = vsel %vm5126, 1, 0
        %v5128 = vadd.s32 %v5124, %v5120
        %v5129 = vadd.s32 %v5125, %v5127
        %v5130 = vadd.s32 %v5129, %v5119
        %v5131 = vadd.s32 %v5130, %v5121
        %v5132 = vmul.u32 %v5087, %v5078
        %v5133 = vadd.s32 %v5109, %v5128
        %vm5134 = vc.u32 %v5109, %v5128
        %v5135 = vadd.s32 %v5131, 1
        %v5136 = vsel %vm5134, %v5135, %v5131
        %v5137 = vadd.s32 %v5132, %v5136
        %v5138 = vadd.s32 %v5137, 536870912
        %v5139 = vshrl.u32 %v5138, 30
        %v5140 = vshll.u32 %v5139, 30
        %v5141 = vsub.s32 %v5137, %v5140
        %vm5142 = vcmp.lt.s32.totalorder %v5141, 0
        %v5143 = vsub.s32 0, %v5141
        %v5144 = vsel %vm5142, %v5143, %v5141
        %v5145 = vclz %v5144
        %v5146 = vsub.s32 %v5145, 2
        %vm5147 = vcmp.gt.s32.totalorder 0, %v5146
        %v5148 = vsel %vm5147, 0, %v5146
        %v5149 = vsub.s32 32, %v5148
        %v5150 = vshll.u32 %v5141, %v5148
        %v5151 = vshrl.u32 %v5133, %v5149
        %v5152 = vor.u32 %v5150, %v5151
        %v5153 = vsub.s32 4294967266, %v5148
        %v5154 = vadd.s32 %v5153, 127
        %v5155 = vshll.u32 %v5154, 23
        %v5156 = vor.u32 4788187, %v5155
        %v5157 = vand.u32 2147483647, %v5156
        %v5159 = vcvt.s32.f32 %v5152
        %v5160 = vmul.f32 %v5159, %v5157
        %v5161 = vxor.u32 %v5160, 2147483648
        %v5162 = vsel %vm5041, %v5161, %v5160
        %v5163 = vsub.s32 4, %v5139
        %v5164 = vsel %vm5041, %v5163, %v5139
        %v5165 = vsel %vm5040, %v2867, %v5162
        %v5166 = vsel %vm5040, 0, %v5164
        %v5167 = vmul.f32 %v5165, %v5165
        %v5168 = vmul.f32 %v5167, -0.001358992
        %v5169 = vadd.f32 %v5168, 0.041655596
        %v5170 = vmul.f32 %v5167, %v5169
        %v5171 = vadd.f32 %v5170, -0.4999988
        %v5172 = vmul.f32 %v5167, %v5171
        %v5173 = vadd.f32 1.0, %v5172
        %v5174 = vmul.f32 %v5165, %v5165
        %v5175 = vmul.f32 %v5174, -0.00019511016
        %v5176 = vadd.f32 %v5175, 0.008332121
        %v5177 = vmul.f32 %v5174, %v5176
        %v5178 = vadd.f32 %v5177, -0.16666654
        %v5179 = vmul.f32 %v5174, %v5178
        %v5180 = vadd.f32 %v5179, 1.0
        %v5181 = vmul.f32 %v5180, %v5165
        %vm5182 = vweird.f32 %v2867
        %v5183 = vadd.s32 %v5166, 3
        %v5184 = vand.u32 %v5183, 3
        %vm5185 = vcmp.lt.s32.totalorder %v5184, 2
        %vm5186 = vcmp.eq.s32.totalorder %v5184, 0
        %v5187 = vxor.u32 %v5181, 2147483648
        %v5188 = vsel %vm5186, %v5173, %v5187
        %vm5189 = vcmp.eq.s32.totalorder %v5184, 2
        %v5190 = vxor.u32 %v5173, 2147483648
        %v5191 = vsel %vm5189, %v5190, %v5181
        %v5192 = vsel %vm5185, %v5188, %v5191
        %v5193 = vsel %vm5182, nan, %v5192
        %v5194 = vand.u32 2147483647, %v2868
        %vm5195 = vcmp.le.f32.partialorder %v5194, 0.7853982
        %vm5196 = vcmp.lt.s32.totalorder %v2868, 0
        %v5197 = vand.u32 %v2868, 2139095040
        %v5198 = vshrl.u32 %v5197, 23
        %v5199 = vsub.s32 %v5198, 127
        %v5200 = vand.u32 2147483647, %v2868
        %v5201 = vand.u32 %v5200, 8388607
        %v5202 = vor.u32 %v5201, 8388608
        %v5203 = vsub.s32 0, %v5202
        %v5204 = vadd.s32 %v5199, 1
        %vm5205 = vcmp.gt.s32.totalorder %v5204, 0
        %v5206 = vsel %vm5205, %v5204, 0
        %v5207 = vshrl.u32 %v5206, 5
        %v5208 = vand.u32 %v5206, 31
        %v5209 = vsub.s32 32, %v5208
        %v5210 = vshrl.u32 683565275, %v5209
        %v5211 = vshll.u32 683565275, %v5208
        %v5212 = vshrl.u32 2475754826, %v5209
        %v5213 = vor.u32 %v5211, %v5212
        %v5214 = vshll.u32 2475754826, %v5208
        %v5215 = vshrl.u32 2131351028, %v5209
        %v5216 = vor.u32 %v5214, %v5215
        %v5217 = vshll.u32 2131351028, %v5208
        %v5218 = vshrl.u32 2102212464, %v5209
        %v5219 = vor.u32 %v5217, %v5218
        %v5220 = vshll.u32 2102212464, %v5208
        %v5221 = vshrl.u32 920167782, %v5209
        %v5222 = vor.u32 %v5220, %v5221
        %v5223 = vshll.u32 920167782, %v5208
        %v5224 = vshrl.u32 1326507024, %v5209
        %v5225 = vor.u32 %v5223, %v5224
        %vm5226 = vcmp.lt.s32.totalorder %v5207, 1
        %vm5227 = vcmp.lt.s32.totalorder %v5207, 2
        %vm5228 = vcmp.lt.s32.totalorder %v5207, 3
        %vm5229 = vcmp.lt.s32.totalorder %v5207, 4
        %v5230 = vsel %vm5226, %v5210, %v5213
        %v5231 = vsel %vm5229, %v5219, 2102212464
        %v5232 = vsel %vm5228, %v5216, %v5231
        %v5233 = vsel %vm5227, %v5230, %v5232
        %v5234 = vsel %vm5226, %v5213, %v5216
        %v5235 = vsel %vm5229, %v5222, 920167782
        %v5236 = vsel %vm5228, %v5219, %v5235
        %v5237 = vsel %vm5227, %v5234, %v5236
        %v5238 = vsel %vm5226, %v5216, %v5219
        %v5239 = vsel %vm5229, %v5225, 1326507024
        %v5240 = vsel %vm5228, %v5222, %v5239
        %v5241 = vsel %vm5227, %v5238, %v5240
        %v5242 = vshll.u32 %v5202, 8
        %v5243 = vand.u32 %v5242, 65535
        %v5244 = vshrl.u32 %v5242, 16
        %v5245 = vand.u32 %v5241, 65535
        %v5246 = vshrl.u32 %v5241, 16
        %v5247 = vmul.u32 %v5243, %v5245
        %v5248 = vmul.u32 %v5243, %v5246
        %v5249 = vmul.u32 %v5244, %v5245
        %v5250 = vmul.u32 %v5244, %v5246
        %v5251 = vshll.u32 %v5248, 16
        %v5252 = vshrl.u32 %v5248, 16
        %v5253 = vshll.u32 %v5249, 16
        %v5254 = vshrl.u32 %v5249, 16
        %vm5255 = vc.u32 %v5247, %v5251
        %v5256 = vsel %vm5255, 1, 0
        %v5257 = vadd.s32 %v5247, %v5251
        %v5258 = vadd.s32 %v5250, %v5256
        %vm5259 = vc.u32 %v5257, %v5253
        %v5260 = vsel %vm5259, 1, 0
        %v5261 = vadd.s32 %v5257, %v5253
        %v5262 = vadd.s32 %v5258, %v5260
        %v5263 = vadd.s32 %v5262, %v5252
        %v5264 = vadd.s32 %v5263, %v5254
        %v5265 = vand.u32 %v5242, 65535
        %v5266 = vshrl.u32 %v5242, 16
        %v5267 = vand.u32 %v5237, 65535
        %v5268 = vshrl.u32 %v5237, 16
        %v5269 = vmul.u32 %v5265, %v5267
        %v5270 = vmul.u32 %v5265, %v5268
        %v5271 = vmul.u32 %v5266, %v5267
        %v5272 = vmul.u32 %v5266, %v5268
        %v5273 = vshll.u32 %v5270, 16
        %v5274 = vshrl.u32 %v5270, 16
        %v5275 = vshll.u32 %v5271, 16
        %v5276 = vshrl.u32 %v5271, 16
        %vm5277 = vc.u32 %v5269, %v5273
        %v5278 = vsel %vm5277, 1, 0
        %v5279 = vadd.s32 %v5269, %v5273
        %v5280 = vadd.s32 %v5272, %v5278
        %vm5281 = vc.u32 %v5279, %v5275
        %v5282 = vsel %vm5281, 1, 0
        %v5283 = vadd.s32 %v5279, %v5275
        %v5284 = vadd.s32 %v5280, %v5282
        %v5285 = vadd.s32 %v5284, %v5274
        %v5286 = vadd.s32 %v5285, %v5276
        %v5287 = vmul.u32 %v5242, %v5233
        %v5288 = vadd.s32 %v5264, %v5283
        %vm5289 = vc.u32 %v5264, %v5283
        %v5290 = vadd.s32 %v5286, 1
        %v5291 = vsel %vm5289, %v5290, %v5286
        %v5292 = vadd.s32 %v5287, %v5291
        %v5293 = vadd.s32 %v5292, 536870912
        %v5294 = vshrl.u32 %v5293, 30
        %v5295 = vshll.u32 %v5294, 30
        %v5296 = vsub.s32 %v5292, %v5295
        %vm5297 = vcmp.lt.s32.totalorder %v5296, 0
        %v5298 = vsub.s32 0, %v5296
        %v5299 = vsel %vm5297, %v5298, %v5296
        %v5300 = vclz %v5299
        %v5301 = vsub.s32 %v5300, 2
        %vm5302 = vcmp.gt.s32.totalorder 0, %v5301
        %v5303 = vsel %vm5302, 0, %v5301
        %v5304 = vsub.s32 32, %v5303
        %v5305 = vshll.u32 %v5296, %v5303
        %v5306 = vshrl.u32 %v5288, %v5304
        %v5307 = vor.u32 %v5305, %v5306
        %v5308 = vsub.s32 4294967266, %v5303
        %v5309 = vadd.s32 %v5308, 127
        %v5310 = vshll.u32 %v5309, 23
        %v5311 = vor.u32 4788187, %v5310
        %v5312 = vand.u32 2147483647, %v5311
        %v5314 = vcvt.s32.f32 %v5307
        %v5315 = vmul.f32 %v5314, %v5312
        %v5316 = vxor.u32 %v5315, 2147483648
        %v5317 = vsel %vm5196, %v5316, %v5315
        %v5318 = vsub.s32 4, %v5294
        %v5319 = vsel %vm5196, %v5318, %v5294
        %v5320 = vsel %vm5195, %v2868, %v5317
        %v5321 = vsel %vm5195, 0, %v5319
        %v5322 = vmul.f32 %v5320, %v5320
        %v5323 = vmul.f32 %v5322, -0.001358992
        %v5324 = vadd.f32 %v5323, 0.041655596
        %v5325 = vmul.f32 %v5322, %v5324
        %v5326 = vadd.f32 %v5325, -0.4999988
        %v5327 = vmul.f32 %v5322, %v5326
        %v5328 = vadd.f32 1.0, %v5327
        %v5329 = vmul.f32 %v5320, %v5320
        %v5330 = vmul.f32 %v5329, -0.00019511016
        %v5331 = vadd.f32 %v5330, 0.008332121
        %v5332 = vmul.f32 %v5329, %v5331
        %v5333 = vadd.f32 %v5332, -0.16666654
        %v5334 = vmul.f32 %v5329, %v5333
        %v5335 = vadd.f32 %v5334, 1.0
        %v5336 = vmul.f32 %v5335, %v5320
        %vm5337 = vweird.f32 %v2868
        %v5338 = vadd.s32 %v5321, 3
        %v5339 = vand.u32 %v5338, 3
        %vm5340 = vcmp.lt.s32.totalorder %v5339, 2
        %vm5341 = vcmp.eq.s32.totalorder %v5339, 0
        %v5342 = vxor.u32 %v5336, 2147483648
        %v5343 = vsel %vm5341, %v5328, %v5342
        %vm5344 = vcmp.eq.s32.totalorder %v5339, 2
        %v5345 = vxor.u32 %v5328, 2147483648
        %v5346 = vsel %vm5344, %v5345, %v5336
        %v5347 = vsel %vm5340, %v5343, %v5346
        %v5348 = vsel %vm5337, nan, %v5347
        %5349 = vst [vmem:[%s188 + $0x80] sm:$0xff] %v3023
        %5350 = vst [vmem:[%s188 + $0x88] sm:$0xff] %v3178
        %5351 = vst [vmem:[%s188 + $0x90] sm:$0xff] %v3333
        %5352 = vst [vmem:[%s188 + $0x98] sm:$0xff] %v3488
        %5353 = vst [vmem:[%s188 + $0xa0] sm:$0xff] %v3643
        %5354 = vst [vmem:[%s188 + $0xa8] sm:$0xff] %v3798
        %5355 = vst [vmem:[%s188 + $0xb0] sm:$0xff] %v3953
        %5356 = vst [vmem:[%s188 + $0xb8] sm:$0xff] %v4108
        %5357 = vst [vmem:[%s188 + $0xc0] sm:$0xff] %v4263
        %5358 = vst [vmem:[%s188 + $0xc8] sm:$0xff] %v4418
        %5359 = vst [vmem:[%s188 + $0xd0] sm:$0xff] %v4573
        %5360 = vst [vmem:[%s188 + $0xd8] sm:$0xff] %v4728
        %5361 = vst [vmem:[%s188 + $0xe0] sm:$0xff] %v4883
        %5362 = vst [vmem:[%s188 + $0xe8] sm:$0xff] %v5038
        %5363 = vst [vmem:[%s188 + $0xf0] sm:$0xff] %v5193
        %5364 = vst [vmem:[%s188 + $0xf8] sm:$0xff] %v5348
        %s5365 = sand.u32 %s109, 1
        %s5366 = scalar_lea.sflag [#allocation3], %s5365
        %s5367 = sand.u32 %s109, 1
        %s5368 = smul.addr %s5367, 256
        %s5369 = scalar_lea.vmem [#allocation2], %s5368
        // Predicated region
        $region33: #{tpu_custom_call.1} parent=31 // pred_check
          %p5370 = pneg %p119
        $region34: #{tpu_custom_call.1} parent=31 // pred_check_branch
          %5372 = sbr.rel (%p5370) target = $region36
        $region35: #{tpu_custom_call.1} parent=31 // pred_region
          %s5373 = smul.u32 2, %s22
          %5375 = vsyncadd %s5366, 0
          %s5376 = smul.addr %s21, 32
          %s5377 = sadd.s32 %s5373, %s5376
          %s5378 = smul.addr %s5377, 8
          %s5379 = scalar_lea.hbm %s3, %s5378
          %s5380 = sshll.u32 %s5369, 4
          %s5381 = int_to_ptr.vmem [resolvable:$true] %s5380
          %s5382 = sshll.u32 %s5379, 4
          %s5383 = int_to_ptr.hbm [resolvable:$true] %s5382
          %5388 = dma.vmem_to_hbm [thread:$0]  %s5381, 4096, %s5383, %s5366, 256, 256, 16
        $region36: #{tpu_custom_call.1} parent=31 // pred_fallthru
          _
      $region32: #{tpu_custom_call.1} parent=5 // pred_fallthru
        _
      %p5389 = scmp.le.s32.totalorder 2, %s12
      // Predicated region
      $region37: #{tpu_custom_call.1} parent=5 // pred_check
        %p5390 = pneg %p5389
      $region38: #{tpu_custom_call.1} parent=5 // pred_check_branch
        %5392 = sbr.rel (%p5390) target = $region40
      $region39: #{tpu_custom_call.1} parent=5 // pred_region
        %s5393 = ssub.s32 %s12, 2
        // Predicated region
        $region41: #{tpu_custom_call.1} parent=39 // pred_check
          %p5394 = pneg %p125
        $region42: #{tpu_custom_call.1} parent=39 // pred_check_branch
          %5396 = sbr.rel (%p5394) target = $region44
        $region43: #{tpu_custom_call.1} parent=39 // pred_region
          %s5397 = sand.u32 %s110, 1
          %s5398 = scalar_lea.sflag [#allocation3], %s5397
          %s5399 = sand.u32 %s110, 1
          %s5400 = smul.addr %s5399, 256
          %s5401 = scalar_lea.vmem [#allocation2], %s5400
          %5403 = dma.done %s5398, 4096
        $region44: #{tpu_custom_call.1} parent=39 // pred_fallthru
          _
      $region40: #{tpu_custom_call.1} parent=5 // pred_fallthru
        _
    $region6: #{tpu_custom_call.1} parent=1 // loop_footer
      %s16 = sadd.s32 1, %s12
    $region7: #{tpu_custom_call.1} parent=1 // loop_footer_branch
      %11 = sbr.rel target = $region3
    $region8: #{tpu_custom_call.1} parent=1 // loop_exit
      _
    %5404 = vsyncpa [#allocation3], 1
    %s5405 = scalar_lea.sflag [#allocation3], 1
    %5406 = vsyncpa %s5405, 1

</llo_original>
